<compile_context>
chip_gen: v7x
topology: tpu7x:2x2x1
jax: 0.10.0
libtpu: 0.0.40
codegen_flags: <defaults>
</compile_context>

<pallas_src>
import jax
import jax.numpy as jnp
from jax import lax
from jax.experimental import pallas as pl
from jax.experimental.pallas import tpu as pltpu

EPS = 1e-5  # PyTorch BatchNorm2d default


# ---------------------------------------------------------------------------
# Fused kernel: unpool-mask + (1x1 conv + BN + ReLU) + (3x3 conv + BN + ReLU)
# grid = (N,), one image per grid step; everything stays in VMEM.
# ---------------------------------------------------------------------------
def _decoder_block_kernel(xu_ref, iu_ref, xt_ref,
                          w1u_ref, w1t_ref, s1_ref, b1_ref,
                          w2_ref, s2_ref, b2_ref,
                          o_ref,
                          h1s_ref, acc_ref):
    H2, W2, C = xu_ref.shape
    Cout = o_ref.shape[-1]

    # ---- stage 1: MaxUnpool2d(2) as an elementwise mask (unpooled domain) --
    hh = lax.broadcasted_iota(jnp.int32, (H2, W2, C), 0)
    ww = lax.broadcasted_iota(jnp.int32, (H2, W2, C), 1)
    u = jnp.where(iu_ref[...] == hh * W2 + ww, xu_ref[...], 0.0)

    # concat + 1x1 conv == two bf16 matmuls summed (f32 accumulation)
    u2 = u.reshape(H2 * W2, C).astype(jnp.bfloat16)
    t2 = xt_ref[...].reshape(H2 * W2, C).astype(jnp.bfloat16)
    y1 = (jnp.dot(u2, w1u_ref[...], preferred_element_type=jnp.float32) +
          jnp.dot(t2, w1t_ref[...], preferred_element_type=jnp.float32))
    y1 = jnp.maximum(y1 * s1_ref[...] + b1_ref[...], 0.0)        # BN + ReLU

    # stage-1 result kept in VMEM scratch, zero-padded by one row along H
    h1s_ref[1, 1:H2 + 1, :, :] = y1.reshape(H2, W2, Cout)
    zrow = jnp.zeros((1, W2, Cout), jnp.float32)
    h1s_ref[1, 0:1, :, :] = zrow
    h1s_ref[1, H2 + 1:H2 + 2, :, :] = zrow

    # column-shifted copies for the 3x3 dx taps: XLU roll along W + edge mask
    center = h1s_ref[1, :, :, :]                       # (H2+2, W2, Cout)
    wcol = lax.broadcasted_iota(jnp.int32, (H2 + 2, W2, Cout), 1)
    h1s_ref[0, :, :, :] = jnp.where(wcol == 0, 0.0,
                                    pltpu.roll(center, 1, 1))       # col w-1
    h1s_ref[2, :, :, :] = jnp.where(wcol == W2 - 1, 0.0,
                                    pltpu.roll(center, W2 - 1, 1))  # col w+1

    # ---- stage 2: 3x3 conv (stride 1, pad 1) + BN + ReLU -------------------
    acc_ref[...] = jnp.zeros_like(acc_ref)
    for dy in range(3):                       # row offset into padded scratch
        for dx in range(3):                   # pre-shifted column variant
            lhs = h1s_ref[dx, dy:dy + H2, :, :].reshape(H2 * W2, Cout)
            acc_ref[...] += jnp.dot(lhs.astype(jnp.bfloat16),
                                    w2_ref[3 * dy + dx, :, :],
                                    preferred_element_type=jnp.float32)
    y2 = jnp.maximum(acc_ref[...] * s2_ref[...] + b2_ref[...], 0.0)
    o_ref[...] = y2.reshape(H2, W2, Cout)


def fused_decoder(xu, iu, xt, params):
    N, H2, W2, C = xu.shape
    Cout = params["w1u"].shape[1]
    return pl.pallas_call(
        _decoder_block_kernel,
        out_shape=jax.ShapeDtypeStruct((N, H2, W2, Cout), jnp.float32),
        grid=(N,),
        in_specs=[
            pl.BlockSpec((None, H2, W2, C), lambda n: (n, 0, 0, 0)),   # xu
            pl.BlockSpec((None, H2, W2, C), lambda n: (n, 0, 0, 0)),   # iu
            pl.BlockSpec((None, H2, W2, C), lambda n: (n, 0, 0, 0)),   # xt
            pl.BlockSpec((C, Cout), lambda n: (0, 0)),                 # w1u
            pl.BlockSpec((C, Cout), lambda n: (0, 0)),                 # w1t
            pl.BlockSpec((1, Cout), lambda n: (0, 0)),                 # sc1
            pl.BlockSpec((1, Cout), lambda n: (0, 0)),                 # sh1
            pl.BlockSpec((9, Cout, Cout), lambda n: (0, 0, 0)),        # w2
            pl.BlockSpec((1, Cout), lambda n: (0, 0)),                 # sc2
            pl.BlockSpec((1, Cout), lambda n: (0, 0)),                 # sh2
        ],
        out_specs=pl.BlockSpec((None, H2, W2, Cout), lambda n: (n, 0, 0, 0)),
        scratch_shapes=[
            pltpu.VMEM((3, H2 + 2, W2, Cout), jnp.float32),  # shifted h1 copies
            pltpu.VMEM((H2 * W2, Cout), jnp.float32),        # 3x3 accumulator
        ],
        compiler_params=pltpu.CompilerParams(
            dimension_semantics=("parallel",)),
    )(xu, iu, xt,
      params["w1u"], params["w1t"], params["sc1"], params["sh1"],
      params["w2"], params["sc2"], params["sh2"])


# ---------------------------------------------------------------------------
# Full DecoderBlock forward.  Only boundary glue remains in the wrapper:
# NCHW<->NHWC transposes and the 2x nearest upsample of the (small) pooled
# activations/indices (fused by XLA with the transpose into one pass).
# ---------------------------------------------------------------------------
def decoder_block_forward(x_nchw, xt_nchw, idx_nchw, params):
    x = jnp.transpose(x_nchw, (0, 2, 3, 1))           # NCHW -> NHWC
    xt = jnp.transpose(xt_nchw, (0, 2, 3, 1))
    idx = jnp.transpose(idx_nchw, (0, 2, 3, 1)).astype(jnp.int32)
    xu = jnp.repeat(jnp.repeat(x, 2, axis=1), 2, axis=2)     # nearest 2x up
    iu = jnp.repeat(jnp.repeat(idx, 2, axis=1), 2, axis=2)
    y = fused_decoder(xu, iu, xt, params)              # (N, 2H, 2W, Cout)
    return jnp.transpose(y, (0, 3, 1, 2))              # back to NCHW


# ---------------------------------------------------------------------------
# Deterministic parameter init (shapes follow the PyTorch module __init__)
# ---------------------------------------------------------------------------
def init_raw_params(key, in_channels, out_channels):
    ks = jax.random.split(key, 12)
    C2 = 2 * in_channels
    return dict(
        w1=0.2 * jax.random.normal(ks[0], (C2, out_channels), jnp.float32),
        b1=0.1 * jax.random.normal(ks[1], (out_channels,), jnp.float32),
        g1=1.0 + 0.1 * jax.random.normal(ks[2], (out_channels,), jnp.float32),
        be1=0.1 * jax.random.normal(ks[3], (out_channels,), jnp.float32),
        m1=0.1 * jax.random.normal(ks[4], (out_channels,), jnp.float32),
        v1=0.5 + jax.random.uniform(ks[5], (out_channels,), jnp.float32),
        w2=0.2 * jax.random.normal(ks[6], (3, 3, out_channels, out_channels),
                                   jnp.float32),
        b2=0.1 * jax.random.normal(ks[7], (out_channels,), jnp.float32),
        g2=1.0 + 0.1 * jax.random.normal(ks[8], (out_channels,), jnp.float32),
        be2=0.1 * jax.random.normal(ks[9], (out_channels,), jnp.float32),
        m2=0.1 * jax.random.normal(ks[10], (out_channels,), jnp.float32),
        v2=0.5 + jax.random.uniform(ks[11], (out_channels,), jnp.float32),
    )


def fold_params(raw):
    sc1 = raw["g1"] / jnp.sqrt(raw["v1"] + EPS)
    sh1 = raw["be1"] + sc1 * (raw["b1"] - raw["m1"])
    sc2 = raw["g2"] / jnp.sqrt(raw["v2"] + EPS)
    sh2 = raw["be2"] + sc2 * (raw["b2"] - raw["m2"])
    C = raw["w1"].shape[0] // 2
    cout = raw["w2"].shape[-1]
    return dict(
        w1u=raw["w1"][:C].astype(jnp.bfloat16),      # 1x1 weights, unpool part
        w1t=raw["w1"][C:].astype(jnp.bfloat16),      # 1x1 weights, trace part
        sc1=sc1.reshape(1, -1), sh1=sh1.reshape(1, -1),
        w2=raw["w2"].reshape(9, raw["w2"].shape[2], cout).astype(jnp.bfloat16),
        sc2=sc2.reshape(1, -1), sh2=sh2.reshape(1, -1),
    )


# ---------------------------------------------------------------------------
# Pure-JAX reference (true scatter unpool + XLA convs, full f32) for checking
# ---------------------------------------------------------------------------
def reference_forward(x_nchw, xt_nchw, idx_nchw, raw):
    x = jnp.transpose(x_nchw, (0, 2, 3, 1))
    xt = jnp.transpose(xt_nchw, (0, 2, 3, 1))
    idx = jnp.transpose(idx_nchw, (0, 2, 3, 1))
    N, H, W, C = x.shape
    H2, W2 = 2 * H, 2 * W
    up = jnp.zeros((N, H2 * W2, C), jnp.float32)
    n_i = jnp.arange(N)[:, None, None]
    c_i = jnp.arange(C)[None, None, :]
    up = up.at[n_i, idx.reshape(N, H * W, C), c_i].set(x.reshape(N, H * W, C))
    up = up.reshape(N, H2, W2, C)
    cat = jnp.concatenate([up, xt], axis=-1)
    y = jnp.einsum("nhwc,cd->nhwd", cat, raw["w1"],
                   precision=lax.Precision.HIGHEST) + raw["b1"]
    y = (y - raw["m1"]) / jnp.sqrt(raw["v1"] + EPS) * raw["g1"] + raw["be1"]
    y = jnp.maximum(y, 0.0)
    y = lax.conv_general_dilated(
        y, raw["w2"], (1, 1), "SAME",
        dimension_numbers=("NHWC", "HWIO", "NHWC"),
        precision=lax.Precision.HIGHEST) + raw["b2"]
    y = (y - raw["m2"]) / jnp.sqrt(raw["v2"] + EPS) * raw["g2"] + raw["be2"]
    y = jnp.maximum(y, 0.0)
    return jnp.transpose(y, (0, 3, 1, 2))


if __name__ == "__main__":
    key = jax.random.PRNGKey(0)
    N, Cin, H, W = 2, 4, 8, 8          # pooled spatial 8x8 -> unpooled 16x16
    Cout = 8
    k1, k2, k3, k4, kp = jax.random.split(key, 5)

    x = jax.random.normal(k1, (N, Cin, H, W), jnp.float32)
    x_trace = jax.random.normal(k2, (N, Cin, 2 * H, 2 * W), jnp.float32)
    # pooling indices exactly as MaxPool2d(2, return_indices=True) would give:
    # flat index into the 2H x 2W map, always inside each 2x2 window.
    dh = jax.random.randint(k3, (N, Cin, H, W), 0, 2)
    dw = jax.random.randint(k4, (N, Cin, H, W), 0, 2)
    hh = jnp.arange(H)[None, None, :, None]
    ww = jnp.arange(W)[None, None, None, :]
    indices = ((2 * hh + dh) * (2 * W) + (2 * ww + dw)).astype(jnp.int32)

    raw = init_raw_params(kp, Cin, Cout)
    folded = fold_params(raw)

    out = jax.jit(decoder_block_forward)(x, x_trace, indices, folded)
    out = jax.block_until_ready(out)

    ref = reference_forward(x, x_trace, indices, raw)
    assert out.shape == (N, Cout, 2 * H, 2 * W), out.shape
    # bf16 MXU operands (per perf review) -> looser tolerance than f32 HIGHEST
    assert jnp.allclose(out, ref, atol=5e-2, rtol=5e-2), \
        float(jnp.max(jnp.abs(out - ref)))
    print("KERNEL_OK")
</pallas_src>

<mosaic_0001>
module attributes {stable_mosaic.version = 11 : i64} {
  func.func @_decoder_block_kernel(%arg0: i32, %arg1: memref<1x16x16x4xf32, #tpu.memory_space<vmem>>, %arg2: memref<1x16x16x4xi32, #tpu.memory_space<vmem>>, %arg3: memref<1x16x16x4xf32, #tpu.memory_space<vmem>>, %arg4: memref<4x8xbf16, #tpu.memory_space<vmem>>, %arg5: memref<4x8xbf16, #tpu.memory_space<vmem>>, %arg6: memref<1x8xf32, #tpu.memory_space<vmem>>, %arg7: memref<1x8xf32, #tpu.memory_space<vmem>>, %arg8: memref<9x8x8xbf16, #tpu.memory_space<vmem>>, %arg9: memref<1x8xf32, #tpu.memory_space<vmem>>, %arg10: memref<1x8xf32, #tpu.memory_space<vmem>>, %arg11: memref<1x16x16x8xf32, #tpu.memory_space<vmem>>, %arg12: memref<3x18x16x8xf32, #tpu.memory_space<vmem>>, %arg13: memref<256x8xf32, #tpu.memory_space<vmem>>) attributes {dimension_semantics = [#tpu.dimension_semantics<parallel>], iteration_bounds = array<i64: 2>, scalar_prefetch = 0 : i64, scratch_operands = 2 : i64, tpu.core_type = #tpu.core_type<tc>, window_params = [{transform_indices = @transform_0, window_bounds = array<i64: 1, 16, 16, 4>}, {transform_indices = @transform_1, window_bounds = array<i64: 1, 16, 16, 4>}, {transform_indices = @transform_2, window_bounds = array<i64: 1, 16, 16, 4>}, {pipeline_mode = #tpu.pipeline_mode<synchronous>, transform_indices = @transform_3, window_bounds = array<i64: 4, 8>}, {pipeline_mode = #tpu.pipeline_mode<synchronous>, transform_indices = @transform_4, window_bounds = array<i64: 4, 8>}, {pipeline_mode = #tpu.pipeline_mode<synchronous>, transform_indices = @transform_5, window_bounds = array<i64: 1, 8>}, {pipeline_mode = #tpu.pipeline_mode<synchronous>, transform_indices = @transform_6, window_bounds = array<i64: 1, 8>}, {pipeline_mode = #tpu.pipeline_mode<synchronous>, transform_indices = @transform_7, window_bounds = array<i64: 9, 8, 8>}, {pipeline_mode = #tpu.pipeline_mode<synchronous>, transform_indices = @transform_8, window_bounds = array<i64: 1, 8>}, {pipeline_mode = #tpu.pipeline_mode<synchronous>, transform_indices = @transform_9, window_bounds = array<i64: 1, 8>}, {transform_indices = @transform_10, window_bounds = array<i64: 1, 16, 16, 8>}]} {
    %0 = tpu.iota {dimensions = array<i32: 0>} : vector<16x16x4xi32>
    %1 = tpu.iota {dimensions = array<i32: 1>} : vector<16x16x4xi32>
    %c0 = arith.constant 0 : index
    %c0_0 = arith.constant 0 : index
    %c0_1 = arith.constant 0 : index
    %c0_2 = arith.constant 0 : index
    %2 = vector.load %arg2[%c0, %c0_0, %c0_1, %c0_2] : memref<1x16x16x4xi32, #tpu.memory_space<vmem>>, vector<1x16x16x4xi32>
    %3 = vector.shape_cast %2 : vector<1x16x16x4xi32> to vector<16x16x4xi32>
    %c16_i32 = arith.constant 16 : i32
    %4 = vector.broadcast %c16_i32 : i32 to vector<16x16x4xi32>
    %5 = arith.muli %0, %4 : vector<16x16x4xi32>
    %6 = arith.addi %5, %1 : vector<16x16x4xi32>
    %7 = arith.cmpi eq, %3, %6 : vector<16x16x4xi32>
    %c0_3 = arith.constant 0 : index
    %c0_4 = arith.constant 0 : index
    %c0_5 = arith.constant 0 : index
    %c0_6 = arith.constant 0 : index
    %8 = vector.load %arg1[%c0_3, %c0_4, %c0_5, %c0_6] : memref<1x16x16x4xf32, #tpu.memory_space<vmem>>, vector<1x16x16x4xf32>
    %9 = vector.shape_cast %8 : vector<1x16x16x4xf32> to vector<16x16x4xf32>
    %cst = arith.constant 0.000000e+00 : f32
    %10 = vector.broadcast %cst : f32 to vector<16x16x4xf32>
    %11 = arith.select %7, %9, %10 : vector<16x16x4xi1>, vector<16x16x4xf32>
    %12 = vector.shape_cast %11 : vector<16x16x4xf32> to vector<256x4xf32>
    %13 = arith.truncf %12 : vector<256x4xf32> to vector<256x4xbf16>
    %c0_7 = arith.constant 0 : index
    %c0_8 = arith.constant 0 : index
    %c0_9 = arith.constant 0 : index
    %c0_10 = arith.constant 0 : index
    %14 = vector.load %arg3[%c0_7, %c0_8, %c0_9, %c0_10] : memref<1x16x16x4xf32, #tpu.memory_space<vmem>>, vector<1x16x16x4xf32>
    %15 = vector.shape_cast %14 : vector<1x16x16x4xf32> to vector<16x16x4xf32>
    %16 = vector.shape_cast %15 : vector<16x16x4xf32> to vector<256x4xf32>
    %17 = arith.truncf %16 : vector<256x4xf32> to vector<256x4xbf16>
    %c0_11 = arith.constant 0 : index
    %c0_12 = arith.constant 0 : index
    %18 = vector.load %arg4[%c0_11, %c0_12] : memref<4x8xbf16, #tpu.memory_space<vmem>>, vector<4x8xbf16>
    %cst_13 = arith.constant dense<0.000000e+00> : vector<256x8xf32>
    %19 = tpu.matmul %13, %18, %cst_13 {dimension_numbers = #tpu.dot_dimension_numbers<[1], [0], [0], [1], [0, 0, 1, 1], [], []>} : vector<256x4xbf16>, vector<4x8xbf16>, vector<256x8xf32> -> vector<256x8xf32>
    %c0_14 = arith.constant 0 : index
    %c0_15 = arith.constant 0 : index
    %20 = vector.load %arg5[%c0_14, %c0_15] : memref<4x8xbf16, #tpu.memory_space<vmem>>, vector<4x8xbf16>
    %cst_16 = arith.constant dense<0.000000e+00> : vector<256x8xf32>
    %21 = tpu.matmul %17, %20, %cst_16 {dimension_numbers = #tpu.dot_dimension_numbers<[1], [0], [0], [1], [0, 0, 1, 1], [], []>} : vector<256x4xbf16>, vector<4x8xbf16>, vector<256x8xf32> -> vector<256x8xf32>
    %22 = arith.addf %19, %21 : vector<256x8xf32>
    %c0_17 = arith.constant 0 : index
    %c0_18 = arith.constant 0 : index
    %23 = vector.load %arg6[%c0_17, %c0_18] : memref<1x8xf32, #tpu.memory_space<vmem>>, vector<1x8xf32>
    %24 = vector.broadcast %23 : vector<1x8xf32> to vector<256x8xf32>
    %25 = arith.mulf %22, %24 : vector<256x8xf32>
    %c0_19 = arith.constant 0 : index
    %c0_20 = arith.constant 0 : index
    %26 = vector.load %arg7[%c0_19, %c0_20] : memref<1x8xf32, #tpu.memory_space<vmem>>, vector<1x8xf32>
    %27 = vector.broadcast %26 : vector<1x8xf32> to vector<256x8xf32>
    %28 = arith.addf %25, %27 : vector<256x8xf32>
    %cst_21 = arith.constant 0.000000e+00 : f32
    %29 = vector.broadcast %cst_21 : f32 to vector<256x8xf32>
    %30 = arith.maximumf %28, %29 : vector<256x8xf32>
    %31 = vector.shape_cast %30 : vector<256x8xf32> to vector<16x16x8xf32>
    %c1 = arith.constant 1 : index
    %c1_22 = arith.constant 1 : index
    %c0_23 = arith.constant 0 : index
    %c0_24 = arith.constant 0 : index
    %32 = vector.load %arg12[%c1, %c1_22, %c0_23, %c0_24] : memref<3x18x16x8xf32, #tpu.memory_space<vmem>>, vector<1x16x16x8xf32>
    %33 = vector.shape_cast %32 : vector<1x16x16x8xf32> to vector<16x16x8xf32>
    %34 = vector.shape_cast %31 : vector<16x16x8xf32> to vector<1x16x16x8xf32>
    tpu.vector_store %arg12[%c1, %c1_22, %c0_23, %c0_24], %34 {strides = array<i32>} : memref<3x18x16x8xf32, #tpu.memory_space<vmem>>, vector<1x16x16x8xf32>,
    %cst_25 = arith.constant 0.000000e+00 : f32
    %35 = vector.broadcast %cst_25 : f32 to vector<1x16x8xf32>
    %c1_26 = arith.constant 1 : index
    %c0_27 = arith.constant 0 : index
    %c0_28 = arith.constant 0 : index
    %c0_29 = arith.constant 0 : index
    %36 = vector.load %arg12[%c1_26, %c0_27, %c0_28, %c0_29] : memref<3x18x16x8xf32, #tpu.memory_space<vmem>>, vector<1x1x16x8xf32>
    %37 = vector.shape_cast %36 : vector<1x1x16x8xf32> to vector<1x16x8xf32>
    %38 = vector.shape_cast %35 : vector<1x16x8xf32> to vector<1x1x16x8xf32>
    tpu.vector_store %arg12[%c1_26, %c0_27, %c0_28, %c0_29], %38 {strides = array<i32>} : memref<3x18x16x8xf32, #tpu.memory_space<vmem>>, vector<1x1x16x8xf32>,
    %c1_30 = arith.constant 1 : index
    %c17 = arith.constant 17 : index
    %c0_31 = arith.constant 0 : index
    %c0_32 = arith.constant 0 : index
    %39 = vector.load %arg12[%c1_30, %c17, %c0_31, %c0_32] : memref<3x18x16x8xf32, #tpu.memory_space<vmem>>, vector<1x1x16x8xf32>
    %40 = vector.shape_cast %39 : vector<1x1x16x8xf32> to vector<1x16x8xf32>
    %41 = vector.shape_cast %35 : vector<1x16x8xf32> to vector<1x1x16x8xf32>
    tpu.vector_store %arg12[%c1_30, %c17, %c0_31, %c0_32], %41 {strides = array<i32>} : memref<3x18x16x8xf32, #tpu.memory_space<vmem>>, vector<1x1x16x8xf32>,
    %c1_33 = arith.constant 1 : index
    %c0_34 = arith.constant 0 : index
    %c0_35 = arith.constant 0 : index
    %c0_36 = arith.constant 0 : index
    %42 = vector.load %arg12[%c1_33, %c0_34, %c0_35, %c0_36] : memref<3x18x16x8xf32, #tpu.memory_space<vmem>>, vector<1x18x16x8xf32>
    %43 = vector.shape_cast %42 : vector<1x18x16x8xf32> to vector<18x16x8xf32>
    %44 = tpu.iota {dimensions = array<i32: 1>} : vector<18x16x8xi32>
    %c0_i32 = arith.constant 0 : i32
    %45 = vector.broadcast %c0_i32 : i32 to vector<18x16x8xi32>
    %46 = arith.cmpi eq, %44, %45 : vector<18x16x8xi32>
    %c1_i32 = arith.constant 1 : i32
    %47 = tpu.dynamic_rotate %43 by %c1_i32 dim 1 : vector<18x16x8xf32>, i32 -> vector<18x16x8xf32>
    %cst_37 = arith.constant 0.000000e+00 : f32
    %48 = vector.broadcast %cst_37 : f32 to vector<18x16x8xf32>
    %49 = arith.select %46, %48, %47 : vector<18x16x8xi1>, vector<18x16x8xf32>
    %c0_38 = arith.constant 0 : index
    %c0_39 = arith.constant 0 : index
    %c0_40 = arith.constant 0 : index
    %c0_41 = arith.constant 0 : index
    %50 = vector.load %arg12[%c0_38, %c0_39, %c0_40, %c0_41] : memref<3x18x16x8xf32, #tpu.memory_space<vmem>>, vector<1x18x16x8xf32>
    %51 = vector.shape_cast %50 : vector<1x18x16x8xf32> to vector<18x16x8xf32>
    %52 = vector.shape_cast %49 : vector<18x16x8xf32> to vector<1x18x16x8xf32>
    tpu.vector_store %arg12[%c0_38, %c0_39, %c0_40, %c0_41], %52 {strides = array<i32>} : memref<3x18x16x8xf32, #tpu.memory_space<vmem>>, vector<1x18x16x8xf32>,
    %c15_i32 = arith.constant 15 : i32
    %53 = vector.broadcast %c15_i32 : i32 to vector<18x16x8xi32>
    %54 = arith.cmpi eq, %44, %53 : vector<18x16x8xi32>
    %c15_i32_42 = arith.constant 15 : i32
    %55 = tpu.dynamic_rotate %43 by %c15_i32_42 dim 1 : vector<18x16x8xf32>, i32 -> vector<18x16x8xf32>
    %cst_43 = arith.constant 0.000000e+00 : f32
    %56 = vector.broadcast %cst_43 : f32 to vector<18x16x8xf32>
    %57 = arith.select %54, %56, %55 : vector<18x16x8xi1>, vector<18x16x8xf32>
    %c2 = arith.constant 2 : index
    %c0_44 = arith.constant 0 : index
    %c0_45 = arith.constant 0 : index
    %c0_46 = arith.constant 0 : index
    %58 = vector.load %arg12[%c2, %c0_44, %c0_45, %c0_46] : memref<3x18x16x8xf32, #tpu.memory_space<vmem>>, vector<1x18x16x8xf32>
    %59 = vector.shape_cast %58 : vector<1x18x16x8xf32> to vector<18x16x8xf32>
    %60 = vector.shape_cast %57 : vector<18x16x8xf32> to vector<1x18x16x8xf32>
    tpu.vector_store %arg12[%c2, %c0_44, %c0_45, %c0_46], %60 {strides = array<i32>} : memref<3x18x16x8xf32, #tpu.memory_space<vmem>>, vector<1x18x16x8xf32>,
    %cst_47 = arith.constant 0.000000e+00 : f32
    %61 = vector.broadcast %cst_47 : f32 to vector<256x8xf32>
    %c0_48 = arith.constant 0 : index
    %c0_49 = arith.constant 0 : index
    %62 = vector.load %arg13[%c0_48, %c0_49] : memref<256x8xf32, #tpu.memory_space<vmem>>, vector<256x8xf32>
    tpu.vector_store %arg13[%c0_48, %c0_49], %61 {strides = array<i32>} : memref<256x8xf32, #tpu.memory_space<vmem>>, vector<256x8xf32>,
    %c0_50 = arith.constant 0 : index
    %c0_51 = arith.constant 0 : index
    %c0_52 = arith.constant 0 : index
    %c0_53 = arith.constant 0 : index
    %63 = vector.load %arg12[%c0_50, %c0_51, %c0_52, %c0_53] : memref<3x18x16x8xf32, #tpu.memory_space<vmem>>, vector<1x16x16x8xf32>
    %64 = vector.shape_cast %63 : vector<1x16x16x8xf32> to vector<16x16x8xf32>
    %65 = vector.shape_cast %64 : vector<16x16x8xf32> to vector<256x8xf32>
    %c0_54 = arith.constant 0 : index
    %c0_55 = arith.constant 0 : index
    %66 = vector.load %arg13[%c0_54, %c0_55] : memref<256x8xf32, #tpu.memory_space<vmem>>, vector<256x8xf32>
    %67 = arith.truncf %65 : vector<256x8xf32> to vector<256x8xbf16>
    %c0_56 = arith.constant 0 : index
    %c0_57 = arith.constant 0 : index
    %c0_58 = arith.constant 0 : index
    %68 = vector.load %arg8[%c0_56, %c0_57, %c0_58] : memref<9x8x8xbf16, #tpu.memory_space<vmem>>, vector<1x8x8xbf16>
    %69 = vector.shape_cast %68 : vector<1x8x8xbf16> to vector<8x8xbf16>
    %cst_59 = arith.constant dense<0.000000e+00> : vector<256x8xf32>
    %70 = tpu.matmul %67, %69, %cst_59 {dimension_numbers = #tpu.dot_dimension_numbers<[1], [0], [0], [1], [0, 0, 1, 1], [], []>} : vector<256x8xbf16>, vector<8x8xbf16>, vector<256x8xf32> -> vector<256x8xf32>
    %71 = arith.addf %66, %70 : vector<256x8xf32>
    %c0_60 = arith.constant 0 : index
    %c0_61 = arith.constant 0 : index
    %72 = vector.load %arg13[%c0_60, %c0_61] : memref<256x8xf32, #tpu.memory_space<vmem>>, vector<256x8xf32>
    tpu.vector_store %arg13[%c0_60, %c0_61], %71 {strides = array<i32>} : memref<256x8xf32, #tpu.memory_space<vmem>>, vector<256x8xf32>,
    %c1_62 = arith.constant 1 : index
    %c0_63 = arith.constant 0 : index
    %c0_64 = arith.constant 0 : index
    %c0_65 = arith.constant 0 : index
    %73 = vector.load %arg12[%c1_62, %c0_63, %c0_64, %c0_65] : memref<3x18x16x8xf32, #tpu.memory_space<vmem>>, vector<1x16x16x8xf32>
    %74 = vector.shape_cast %73 : vector<1x16x16x8xf32> to vector<16x16x8xf32>
    %75 = vector.shape_cast %74 : vector<16x16x8xf32> to vector<256x8xf32>
    %c0_66 = arith.constant 0 : index
    %c0_67 = arith.constant 0 : index
    %76 = vector.load %arg13[%c0_66, %c0_67] : memref<256x8xf32, #tpu.memory_space<vmem>>, vector<256x8xf32>
    %77 = arith.truncf %75 : vector<256x8xf32> to vector<256x8xbf16>
    %c1_68 = arith.constant 1 : index
    %c0_69 = arith.constant 0 : index
    %c0_70 = arith.constant 0 : index
    %78 = vector.load %arg8[%c1_68, %c0_69, %c0_70] : memref<9x8x8xbf16, #tpu.memory_space<vmem>>, vector<1x8x8xbf16>
    %79 = vector.shape_cast %78 : vector<1x8x8xbf16> to vector<8x8xbf16>
    %cst_71 = arith.constant dense<0.000000e+00> : vector<256x8xf32>
    %80 = tpu.matmul %77, %79, %cst_71 {dimension_numbers = #tpu.dot_dimension_numbers<[1], [0], [0], [1], [0, 0, 1, 1], [], []>} : vector<256x8xbf16>, vector<8x8xbf16>, vector<256x8xf32> -> vector<256x8xf32>
    %81 = arith.addf %76, %80 : vector<256x8xf32>
    %c0_72 = arith.constant 0 : index
    %c0_73 = arith.constant 0 : index
    %82 = vector.load %arg13[%c0_72, %c0_73] : memref<256x8xf32, #tpu.memory_space<vmem>>, vector<256x8xf32>
    tpu.vector_store %arg13[%c0_72, %c0_73], %81 {strides = array<i32>} : memref<256x8xf32, #tpu.memory_space<vmem>>, vector<256x8xf32>,
    %c2_74 = arith.constant 2 : index
    %c0_75 = arith.constant 0 : index
    %c0_76 = arith.constant 0 : index
    %c0_77 = arith.constant 0 : index
    %83 = vector.load %arg12[%c2_74, %c0_75, %c0_76, %c0_77] : memref<3x18x16x8xf32, #tpu.memory_space<vmem>>, vector<1x16x16x8xf32>
    %84 = vector.shape_cast %83 : vector<1x16x16x8xf32> to vector<16x16x8xf32>
    %85 = vector.shape_cast %84 : vector<16x16x8xf32> to vector<256x8xf32>
    %c0_78 = arith.constant 0 : index
    %c0_79 = arith.constant 0 : index
    %86 = vector.load %arg13[%c0_78, %c0_79] : memref<256x8xf32, #tpu.memory_space<vmem>>, vector<256x8xf32>
    %87 = arith.truncf %85 : vector<256x8xf32> to vector<256x8xbf16>
    %c2_80 = arith.constant 2 : index
    %c0_81 = arith.constant 0 : index
    %c0_82 = arith.constant 0 : index
    %88 = vector.load %arg8[%c2_80, %c0_81, %c0_82] : memref<9x8x8xbf16, #tpu.memory_space<vmem>>, vector<1x8x8xbf16>
    %89 = vector.shape_cast %88 : vector<1x8x8xbf16> to vector<8x8xbf16>
    %cst_83 = arith.constant dense<0.000000e+00> : vector<256x8xf32>
    %90 = tpu.matmul %87, %89, %cst_83 {dimension_numbers = #tpu.dot_dimension_numbers<[1], [0], [0], [1], [0, 0, 1, 1], [], []>} : vector<256x8xbf16>, vector<8x8xbf16>, vector<256x8xf32> -> vector<256x8xf32>
    %91 = arith.addf %86, %90 : vector<256x8xf32>
    %c0_84 = arith.constant 0 : index
    %c0_85 = arith.constant 0 : index
    %92 = vector.load %arg13[%c0_84, %c0_85] : memref<256x8xf32, #tpu.memory_space<vmem>>, vector<256x8xf32>
    tpu.vector_store %arg13[%c0_84, %c0_85], %91 {strides = array<i32>} : memref<256x8xf32, #tpu.memory_space<vmem>>, vector<256x8xf32>,
    %c0_86 = arith.constant 0 : index
    %c1_87 = arith.constant 1 : index
    %c0_88 = arith.constant 0 : index
    %c0_89 = arith.constant 0 : index
    %93 = vector.load %arg12[%c0_86, %c1_87, %c0_88, %c0_89] : memref<3x18x16x8xf32, #tpu.memory_space<vmem>>, vector<1x16x16x8xf32>
    %94 = vector.shape_cast %93 : vector<1x16x16x8xf32> to vector<16x16x8xf32>
    %95 = vector.shape_cast %94 : vector<16x16x8xf32> to vector<256x8xf32>
    %c0_90 = arith.constant 0 : index
    %c0_91 = arith.constant 0 : index
    %96 = vector.load %arg13[%c0_90, %c0_91] : memref<256x8xf32, #tpu.memory_space<vmem>>, vector<256x8xf32>
    %97 = arith.truncf %95 : vector<256x8xf32> to vector<256x8xbf16>
    %c3 = arith.constant 3 : index
    %c0_92 = arith.constant 0 : index
    %c0_93 = arith.constant 0 : index
    %98 = vector.load %arg8[%c3, %c0_92, %c0_93] : memref<9x8x8xbf16, #tpu.memory_space<vmem>>, vector<1x8x8xbf16>
    %99 = vector.shape_cast %98 : vector<1x8x8xbf16> to vector<8x8xbf16>
    %cst_94 = arith.constant dense<0.000000e+00> : vector<256x8xf32>
    %100 = tpu.matmul %97, %99, %cst_94 {dimension_numbers = #tpu.dot_dimension_numbers<[1], [0], [0], [1], [0, 0, 1, 1], [], []>} : vector<256x8xbf16>, vector<8x8xbf16>, vector<256x8xf32> -> vector<256x8xf32>
    %101 = arith.addf %96, %100 : vector<256x8xf32>
    %c0_95 = arith.constant 0 : index
    %c0_96 = arith.constant 0 : index
    %102 = vector.load %arg13[%c0_95, %c0_96] : memref<256x8xf32, #tpu.memory_space<vmem>>, vector<256x8xf32>
    tpu.vector_store %arg13[%c0_95, %c0_96], %101 {strides = array<i32>} : memref<256x8xf32, #tpu.memory_space<vmem>>, vector<256x8xf32>,
    %c1_97 = arith.constant 1 : index
    %c1_98 = arith.constant 1 : index
    %c0_99 = arith.constant 0 : index
    %c0_100 = arith.constant 0 : index
    %103 = vector.load %arg12[%c1_97, %c1_98, %c0_99, %c0_100] : memref<3x18x16x8xf32, #tpu.memory_space<vmem>>, vector<1x16x16x8xf32>
    %104 = vector.shape_cast %103 : vector<1x16x16x8xf32> to vector<16x16x8xf32>
    %105 = vector.shape_cast %104 : vector<16x16x8xf32> to vector<256x8xf32>
    %c0_101 = arith.constant 0 : index
    %c0_102 = arith.constant 0 : index
    %106 = vector.load %arg13[%c0_101, %c0_102] : memref<256x8xf32, #tpu.memory_space<vmem>>, vector<256x8xf32>
    %107 = arith.truncf %105 : vector<256x8xf32> to vector<256x8xbf16>
    %c4 = arith.constant 4 : index
    %c0_103 = arith.constant 0 : index
    %c0_104 = arith.constant 0 : index
    %108 = vector.load %arg8[%c4, %c0_103, %c0_104] : memref<9x8x8xbf16, #tpu.memory_space<vmem>>, vector<1x8x8xbf16>
    %109 = vector.shape_cast %108 : vector<1x8x8xbf16> to vector<8x8xbf16>
    %cst_105 = arith.constant dense<0.000000e+00> : vector<256x8xf32>
    %110 = tpu.matmul %107, %109, %cst_105 {dimension_numbers = #tpu.dot_dimension_numbers<[1], [0], [0], [1], [0, 0, 1, 1], [], []>} : vector<256x8xbf16>, vector<8x8xbf16>, vector<256x8xf32> -> vector<256x8xf32>
    %111 = arith.addf %106, %110 : vector<256x8xf32>
    %c0_106 = arith.constant 0 : index
    %c0_107 = arith.constant 0 : index
    %112 = vector.load %arg13[%c0_106, %c0_107] : memref<256x8xf32, #tpu.memory_space<vmem>>, vector<256x8xf32>
    tpu.vector_store %arg13[%c0_106, %c0_107], %111 {strides = array<i32>} : memref<256x8xf32, #tpu.memory_space<vmem>>, vector<256x8xf32>,
    %c2_108 = arith.constant 2 : index
    %c1_109 = arith.constant 1 : index
    %c0_110 = arith.constant 0 : index
    %c0_111 = arith.constant 0 : index
    %113 = vector.load %arg12[%c2_108, %c1_109, %c0_110, %c0_111] : memref<3x18x16x8xf32, #tpu.memory_space<vmem>>, vector<1x16x16x8xf32>
    %114 = vector.shape_cast %113 : vector<1x16x16x8xf32> to vector<16x16x8xf32>
    %115 = vector.shape_cast %114 : vector<16x16x8xf32> to vector<256x8xf32>
    %c0_112 = arith.constant 0 : index
    %c0_113 = arith.constant 0 : index
    %116 = vector.load %arg13[%c0_112, %c0_113] : memref<256x8xf32, #tpu.memory_space<vmem>>, vector<256x8xf32>
    %117 = arith.truncf %115 : vector<256x8xf32> to vector<256x8xbf16>
    %c5 = arith.constant 5 : index
    %c0_114 = arith.constant 0 : index
    %c0_115 = arith.constant 0 : index
    %118 = vector.load %arg8[%c5, %c0_114, %c0_115] : memref<9x8x8xbf16, #tpu.memory_space<vmem>>, vector<1x8x8xbf16>
    %119 = vector.shape_cast %118 : vector<1x8x8xbf16> to vector<8x8xbf16>
    %cst_116 = arith.constant dense<0.000000e+00> : vector<256x8xf32>
    %120 = tpu.matmul %117, %119, %cst_116 {dimension_numbers = #tpu.dot_dimension_numbers<[1], [0], [0], [1], [0, 0, 1, 1], [], []>} : vector<256x8xbf16>, vector<8x8xbf16>, vector<256x8xf32> -> vector<256x8xf32>
    %121 = arith.addf %116, %120 : vector<256x8xf32>
    %c0_117 = arith.constant 0 : index
    %c0_118 = arith.constant 0 : index
    %122 = vector.load %arg13[%c0_117, %c0_118] : memref<256x8xf32, #tpu.memory_space<vmem>>, vector<256x8xf32>
    tpu.vector_store %arg13[%c0_117, %c0_118], %121 {strides = array<i32>} : memref<256x8xf32, #tpu.memory_space<vmem>>, vector<256x8xf32>,
    %c0_119 = arith.constant 0 : index
    %c2_120 = arith.constant 2 : index
    %c0_121 = arith.constant 0 : index
    %c0_122 = arith.constant 0 : index
    %123 = vector.load %arg12[%c0_119, %c2_120, %c0_121, %c0_122] : memref<3x18x16x8xf32, #tpu.memory_space<vmem>>, vector<1x16x16x8xf32>
    %124 = vector.shape_cast %123 : vector<1x16x16x8xf32> to vector<16x16x8xf32>
    %125 = vector.shape_cast %124 : vector<16x16x8xf32> to vector<256x8xf32>
    %c0_123 = arith.constant 0 : index
    %c0_124 = arith.constant 0 : index
    %126 = vector.load %arg13[%c0_123, %c0_124] : memref<256x8xf32, #tpu.memory_space<vmem>>, vector<256x8xf32>
    %127 = arith.truncf %125 : vector<256x8xf32> to vector<256x8xbf16>
    %c6 = arith.constant 6 : index
    %c0_125 = arith.constant 0 : index
    %c0_126 = arith.constant 0 : index
    %128 = vector.load %arg8[%c6, %c0_125, %c0_126] : memref<9x8x8xbf16, #tpu.memory_space<vmem>>, vector<1x8x8xbf16>
    %129 = vector.shape_cast %128 : vector<1x8x8xbf16> to vector<8x8xbf16>
    %cst_127 = arith.constant dense<0.000000e+00> : vector<256x8xf32>
    %130 = tpu.matmul %127, %129, %cst_127 {dimension_numbers = #tpu.dot_dimension_numbers<[1], [0], [0], [1], [0, 0, 1, 1], [], []>} : vector<256x8xbf16>, vector<8x8xbf16>, vector<256x8xf32> -> vector<256x8xf32>
    %131 = arith.addf %126, %130 : vector<256x8xf32>
    %c0_128 = arith.constant 0 : index
    %c0_129 = arith.constant 0 : index
    %132 = vector.load %arg13[%c0_128, %c0_129] : memref<256x8xf32, #tpu.memory_space<vmem>>, vector<256x8xf32>
    tpu.vector_store %arg13[%c0_128, %c0_129], %131 {strides = array<i32>} : memref<256x8xf32, #tpu.memory_space<vmem>>, vector<256x8xf32>,
    %c1_130 = arith.constant 1 : index
    %c2_131 = arith.constant 2 : index
    %c0_132 = arith.constant 0 : index
    %c0_133 = arith.constant 0 : index
    %133 = vector.load %arg12[%c1_130, %c2_131, %c0_132, %c0_133] : memref<3x18x16x8xf32, #tpu.memory_space<vmem>>, vector<1x16x16x8xf32>
    %134 = vector.shape_cast %133 : vector<1x16x16x8xf32> to vector<16x16x8xf32>
    %135 = vector.shape_cast %134 : vector<16x16x8xf32> to vector<256x8xf32>
    %c0_134 = arith.constant 0 : index
    %c0_135 = arith.constant 0 : index
    %136 = vector.load %arg13[%c0_134, %c0_135] : memref<256x8xf32, #tpu.memory_space<vmem>>, vector<256x8xf32>
    %137 = arith.truncf %135 : vector<256x8xf32> to vector<256x8xbf16>
    %c7 = arith.constant 7 : index
    %c0_136 = arith.constant 0 : index
    %c0_137 = arith.constant 0 : index
    %138 = vector.load %arg8[%c7, %c0_136, %c0_137] : memref<9x8x8xbf16, #tpu.memory_space<vmem>>, vector<1x8x8xbf16>
    %139 = vector.shape_cast %138 : vector<1x8x8xbf16> to vector<8x8xbf16>
    %cst_138 = arith.constant dense<0.000000e+00> : vector<256x8xf32>
    %140 = tpu.matmul %137, %139, %cst_138 {dimension_numbers = #tpu.dot_dimension_numbers<[1], [0], [0], [1], [0, 0, 1, 1], [], []>} : vector<256x8xbf16>, vector<8x8xbf16>, vector<256x8xf32> -> vector<256x8xf32>
    %141 = arith.addf %136, %140 : vector<256x8xf32>
    %c0_139 = arith.constant 0 : index
    %c0_140 = arith.constant 0 : index
    %142 = vector.load %arg13[%c0_139, %c0_140] : memref<256x8xf32, #tpu.memory_space<vmem>>, vector<256x8xf32>
    tpu.vector_store %arg13[%c0_139, %c0_140], %141 {strides = array<i32>} : memref<256x8xf32, #tpu.memory_space<vmem>>, vector<256x8xf32>,
    %c2_141 = arith.constant 2 : index
    %c2_142 = arith.constant 2 : index
    %c0_143 = arith.constant 0 : index
    %c0_144 = arith.constant 0 : index
    %143 = vector.load %arg12[%c2_141, %c2_142, %c0_143, %c0_144] : memref<3x18x16x8xf32, #tpu.memory_space<vmem>>, vector<1x16x16x8xf32>
    %144 = vector.shape_cast %143 : vector<1x16x16x8xf32> to vector<16x16x8xf32>
    %145 = vector.shape_cast %144 : vector<16x16x8xf32> to vector<256x8xf32>
    %c0_145 = arith.constant 0 : index
    %c0_146 = arith.constant 0 : index
    %146 = vector.load %arg13[%c0_145, %c0_146] : memref<256x8xf32, #tpu.memory_space<vmem>>, vector<256x8xf32>
    %147 = arith.truncf %145 : vector<256x8xf32> to vector<256x8xbf16>
    %c8 = arith.constant 8 : index
    %c0_147 = arith.constant 0 : index
    %c0_148 = arith.constant 0 : index
    %148 = vector.load %arg8[%c8, %c0_147, %c0_148] : memref<9x8x8xbf16, #tpu.memory_space<vmem>>, vector<1x8x8xbf16>
    %149 = vector.shape_cast %148 : vector<1x8x8xbf16> to vector<8x8xbf16>
    %cst_149 = arith.constant dense<0.000000e+00> : vector<256x8xf32>
    %150 = tpu.matmul %147, %149, %cst_149 {dimension_numbers = #tpu.dot_dimension_numbers<[1], [0], [0], [1], [0, 0, 1, 1], [], []>} : vector<256x8xbf16>, vector<8x8xbf16>, vector<256x8xf32> -> vector<256x8xf32>
    %151 = arith.addf %146, %150 : vector<256x8xf32>
    %c0_150 = arith.constant 0 : index
    %c0_151 = arith.constant 0 : index
    %152 = vector.load %arg13[%c0_150, %c0_151] : memref<256x8xf32, #tpu.memory_space<vmem>>, vector<256x8xf32>
    tpu.vector_store %arg13[%c0_150, %c0_151], %151 {strides = array<i32>} : memref<256x8xf32, #tpu.memory_space<vmem>>, vector<256x8xf32>,
    %c0_152 = arith.constant 0 : index
    %c0_153 = arith.constant 0 : index
    %153 = vector.load %arg13[%c0_152, %c0_153] : memref<256x8xf32, #tpu.memory_space<vmem>>, vector<256x8xf32>
    %c0_154 = arith.constant 0 : index
    %c0_155 = arith.constant 0 : index
    %154 = vector.load %arg9[%c0_154, %c0_155] : memref<1x8xf32, #tpu.memory_space<vmem>>, vector<1x8xf32>
    %155 = vector.broadcast %154 : vector<1x8xf32> to vector<256x8xf32>
    %156 = arith.mulf %153, %155 : vector<256x8xf32>
    %c0_156 = arith.constant 0 : index
    %c0_157 = arith.constant 0 : index
    %157 = vector.load %arg10[%c0_156, %c0_157] : memref<1x8xf32, #tpu.memory_space<vmem>>, vector<1x8xf32>
    %158 = vector.broadcast %157 : vector<1x8xf32> to vector<256x8xf32>
    %159 = arith.addf %156, %158 : vector<256x8xf32>
    %cst_158 = arith.constant 0.000000e+00 : f32
    %160 = vector.broadcast %cst_158 : f32 to vector<256x8xf32>
    %161 = arith.maximumf %159, %160 : vector<256x8xf32>
    %162 = vector.shape_cast %161 : vector<256x8xf32> to vector<16x16x8xf32>
    %c0_159 = arith.constant 0 : index
    %c0_160 = arith.constant 0 : index
    %c0_161 = arith.constant 0 : index
    %c0_162 = arith.constant 0 : index
    %163 = vector.load %arg11[%c0_159, %c0_160, %c0_161, %c0_162] : memref<1x16x16x8xf32, #tpu.memory_space<vmem>>, vector<1x16x16x8xf32>
    %164 = vector.shape_cast %163 : vector<1x16x16x8xf32> to vector<16x16x8xf32>
    %165 = vector.shape_cast %162 : vector<16x16x8xf32> to vector<1x16x16x8xf32>
    tpu.vector_store %arg11[%c0_159, %c0_160, %c0_161, %c0_162], %165 {strides = array<i32>} : memref<1x16x16x8xf32, #tpu.memory_space<vmem>>, vector<1x16x16x8xf32>,
    return
  }
  func.func @transform_0(%arg0: i32) -> (i32, i32, i32, i32) {
    %c0_i32 = arith.constant 0 : i32
    %c0_i32_0 = arith.constant 0 : i32
    %c0_i32_1 = arith.constant 0 : i32
    %c0_i32_2 = arith.constant 0 : i32
    return %arg0, %c0_i32, %c0_i32_0, %c0_i32_1 : i32, i32, i32, i32
  }
  func.func @transform_1(%arg0: i32) -> (i32, i32, i32, i32) {
    %c0_i32 = arith.constant 0 : i32
    %c0_i32_0 = arith.constant 0 : i32
    %c0_i32_1 = arith.constant 0 : i32
    %c0_i32_2 = arith.constant 0 : i32
    return %arg0, %c0_i32, %c0_i32_0, %c0_i32_1 : i32, i32, i32, i32
  }
  func.func @transform_2(%arg0: i32) -> (i32, i32, i32, i32) {
    %c0_i32 = arith.constant 0 : i32
    %c0_i32_0 = arith.constant 0 : i32
    %c0_i32_1 = arith.constant 0 : i32
    %c0_i32_2 = arith.constant 0 : i32
    return %arg0, %c0_i32, %c0_i32_0, %c0_i32_1 : i32, i32, i32, i32
  }
  func.func @transform_3(%arg0: i32) -> (i32, i32) {
    %c0_i32 = arith.constant 0 : i32
    %c0_i32_0 = arith.constant 0 : i32
    %c0_i32_1 = arith.constant 0 : i32
    return %c0_i32, %c0_i32_0 : i32, i32
  }
  func.func @transform_4(%arg0: i32) -> (i32, i32) {
    %c0_i32 = arith.constant 0 : i32
    %c0_i32_0 = arith.constant 0 : i32
    %c0_i32_1 = arith.constant 0 : i32
    return %c0_i32, %c0_i32_0 : i32, i32
  }
  func.func @transform_5(%arg0: i32) -> (i32, i32) {
    %c0_i32 = arith.constant 0 : i32
    %c0_i32_0 = arith.constant 0 : i32
    %c0_i32_1 = arith.constant 0 : i32
    return %c0_i32, %c0_i32_0 : i32, i32
  }
  func.func @transform_6(%arg0: i32) -> (i32, i32) {
    %c0_i32 = arith.constant 0 : i32
    %c0_i32_0 = arith.constant 0 : i32
    %c0_i32_1 = arith.constant 0 : i32
    return %c0_i32, %c0_i32_0 : i32, i32
  }
  func.func @transform_7(%arg0: i32) -> (i32, i32, i32) {
    %c0_i32 = arith.constant 0 : i32
    %c0_i32_0 = arith.constant 0 : i32
    %c0_i32_1 = arith.constant 0 : i32
    %c0_i32_2 = arith.constant 0 : i32
    return %c0_i32, %c0_i32_0, %c0_i32_1 : i32, i32, i32
  }
  func.func @transform_8(%arg0: i32) -> (i32, i32) {
    %c0_i32 = arith.constant 0 : i32
    %c0_i32_0 = arith.constant 0 : i32
    %c0_i32_1 = arith.constant 0 : i32
    return %c0_i32, %c0_i32_0 : i32, i32
  }
  func.func @transform_9(%arg0: i32) -> (i32, i32) {
    %c0_i32 = arith.constant 0 : i32
    %c0_i32_0 = arith.constant 0 : i32
    %c0_i32_1 = arith.constant 0 : i32
    return %c0_i32, %c0_i32_0 : i32, i32
  }
  func.func @transform_10(%arg0: i32) -> (i32, i32, i32, i32) {
    %c0_i32 = arith.constant 0 : i32
    %c0_i32_0 = arith.constant 0 : i32
    %c0_i32_1 = arith.constant 0 : i32
    %c0_i32_2 = arith.constant 0 : i32
    return %arg0, %c0_i32, %c0_i32_0, %c0_i32_1 : i32, i32, i32, i32
  }
}

</mosaic_0001>

<llo_original>
// kernel: decoder_block_forward.1
$region0: #{decoder_block_forward.1}
  #allocation0 [shape = 'u32[]', space=smem, size = 0x4, offset = 0x4, fixed_abs, tag = 'smem constant byte address 0x4 - core index']
  #allocation1 [shape = 'u32[144,128]{1,0:T(1,128)}', space=vmem, size = 0x12000, scoped, tag = 'internal scratch']
  #allocation2 [shape = 'f32[3,18,16,8]{3,2,1,0:T(8,128)}', space=vmem, size = 0x6c000, scoped, tag = 'scratch operand']
  #allocation3 [shape = 'f32[256,8]{1,0:T(8,128)}', space=vmem, size = 0x20000, scoped, tag = 'scratch operand']
  %s0 = inlined_call_operand.vmem [shape: f32[2,16,16,4], index: 0, kind: input, shape index: {}]
  %s1 = inlined_call_operand.vmem [shape: s32[2,16,16,4], index: 1, kind: input, shape index: {}]
  %s2 = inlined_call_operand.vmem [shape: f32[2,16,16,4], index: 2, kind: input, shape index: {}]
  %s3 = inlined_call_operand.vmem [shape: bf16[4,8], index: 3, kind: input, shape index: {}]
  %s4 = inlined_call_operand.vmem [shape: bf16[4,8], index: 4, kind: input, shape index: {}]
  %s5 = inlined_call_operand.vmem [shape: f32[1,8], index: 5, kind: input, shape index: {}]
  %s6 = inlined_call_operand.vmem [shape: f32[1,8], index: 6, kind: input, shape index: {}]
  %s7 = inlined_call_operand.vmem [shape: bf16[9,8,8], index: 7, kind: input, shape index: {}]
  %s8 = inlined_call_operand.vmem [shape: f32[1,8], index: 8, kind: input, shape index: {}]
  %s9 = inlined_call_operand.vmem [shape: f32[1,8], index: 9, kind: input, shape index: {}]
  %s10 = inlined_call_operand.vmem [shape: f32[2,16,16,8], index: 10, kind: output, shape index: {}]
  %s11 = sld [smem:[#allocation0]]
  $region73: #{decoder_block_forward.1} parent=0
    _
  %s13 = ssub.s32 1, %s11
  %s14 = scalar_select 0, %s13, %s11
  loop: start=0, step=1, limit=4
  $region2: #{decoder_block_forward.1} parent=0 // loop_pre_header
    _
  $region3: #{decoder_block_forward.1} parent=0 // loop_header
    %s16 = sphi 0, %s20
    %p17 = scmp.ge.s32.totalorder %s16, 4
    %s26 = sphi 0, %s28
    %s29 = sphi 0, %s26
    %s30 = sphi 0, %s29
    %s46 = sphi 0, %s30
    %s52 = sphi 0, %s54
    %s55 = sphi 0, %s52
    %s56 = sphi 0, %s55
    %s72 = sphi 0, %s56
    %s78 = sphi 0, %s80
    %s81 = sphi 0, %s78
    %s82 = sphi 0, %s81
    %s98 = sphi 0, %s82
    %s102 = sphi 0, %s102
    %s104 = sphi 0, %s102
    %s105 = sphi 0, %s104
    %s119 = sphi 0, %s105
    %s123 = sphi 0, %s123
    %s125 = sphi 0, %s123
    %s126 = sphi 0, %s125
    %s140 = sphi 0, %s126
    %s144 = sphi 0, %s144
    %s146 = sphi 0, %s144
    %s147 = sphi 0, %s146
    %s161 = sphi 0, %s147
    %s165 = sphi 0, %s165
    %s167 = sphi 0, %s165
    %s168 = sphi 0, %s167
    %s182 = sphi 0, %s168
    %s186 = sphi 0, %s186
    %s188 = sphi 0, %s186
    %s189 = sphi 0, %s188
    %s203 = sphi 0, %s189
    %s207 = sphi 0, %s207
    %s209 = sphi 0, %s207
    %s210 = sphi 0, %s209
    %s224 = sphi 0, %s210
    %s228 = sphi 0, %s228
    %s230 = sphi 0, %s228
    %s231 = sphi 0, %s230
    %s245 = sphi 0, %s231
    %s251 = sphi 0, %s253
    %s254 = sphi 0, %s251
    %s255 = sphi 0, %s254
    %s271 = sphi 0, %s255
  $region4: #{decoder_block_forward.1} parent=0 // loop_header_branch
    %19 = sbr.rel (%p17) target = $region8
  $region5: #{decoder_block_forward.1} parent=0 // loop_body
    %s21 = ssub.s32 %s16, 1
    %s22 = ssub.s32 %s16, 2
    %s23 = sadd.s32 %s16, 1
    %s24 = ssub.s32 %s16, %s23
    %p25 = scmp.eq.s32.totalorder %s24, 0
    %s27 = sadd.s32 %s26, 1
    %s28 = scalar_select %p25, %s26, %s27
    %p31 = pneg %p25
    %p32 = scmp.eq.s32.totalorder %s16, 1
    %p33 = por %p31, %p32
    %p34 = scmp.ne.s32.totalorder %s26, %s29
    %p35 = scmp.eq.s32.totalorder %s16, 0
    %p36 = por %p34, %p35
    %p37 = scmp.ne.s32.totalorder %s26, %s29
    %p38 = scmp.eq.s32.totalorder %s21, 1
    %p39 = por %p37, %p38
    %p40 = scmp.ne.s32.totalorder %s29, %s30
    %p41 = scmp.eq.s32.totalorder %s21, 0
    %p42 = por %p40, %p41
    %p43 = scmp.ne.s32.totalorder %s29, %s30
    %p44 = scmp.eq.s32.totalorder %s22, 1
    %p45 = por %p43, %p44
    %p47 = scmp.ne.s32.totalorder %s30, %s46
    %p48 = scmp.eq.s32.totalorder %s22, 0
    %p49 = por %p47, %p48
    %s50 = ssub.s32 %s16, %s23
    %p51 = scmp.eq.s32.totalorder %s50, 0
    %s53 = sadd.s32 %s52, 1
    %s54 = scalar_select %p51, %s52, %s53
    %p57 = pneg %p51
    %p58 = scmp.eq.s32.totalorder %s16, 1
    %p59 = por %p57, %p58
    %p60 = scmp.ne.s32.totalorder %s52, %s55
    %p61 = scmp.eq.s32.totalorder %s16, 0
    %p62 = por %p60, %p61
    %p63 = scmp.ne.s32.totalorder %s52, %s55
    %p64 = scmp.eq.s32.totalorder %s21, 1
    %p65 = por %p63, %p64
    %p66 = scmp.ne.s32.totalorder %s55, %s56
    %p67 = scmp.eq.s32.totalorder %s21, 0
    %p68 = por %p66, %p67
    %p69 = scmp.ne.s32.totalorder %s55, %s56
    %p70 = scmp.eq.s32.totalorder %s22, 1
    %p71 = por %p69, %p70
    %p73 = scmp.ne.s32.totalorder %s56, %s72
    %p74 = scmp.eq.s32.totalorder %s22, 0
    %p75 = por %p73, %p74
    %s76 = ssub.s32 %s16, %s23
    %p77 = scmp.eq.s32.totalorder %s76, 0
    %s79 = sadd.s32 %s78, 1
    %s80 = scalar_select %p77, %s78, %s79
    %p83 = pneg %p77
    %p84 = scmp.eq.s32.totalorder %s16, 1
    %p85 = por %p83, %p84
    %p86 = scmp.ne.s32.totalorder %s78, %s81
    %p87 = scmp.eq.s32.totalorder %s16, 0
    %p88 = por %p86, %p87
    %p89 = scmp.ne.s32.totalorder %s78, %s81
    %p90 = scmp.eq.s32.totalorder %s21, 1
    %p91 = por %p89, %p90
    %p92 = scmp.ne.s32.totalorder %s81, %s82
    %p93 = scmp.eq.s32.totalorder %s21, 0
    %p94 = por %p92, %p93
    %p95 = scmp.ne.s32.totalorder %s81, %s82
    %p96 = scmp.eq.s32.totalorder %s22, 1
    %p97 = por %p95, %p96
    %p99 = scmp.ne.s32.totalorder %s82, %s98
    %p100 = scmp.eq.s32.totalorder %s22, 0
    %p101 = por %p99, %p100
    %s103 = sadd.s32 %s102, 1
    %p106 = scmp.eq.s32.totalorder %s16, 1
    %p107 = scmp.ne.s32.totalorder %s102, %s104
    %p108 = scmp.eq.s32.totalorder %s16, 0
    %p109 = por %p107, %p108
    %p110 = scmp.ne.s32.totalorder %s102, %s104
    %p111 = scmp.eq.s32.totalorder %s21, 1
    %p112 = por %p110, %p111
    %p113 = scmp.ne.s32.totalorder %s104, %s105
    %p114 = scmp.eq.s32.totalorder %s21, 0
    %p115 = por %p113, %p114
    %p116 = scmp.ne.s32.totalorder %s104, %s105
    %p117 = scmp.eq.s32.totalorder %s22, 1
    %p118 = por %p116, %p117
    %p120 = scmp.ne.s32.totalorder %s105, %s119
    %p121 = scmp.eq.s32.totalorder %s22, 0
    %p122 = por %p120, %p121
    %s124 = sadd.s32 %s123, 1
    %p127 = scmp.eq.s32.totalorder %s16, 1
    %p128 = scmp.ne.s32.totalorder %s123, %s125
    %p129 = scmp.eq.s32.totalorder %s16, 0
    %p130 = por %p128, %p129
    %p131 = scmp.ne.s32.totalorder %s123, %s125
    %p132 = scmp.eq.s32.totalorder %s21, 1
    %p133 = por %p131, %p132
    %p134 = scmp.ne.s32.totalorder %s125, %s126
    %p135 = scmp.eq.s32.totalorder %s21, 0
    %p136 = por %p134, %p135
    %p137 = scmp.ne.s32.totalorder %s125, %s126
    %p138 = scmp.eq.s32.totalorder %s22, 1
    %p139 = por %p137, %p138
    %p141 = scmp.ne.s32.totalorder %s126, %s140
    %p142 = scmp.eq.s32.totalorder %s22, 0
    %p143 = por %p141, %p142
    %s145 = sadd.s32 %s144, 1
    %p148 = scmp.eq.s32.totalorder %s16, 1
    %p149 = scmp.ne.s32.totalorder %s144, %s146
    %p150 = scmp.eq.s32.totalorder %s16, 0
    %p151 = por %p149, %p150
    %p152 = scmp.ne.s32.totalorder %s144, %s146
    %p153 = scmp.eq.s32.totalorder %s21, 1
    %p154 = por %p152, %p153
    %p155 = scmp.ne.s32.totalorder %s146, %s147
    %p156 = scmp.eq.s32.totalorder %s21, 0
    %p157 = por %p155, %p156
    %p158 = scmp.ne.s32.totalorder %s146, %s147
    %p159 = scmp.eq.s32.totalorder %s22, 1
    %p160 = por %p158, %p159
    %p162 = scmp.ne.s32.totalorder %s147, %s161
    %p163 = scmp.eq.s32.totalorder %s22, 0
    %p164 = por %p162, %p163
    %s166 = sadd.s32 %s165, 1
    %p169 = scmp.eq.s32.totalorder %s16, 1
    %p170 = scmp.ne.s32.totalorder %s165, %s167
    %p171 = scmp.eq.s32.totalorder %s16, 0
    %p172 = por %p170, %p171
    %p173 = scmp.ne.s32.totalorder %s165, %s167
    %p174 = scmp.eq.s32.totalorder %s21, 1
    %p175 = por %p173, %p174
    %p176 = scmp.ne.s32.totalorder %s167, %s168
    %p177 = scmp.eq.s32.totalorder %s21, 0
    %p178 = por %p176, %p177
    %p179 = scmp.ne.s32.totalorder %s167, %s168
    %p180 = scmp.eq.s32.totalorder %s22, 1
    %p181 = por %p179, %p180
    %p183 = scmp.ne.s32.totalorder %s168, %s182
    %p184 = scmp.eq.s32.totalorder %s22, 0
    %p185 = por %p183, %p184
    %s187 = sadd.s32 %s186, 1
    %p190 = scmp.eq.s32.totalorder %s16, 1
    %p191 = scmp.ne.s32.totalorder %s186, %s188
    %p192 = scmp.eq.s32.totalorder %s16, 0
    %p193 = por %p191, %p192
    %p194 = scmp.ne.s32.totalorder %s186, %s188
    %p195 = scmp.eq.s32.totalorder %s21, 1
    %p196 = por %p194, %p195
    %p197 = scmp.ne.s32.totalorder %s188, %s189
    %p198 = scmp.eq.s32.totalorder %s21, 0
    %p199 = por %p197, %p198
    %p200 = scmp.ne.s32.totalorder %s188, %s189
    %p201 = scmp.eq.s32.totalorder %s22, 1
    %p202 = por %p200, %p201
    %p204 = scmp.ne.s32.totalorder %s189, %s203
    %p205 = scmp.eq.s32.totalorder %s22, 0
    %p206 = por %p204, %p205
    %s208 = sadd.s32 %s207, 1
    %p211 = scmp.eq.s32.totalorder %s16, 1
    %p212 = scmp.ne.s32.totalorder %s207, %s209
    %p213 = scmp.eq.s32.totalorder %s16, 0
    %p214 = por %p212, %p213
    %p215 = scmp.ne.s32.totalorder %s207, %s209
    %p216 = scmp.eq.s32.totalorder %s21, 1
    %p217 = por %p215, %p216
    %p218 = scmp.ne.s32.totalorder %s209, %s210
    %p219 = scmp.eq.s32.totalorder %s21, 0
    %p220 = por %p218, %p219
    %p221 = scmp.ne.s32.totalorder %s209, %s210
    %p222 = scmp.eq.s32.totalorder %s22, 1
    %p223 = por %p221, %p222
    %p225 = scmp.ne.s32.totalorder %s210, %s224
    %p226 = scmp.eq.s32.totalorder %s22, 0
    %p227 = por %p225, %p226
    %s229 = sadd.s32 %s228, 1
    %p232 = scmp.eq.s32.totalorder %s16, 1
    %p233 = scmp.ne.s32.totalorder %s228, %s230
    %p234 = scmp.eq.s32.totalorder %s16, 0
    %p235 = por %p233, %p234
    %p236 = scmp.ne.s32.totalorder %s228, %s230
    %p237 = scmp.eq.s32.totalorder %s21, 1
    %p238 = por %p236, %p237
    %p239 = scmp.ne.s32.totalorder %s230, %s231
    %p240 = scmp.eq.s32.totalorder %s21, 0
    %p241 = por %p239, %p240
    %p242 = scmp.ne.s32.totalorder %s230, %s231
    %p243 = scmp.eq.s32.totalorder %s22, 1
    %p244 = por %p242, %p243
    %p246 = scmp.ne.s32.totalorder %s231, %s245
    %p247 = scmp.eq.s32.totalorder %s22, 0
    %p248 = por %p246, %p247
    %s249 = ssub.s32 %s16, %s23
    %p250 = scmp.eq.s32.totalorder %s249, 0
    %s252 = sadd.s32 %s251, 1
    %s253 = scalar_select %p250, %s251, %s252
    %p256 = pneg %p250
    %p257 = scmp.eq.s32.totalorder %s16, 1
    %p258 = por %p256, %p257
    %p259 = scmp.ne.s32.totalorder %s251, %s254
    %p260 = scmp.eq.s32.totalorder %s16, 0
    %p261 = por %p259, %p260
    %p262 = scmp.ne.s32.totalorder %s251, %s254
    %p263 = scmp.eq.s32.totalorder %s21, 1
    %p264 = por %p262, %p263
    %p265 = scmp.ne.s32.totalorder %s254, %s255
    %p266 = scmp.eq.s32.totalorder %s21, 0
    %p267 = por %p265, %p266
    %p268 = scmp.ne.s32.totalorder %s254, %s255
    %p269 = scmp.eq.s32.totalorder %s22, 1
    %p270 = por %p268, %p269
    %p272 = scmp.ne.s32.totalorder %s255, %s271
    %p273 = scmp.eq.s32.totalorder %s22, 0
    %p274 = por %p272, %p273
    %p275 = scmp.le.s32.totalorder 1, %s16
    %p276 = scmp.lt.s32.totalorder %s16, 3
    %p277 = pnand %p275, %p276
    %p278 = pneg %p277
    // Predicated region
    $region9: #{decoder_block_forward.1} parent=5 // pred_check
      _
    $region10: #{decoder_block_forward.1} parent=5 // pred_check_branch
      %280 = sbr.rel (%p277) target = $region12
    $region11: #{decoder_block_forward.1} parent=5 // pred_region
      %s281 = ssub.s32 %s16, 1
      // Predicated region
      $region13: #{decoder_block_forward.1} parent=11 // pred_check
        %p282 = pneg %p115
      $region14: #{decoder_block_forward.1} parent=11 // pred_check_branch
        %284 = sbr.rel (%p282) target = $region16
      $region15: #{decoder_block_forward.1} parent=11 // pred_region
        _
      $region16: #{decoder_block_forward.1} parent=11 // pred_fallthru
        _
      // Predicated region
      $region17: #{decoder_block_forward.1} parent=11 // pred_check
        %p285 = pneg %p136
      $region18: #{decoder_block_forward.1} parent=11 // pred_check_branch
        %287 = sbr.rel (%p285) target = $region20
      $region19: #{decoder_block_forward.1} parent=11 // pred_region
        _
      $region20: #{decoder_block_forward.1} parent=11 // pred_fallthru
        _
      // Predicated region
      $region21: #{decoder_block_forward.1} parent=11 // pred_check
        %p288 = pneg %p157
      $region22: #{decoder_block_forward.1} parent=11 // pred_check_branch
        %290 = sbr.rel (%p288) target = $region24
      $region23: #{decoder_block_forward.1} parent=11 // pred_region
        _
      $region24: #{decoder_block_forward.1} parent=11 // pred_fallthru
        _
      // Predicated region
      $region25: #{decoder_block_forward.1} parent=11 // pred_check
        %p291 = pneg %p178
      $region26: #{decoder_block_forward.1} parent=11 // pred_check_branch
        %293 = sbr.rel (%p291) target = $region28
      $region27: #{decoder_block_forward.1} parent=11 // pred_region
        _
      $region28: #{decoder_block_forward.1} parent=11 // pred_fallthru
        _
      // Predicated region
      $region29: #{decoder_block_forward.1} parent=11 // pred_check
        %p294 = pneg %p199
      $region30: #{decoder_block_forward.1} parent=11 // pred_check_branch
        %296 = sbr.rel (%p294) target = $region32
      $region31: #{decoder_block_forward.1} parent=11 // pred_region
        _
      $region32: #{decoder_block_forward.1} parent=11 // pred_fallthru
        _
      // Predicated region
      $region33: #{decoder_block_forward.1} parent=11 // pred_check
        %p297 = pneg %p220
      $region34: #{decoder_block_forward.1} parent=11 // pred_check_branch
        %299 = sbr.rel (%p297) target = $region36
      $region35: #{decoder_block_forward.1} parent=11 // pred_region
        _
      $region36: #{decoder_block_forward.1} parent=11 // pred_fallthru
        _
      // Predicated region
      $region37: #{decoder_block_forward.1} parent=11 // pred_check
        %p300 = pneg %p241
      $region38: #{decoder_block_forward.1} parent=11 // pred_check_branch
        %302 = sbr.rel (%p300) target = $region40
      $region39: #{decoder_block_forward.1} parent=11 // pred_region
        _
      $region40: #{decoder_block_forward.1} parent=11 // pred_fallthru
        _
    $region12: #{decoder_block_forward.1} parent=5 // pred_fallthru
      _
    %p303 = scmp.lt.s32.totalorder %s16, 2
    // Predicated region
    $region41: #{decoder_block_forward.1} parent=5 // pred_check
      %p304 = pneg %p303
    $region42: #{decoder_block_forward.1} parent=5 // pred_check_branch
      %306 = sbr.rel (%p304) target = $region44
    $region43: #{decoder_block_forward.1} parent=5 // pred_region
      // Predicated region
      $region45: #{decoder_block_forward.1} parent=43 // pred_check
        %p307 = pneg %p36
      $region46: #{decoder_block_forward.1} parent=43 // pred_check_branch
        %309 = sbr.rel (%p307) target = $region48
      $region47: #{decoder_block_forward.1} parent=43 // pred_region
        %p310 = scmp.lt.s32.totalorder %s16, 1
        %s311 = scalar_select %p310, %s16, 1
        %s312 = smul.addr %s311, 32
        %s313 = smul.addr %s312, 8
        %s314 = scalar_lea.vmem %s0, %s313
      $region48: #{decoder_block_forward.1} parent=43 // pred_fallthru
        _
      // Predicated region
      $region49: #{decoder_block_forward.1} parent=43 // pred_check
        %p315 = pneg %p62
      $region50: #{decoder_block_forward.1} parent=43 // pred_check_branch
        %317 = sbr.rel (%p315) target = $region52
      $region51: #{decoder_block_forward.1} parent=43 // pred_region
        %p318 = scmp.lt.s32.totalorder %s16, 1
        %s319 = scalar_select %p318, %s16, 1
        %s320 = smul.addr %s319, 32
        %s321 = smul.addr %s320, 8
        %s322 = scalar_lea.vmem %s1, %s321
      $region52: #{decoder_block_forward.1} parent=43 // pred_fallthru
        _
      // Predicated region
      $region53: #{decoder_block_forward.1} parent=43 // pred_check
        %p323 = pneg %p88
      $region54: #{decoder_block_forward.1} parent=43 // pred_check_branch
        %325 = sbr.rel (%p323) target = $region56
      $region55: #{decoder_block_forward.1} parent=43 // pred_region
        %p326 = scmp.lt.s32.totalorder %s16, 1
        %s327 = scalar_select %p326, %s16, 1
        %s328 = smul.addr %s327, 32
        %s329 = smul.addr %s328, 8
        %s330 = scalar_lea.vmem %s2, %s329
      $region56: #{decoder_block_forward.1} parent=43 // pred_fallthru
        _
    $region44: #{decoder_block_forward.1} parent=5 // pred_fallthru
      _
    %p331 = scmp.le.s32.totalorder 1, %s16
    %p332 = scmp.lt.s32.totalorder %s16, 3
    %p333 = pnand %p331, %p332
    %p334 = pneg %p333
    // Predicated region
    $region57: #{decoder_block_forward.1} parent=5 // pred_check
      _
    $region58: #{decoder_block_forward.1} parent=5 // pred_check_branch
      %336 = sbr.rel (%p333) target = $region60
    $region59: #{decoder_block_forward.1} parent=5 // pred_region
      %s337 = ssub.s32 %s16, 1
      %p338 = scmp.lt.s32.totalorder %s21, 1
      %s339 = scalar_select %p338, %s21, 1
      %s340 = smul.addr %s339, 32
      %s341 = smul.addr %s340, 8
      %s342 = scalar_lea.vmem %s0, %s341
      %p343 = pneg %p42
      %p344 = pneg %p39
      %p345 = scmp.lt.s32.totalorder %s21, 1
      %s346 = scalar_select %p345, %s21, 1
      %s347 = smul.addr %s346, 32
      %s348 = smul.addr %s347, 8
      %s349 = scalar_lea.vmem %s1, %s348
      %p350 = pneg %p68
      %p351 = pneg %p65
      %p352 = scmp.lt.s32.totalorder %s21, 1
      %s353 = scalar_select %p352, %s21, 1
      %s354 = smul.addr %s353, 32
      %s355 = smul.addr %s354, 8
      %s356 = scalar_lea.vmem %s2, %s355
      %p357 = pneg %p94
      %p358 = pneg %p91
      %p359 = pneg %p115
      %p360 = pneg %p112
      %p361 = pneg %p136
      %p362 = pneg %p133
      %p363 = pneg %p157
      %p364 = pneg %p154
      %p365 = pneg %p178
      %p366 = pneg %p175
      %p367 = pneg %p199
      %p368 = pneg %p196
      %p369 = pneg %p220
      %p370 = pneg %p217
      %p371 = pneg %p241
      %p372 = pneg %p238
      %p373 = pneg %p267
      %p374 = pneg %p264
      %p375 = scmp.lt.s32.totalorder %s21, 1
      %s376 = scalar_select %p375, %s21, 1
      %s377 = smul.addr %s376, 32
      %s378 = smul.addr %s377, 8
      %s379 = scalar_lea.vmem %s10, %s378
      %p380 = scmp.lt.s32.totalorder %s21, 1
      %s381 = scalar_select %p380, %s21, 1
      %s382 = smul.addr %s381, 32
      %s383 = smul.addr %s382, 8
      %s384 = scalar_lea.vmem %s0, %s383
      %p385 = scmp.lt.s32.totalorder %s21, 1
      %s386 = scalar_select %p385, %s21, 1
      %s387 = smul.addr %s386, 32
      %s388 = smul.addr %s387, 8
      %s389 = scalar_lea.vmem %s1, %s388
      %p390 = scmp.lt.s32.totalorder %s21, 1
      %s391 = scalar_select %p390, %s21, 1
      %s392 = smul.addr %s391, 32
      %s393 = smul.addr %s392, 8
      %s394 = scalar_lea.vmem %s2, %s393
      %p395 = scmp.lt.s32.totalorder %s21, 1
      %s396 = scalar_select %p395, %s21, 1
      %s397 = smul.addr %s396, 32
      %s398 = smul.addr %s397, 8
      %s399 = scalar_lea.vmem %s10, %s398
      %v401 = vlaneseq
      %v402 = vshrl.u32 %v401, 7
      %v403 = vadd.s32 %v402, 8
      %v404 = vld [vmem:[%s389] sm:$0xff]
      %v405 = vld [vmem:[%s389 + $0x8] sm:$0xff]
      %v406 = vld [vmem:[%s389 + $0x10] sm:$0xff]
      %v407 = vld [vmem:[%s389 + $0x18] sm:$0xff]
      %v408 = vld [vmem:[%s389 + $0x20] sm:$0xff]
      %v409 = vld [vmem:[%s389 + $0x28] sm:$0xff]
      %v410 = vld [vmem:[%s389 + $0x30] sm:$0xff]
      %v411 = vld [vmem:[%s389 + $0x38] sm:$0xff]
      %v412 = vld [vmem:[%s389 + $0x40] sm:$0xff]
      %v413 = vld [vmem:[%s389 + $0x48] sm:$0xff]
      %v414 = vld [vmem:[%s389 + $0x50] sm:$0xff]
      %v415 = vld [vmem:[%s389 + $0x58] sm:$0xff]
      %v416 = vld [vmem:[%s389 + $0x60] sm:$0xff]
      %v417 = vld [vmem:[%s389 + $0x68] sm:$0xff]
      %v418 = vld [vmem:[%s389 + $0x70] sm:$0xff]
      %v419 = vld [vmem:[%s389 + $0x78] sm:$0xff]
      %v420 = vld [vmem:[%s389 + $0x80] sm:$0xff]
      %v421 = vld [vmem:[%s389 + $0x88] sm:$0xff]
      %v422 = vld [vmem:[%s389 + $0x90] sm:$0xff]
      %v423 = vld [vmem:[%s389 + $0x98] sm:$0xff]
      %v424 = vld [vmem:[%s389 + $0xa0] sm:$0xff]
      %v425 = vld [vmem:[%s389 + $0xa8] sm:$0xff]
      %v426 = vld [vmem:[%s389 + $0xb0] sm:$0xff]
      %v427 = vld [vmem:[%s389 + $0xb8] sm:$0xff]
      %v428 = vld [vmem:[%s389 + $0xc0] sm:$0xff]
      %v429 = vld [vmem:[%s389 + $0xc8] sm:$0xff]
      %v430 = vld [vmem:[%s389 + $0xd0] sm:$0xff]
      %v431 = vld [vmem:[%s389 + $0xd8] sm:$0xff]
      %v432 = vld [vmem:[%s389 + $0xe0] sm:$0xff]
      %v433 = vld [vmem:[%s389 + $0xe8] sm:$0xff]
      %v434 = vld [vmem:[%s389 + $0xf0] sm:$0xff]
      %v435 = vld [vmem:[%s389 + $0xf8] sm:$0xff]
      %v436 = vadd.s32 %v402, 16
      %v437 = vadd.s32 %v403, 16
      %v438 = vadd.s32 %v402, 32
      %v439 = vadd.s32 %v403, 32
      %v440 = vadd.s32 %v402, 48
      %v441 = vadd.s32 %v403, 48
      %v442 = vadd.s32 %v402, 64
      %v443 = vadd.s32 %v403, 64
      %v444 = vadd.s32 %v402, 80
      %v445 = vadd.s32 %v403, 80
      %v446 = vadd.s32 %v402, 96
      %v447 = vadd.s32 %v403, 96
      %v448 = vadd.s32 %v402, 112
      %v449 = vadd.s32 %v403, 112
      %v450 = vadd.s32 %v402, 128
      %v451 = vadd.s32 %v403, 128
      %v452 = vadd.s32 %v402, 144
      %v453 = vadd.s32 %v403, 144
      %v454 = vadd.s32 %v402, 160
      %v455 = vadd.s32 %v403, 160
      %v456 = vadd.s32 %v402, 176
      %v457 = vadd.s32 %v403, 176
      %v458 = vadd.s32 %v402, 192
      %v459 = vadd.s32 %v403, 192
      %v460 = vadd.s32 %v402, 208
      %v461 = vadd.s32 %v403, 208
      %v462 = vadd.s32 %v402, 224
      %v463 = vadd.s32 %v403, 224
      %v464 = vadd.s32 %v402, 240
      %v465 = vadd.s32 %v403, 240
      %vm466 = vcmp.eq.s32.totalorder %v404, %v402
      %vm467 = vcmp.eq.s32.totalorder %v405, %v403
      %vm468 = vcmp.eq.s32.totalorder %v406, %v436
      %vm469 = vcmp.eq.s32.totalorder %v407, %v437
      %vm470 = vcmp.eq.s32.totalorder %v408, %v438
      %vm471 = vcmp.eq.s32.totalorder %v409, %v439
      %vm472 = vcmp.eq.s32.totalorder %v410, %v440
      %vm473 = vcmp.eq.s32.totalorder %v411, %v441
      %vm474 = vcmp.eq.s32.totalorder %v412, %v442
      %vm475 = vcmp.eq.s32.totalorder %v413, %v443
      %vm476 = vcmp.eq.s32.totalorder %v414, %v444
      %vm477 = vcmp.eq.s32.totalorder %v415, %v445
      %vm478 = vcmp.eq.s32.totalorder %v416, %v446
      %vm479 = vcmp.eq.s32.totalorder %v417, %v447
      %vm480 = vcmp.eq.s32.totalorder %v418, %v448
      %vm481 = vcmp.eq.s32.totalorder %v419, %v449
      %vm482 = vcmp.eq.s32.totalorder %v420, %v450
      %vm483 = vcmp.eq.s32.totalorder %v421, %v451
      %vm484 = vcmp.eq.s32.totalorder %v422, %v452
      %vm485 = vcmp.eq.s32.totalorder %v423, %v453
      %vm486 = vcmp.eq.s32.totalorder %v424, %v454
      %vm487 = vcmp.eq.s32.totalorder %v425, %v455
      %vm488 = vcmp.eq.s32.totalorder %v426, %v456
      %vm489 = vcmp.eq.s32.totalorder %v427, %v457
      %vm490 = vcmp.eq.s32.totalorder %v428, %v458
      %vm491 = vcmp.eq.s32.totalorder %v429, %v459
      %vm492 = vcmp.eq.s32.totalorder %v430, %v460
      %vm493 = vcmp.eq.s32.totalorder %v431, %v461
      %vm494 = vcmp.eq.s32.totalorder %v432, %v462
      %vm495 = vcmp.eq.s32.totalorder %v433, %v463
      %vm496 = vcmp.eq.s32.totalorder %v434, %v464
      %vm497 = vcmp.eq.s32.totalorder %v435, %v465
      %v498 = vld [vmem:[%s384] sm:$0xff]
      %v499 = vld [vmem:[%s384 + $0x8] sm:$0xff]
      %v500 = vld [vmem:[%s384 + $0x10] sm:$0xff]
      %v501 = vld [vmem:[%s384 + $0x18] sm:$0xff]
      %v502 = vld [vmem:[%s384 + $0x20] sm:$0xff]
      %v503 = vld [vmem:[%s384 + $0x28] sm:$0xff]
      %v504 = vld [vmem:[%s384 + $0x30] sm:$0xff]
      %v505 = vld [vmem:[%s384 + $0x38] sm:$0xff]
      %v506 = vld [vmem:[%s384 + $0x40] sm:$0xff]
      %v507 = vld [vmem:[%s384 + $0x48] sm:$0xff]
      %v508 = vld [vmem:[%s384 + $0x50] sm:$0xff]
      %v509 = vld [vmem:[%s384 + $0x58] sm:$0xff]
      %v510 = vld [vmem:[%s384 + $0x60] sm:$0xff]
      %v511 = vld [vmem:[%s384 + $0x68] sm:$0xff]
      %v512 = vld [vmem:[%s384 + $0x70] sm:$0xff]
      %v513 = vld [vmem:[%s384 + $0x78] sm:$0xff]
      %v514 = vld [vmem:[%s384 + $0x80] sm:$0xff]
      %v515 = vld [vmem:[%s384 + $0x88] sm:$0xff]
      %v516 = vld [vmem:[%s384 + $0x90] sm:$0xff]
      %v517 = vld [vmem:[%s384 + $0x98] sm:$0xff]
      %v518 = vld [vmem:[%s384 + $0xa0] sm:$0xff]
      %v519 = vld [vmem:[%s384 + $0xa8] sm:$0xff]
      %v520 = vld [vmem:[%s384 + $0xb0] sm:$0xff]
      %v521 = vld [vmem:[%s384 + $0xb8] sm:$0xff]
      %v522 = vld [vmem:[%s384 + $0xc0] sm:$0xff]
      %v523 = vld [vmem:[%s384 + $0xc8] sm:$0xff]
      %v524 = vld [vmem:[%s384 + $0xd0] sm:$0xff]
      %v525 = vld [vmem:[%s384 + $0xd8] sm:$0xff]
      %v526 = vld [vmem:[%s384 + $0xe0] sm:$0xff]
      %v527 = vld [vmem:[%s384 + $0xe8] sm:$0xff]
      %v528 = vld [vmem:[%s384 + $0xf0] sm:$0xff]
      %v529 = vld [vmem:[%s384 + $0xf8] sm:$0xff]
      %v530 = vsel %vm466, %v498, 0.0
      %v531 = vsel %vm467, %v499, 0.0
      %v532 = vsel %vm468, %v500, 0.0
      %v533 = vsel %vm469, %v501, 0.0
      %v534 = vsel %vm470, %v502, 0.0
      %v535 = vsel %vm471, %v503, 0.0
      %v536 = vsel %vm472, %v504, 0.0
      %v537 = vsel %vm473, %v505, 0.0
      %v538 = vsel %vm474, %v506, 0.0
      %v539 = vsel %vm475, %v507, 0.0
      %v540 = vsel %vm476, %v508, 0.0
      %v541 = vsel %vm477, %v509, 0.0
      %v542 = vsel %vm478, %v510, 0.0
      %v543 = vsel %vm479, %v511, 0.0
      %v544 = vsel %vm480, %v512, 0.0
      %v545 = vsel %vm481, %v513, 0.0
      %v546 = vsel %vm482, %v514, 0.0
      %v547 = vsel %vm483, %v515, 0.0
      %v548 = vsel %vm484, %v516, 0.0
      %v549 = vsel %vm485, %v517, 0.0
      %v550 = vsel %vm486, %v518, 0.0
      %v551 = vsel %vm487, %v519, 0.0
      %v552 = vsel %vm488, %v520, 0.0
      %v553 = vsel %vm489, %v521, 0.0
      %v554 = vsel %vm490, %v522, 0.0
      %v555 = vsel %vm491, %v523, 0.0
      %v556 = vsel %vm492, %v524, 0.0
      %v557 = vsel %vm493, %v525, 0.0
      %v558 = vsel %vm494, %v526, 0.0
      %v559 = vsel %vm495, %v527, 0.0
      %v560 = vsel %vm496, %v528, 0.0
      %v561 = vsel %vm497, %v529, 0.0
      %v562 = vpack.c.bf16 %v531, %v530
      %v563 = vpack.c.bf16 %v533, %v532
      %v564 = vpack.c.bf16 %v535, %v534
      %v565 = vpack.c.bf16 %v537, %v536
      %v566 = vpack.c.bf16 %v539, %v538
      %v567 = vpack.c.bf16 %v541, %v540
      %v568 = vpack.c.bf16 %v543, %v542
      %v569 = vpack.c.bf16 %v545, %v544
      %v570 = vpack.c.bf16 %v547, %v546
      %v571 = vpack.c.bf16 %v549, %v548
      %v572 = vpack.c.bf16 %v551, %v550
      %v573 = vpack.c.bf16 %v553, %v552
      %v574 = vpack.c.bf16 %v555, %v554
      %v575 = vpack.c.bf16 %v557, %v556
      %v576 = vpack.c.bf16 %v559, %v558
      %v577 = vpack.c.bf16 %v561, %v560
      %v578 = vld [vmem:[%s394] sm:$0xff]
      %v579 = vld [vmem:[%s394 + $0x8] sm:$0xff]
      %v580 = vld [vmem:[%s394 + $0x10] sm:$0xff]
      %v581 = vld [vmem:[%s394 + $0x18] sm:$0xff]
      %v582 = vld [vmem:[%s394 + $0x20] sm:$0xff]
      %v583 = vld [vmem:[%s394 + $0x28] sm:$0xff]
      %v584 = vld [vmem:[%s394 + $0x30] sm:$0xff]
      %v585 = vld [vmem:[%s394 + $0x38] sm:$0xff]
      %v586 = vld [vmem:[%s394 + $0x40] sm:$0xff]
      %v587 = vld [vmem:[%s394 + $0x48] sm:$0xff]
      %v588 = vld [vmem:[%s394 + $0x50] sm:$0xff]
      %v589 = vld [vmem:[%s394 + $0x58] sm:$0xff]
      %v590 = vld [vmem:[%s394 + $0x60] sm:$0xff]
      %v591 = vld [vmem:[%s394 + $0x68] sm:$0xff]
      %v592 = vld [vmem:[%s394 + $0x70] sm:$0xff]
      %v593 = vld [vmem:[%s394 + $0x78] sm:$0xff]
      %v594 = vld [vmem:[%s394 + $0x80] sm:$0xff]
      %v595 = vld [vmem:[%s394 + $0x88] sm:$0xff]
      %v596 = vld [vmem:[%s394 + $0x90] sm:$0xff]
      %v597 = vld [vmem:[%s394 + $0x98] sm:$0xff]
      %v598 = vld [vmem:[%s394 + $0xa0] sm:$0xff]
      %v599 = vld [vmem:[%s394 + $0xa8] sm:$0xff]
      %v600 = vld [vmem:[%s394 + $0xb0] sm:$0xff]
      %v601 = vld [vmem:[%s394 + $0xb8] sm:$0xff]
      %v602 = vld [vmem:[%s394 + $0xc0] sm:$0xff]
      %v603 = vld [vmem:[%s394 + $0xc8] sm:$0xff]
      %v604 = vld [vmem:[%s394 + $0xd0] sm:$0xff]
      %v605 = vld [vmem:[%s394 + $0xd8] sm:$0xff]
      %v606 = vld [vmem:[%s394 + $0xe0] sm:$0xff]
      %v607 = vld [vmem:[%s394 + $0xe8] sm:$0xff]
      %v608 = vld [vmem:[%s394 + $0xf0] sm:$0xff]
      %v609 = vld [vmem:[%s394 + $0xf8] sm:$0xff]
      %v610 = vpack.c.bf16 %v579, %v578
      %v611 = vpack.c.bf16 %v581, %v580
      %v612 = vpack.c.bf16 %v583, %v582
      %v613 = vpack.c.bf16 %v585, %v584
      %v614 = vpack.c.bf16 %v587, %v586
      %v615 = vpack.c.bf16 %v589, %v588
      %v616 = vpack.c.bf16 %v591, %v590
      %v617 = vpack.c.bf16 %v593, %v592
      %v618 = vpack.c.bf16 %v595, %v594
      %v619 = vpack.c.bf16 %v597, %v596
      %v620 = vpack.c.bf16 %v599, %v598
      %v621 = vpack.c.bf16 %v601, %v600
      %v622 = vpack.c.bf16 %v603, %v602
      %v623 = vpack.c.bf16 %v605, %v604
      %v624 = vpack.c.bf16 %v607, %v606
      %v625 = vpack.c.bf16 %v609, %v608
      %v626 = vld [vmem:[%s3] sm:$0x3]
      %v627 = vld [vmem:[%s4] sm:$0x3]
      %vm628 = vcmask 31744
      %v630 = vsel %vm628, %v610, 0
      %v633 = vsel %vm628, %v611, 0
      %v636 = vsel %vm628, %v612, 0
      %v639 = vsel %vm628, %v613, 0
      %v642 = vsel %vm628, %v614, 0
      %v645 = vsel %vm628, %v615, 0
      %v648 = vsel %vm628, %v616, 0
      %v651 = vsel %vm628, %v617, 0
      %v654 = vsel %vm628, %v618, 0
      %v657 = vsel %vm628, %v619, 0
      %v660 = vsel %vm628, %v620, 0
      %v663 = vsel %vm628, %v621, 0
      %v666 = vsel %vm628, %v622, 0
      %v669 = vsel %vm628, %v623, 0
      %v672 = vsel %vm628, %v624, 0
      %v675 = vsel %vm628, %v625, 0
      %vm677 = vcmask 1041408
      %v679 = vsel %vm677, %v627, 0
      %681 = vmatprep.subr.bf16.mxu0 0
      %682 = vmatpush1.bf16.msra.mxu0 %v679
      %683 = vmatprep.subr.bf16.mxu0 0
      %684 = vmatpush1.bf16.msra.mxu0 0
      %685 = vmatprep.subr.bf16.mxu0 0
      %686 = vmatpush1.bf16.msra.mxu0 0
      %687 = vmatprep.subr.bf16.mxu0 0
      %688 = vmatpush1.bf16.msra.mxu0 0
      %689 = vmatprep.subr.bf16.mxu0 0
      %690 = vmatpush1.bf16.msra.mxu0 0
      %691 = vmatprep.subr.bf16.mxu0 0
      %692 = vmatpush1.bf16.msra.mxu0 0
      %693 = vmatprep.subr.bf16.mxu0 0
      %694 = vmatpush1.bf16.msra.mxu0 0
      %695 = vmatprep.subr.bf16.mxu0 0
      %696 = vmatpush1.bf16.msra.mxu0 0
      %697 = vmatprep.subr.bf16.mxu0 0
      %698 = vmatpush1.bf16.msra.mxu0 0
      %699 = vmatprep.subr.bf16.mxu0 0
      %700 = vmatpush1.bf16.msra.mxu0 0
      %701 = vmatprep.subr.bf16.mxu0 0
      %702 = vmatpush1.bf16.msra.mxu0 0
      %703 = vmatprep.subr.bf16.mxu0 0
      %704 = vmatpush1.bf16.msra.mxu0 0
      %705 = vmatprep.subr.bf16.mxu0 0
      %706 = vmatpush1.bf16.msra.mxu0 0
      %707 = vmatprep.subr.bf16.mxu0 0
      %708 = vmatpush1.bf16.msra.mxu0 0
      %709 = vmatprep.subr.bf16.mxu0 0
      %710 = vmatpush1.bf16.msra.mxu0 0
      %711 = vmatprep.subr.bf16.mxu0 0
      %712 = vmatpush1.bf16.msra.mxu0 0
      %713 = vmatprep.mubr.bf16.mxu0 0
      %714 = vmatmul.mubr.bf16.gmra.mrb[0].mxu0 %v630
      %v715 = vpop.f32.mrb[0].mxu0
      %v716 = vadd.f32 0.0, %v715
      %v717 = vpop.f32.mrb[0].mxu0
      %v718 = vpop.f32.mrb[0].mxu0
      %v719 = vadd.f32 0.0, %v718
      %v720 = vpop.f32.mrb[0].mxu0
      %721 = vmatprep.mubr.bf16.mxu0 0
      %722 = vmatmul.mubr.bf16.gmra.mrb[0].mxu0 %v633
      %v723 = vpop.f32.mrb[0].mxu0
      %v724 = vadd.f32 0.0, %v723
      %v725 = vpop.f32.mrb[0].mxu0
      %v726 = vpop.f32.mrb[0].mxu0
      %v727 = vadd.f32 0.0, %v726
      %v728 = vpop.f32.mrb[0].mxu0
      %729 = vmatprep.mubr.bf16.mxu0 0
      %730 = vmatmul.mubr.bf16.gmra.mrb[0].mxu0 %v636
      %v731 = vpop.f32.mrb[0].mxu0
      %v732 = vadd.f32 0.0, %v731
      %v733 = vpop.f32.mrb[0].mxu0
      %v734 = vpop.f32.mrb[0].mxu0
      %v735 = vadd.f32 0.0, %v734
      %v736 = vpop.f32.mrb[0].mxu0
      %737 = vmatprep.mubr.bf16.mxu0 0
      %738 = vmatmul.mubr.bf16.gmra.mrb[0].mxu0 %v639
      %v739 = vpop.f32.mrb[0].mxu0
      %v740 = vadd.f32 0.0, %v739
      %v741 = vpop.f32.mrb[0].mxu0
      %v742 = vpop.f32.mrb[0].mxu0
      %v743 = vadd.f32 0.0, %v742
      %v744 = vpop.f32.mrb[0].mxu0
      %745 = vmatprep.mubr.bf16.mxu0 0
      %746 = vmatmul.mubr.bf16.gmra.mrb[0].mxu0 %v642
      %v747 = vpop.f32.mrb[0].mxu0
      %v748 = vadd.f32 0.0, %v747
      %v749 = vpop.f32.mrb[0].mxu0
      %v750 = vpop.f32.mrb[0].mxu0
      %v751 = vadd.f32 0.0, %v750
      %v752 = vpop.f32.mrb[0].mxu0
      %753 = vmatprep.mubr.bf16.mxu0 0
      %754 = vmatmul.mubr.bf16.gmra.mrb[0].mxu0 %v645
      %v755 = vpop.f32.mrb[0].mxu0
      %v756 = vadd.f32 0.0, %v755
      %v757 = vpop.f32.mrb[0].mxu0
      %v758 = vpop.f32.mrb[0].mxu0
      %v759 = vadd.f32 0.0, %v758
      %v760 = vpop.f32.mrb[0].mxu0
      %761 = vmatprep.mubr.bf16.mxu0 0
      %762 = vmatmul.mubr.bf16.gmra.mrb[0].mxu0 %v648
      %v763 = vpop.f32.mrb[0].mxu0
      %v764 = vadd.f32 0.0, %v763
      %v765 = vpop.f32.mrb[0].mxu0
      %v766 = vpop.f32.mrb[0].mxu0
      %v767 = vadd.f32 0.0, %v766
      %v768 = vpop.f32.mrb[0].mxu0
      %769 = vmatprep.mubr.bf16.mxu0 0
      %770 = vmatmul.mubr.bf16.gmra.mrb[0].mxu0 %v651
      %v771 = vpop.f32.mrb[0].mxu0
      %v772 = vadd.f32 0.0, %v771
      %v773 = vpop.f32.mrb[0].mxu0
      %v774 = vpop.f32.mrb[0].mxu0
      %v775 = vadd.f32 0.0, %v774
      %v776 = vpop.f32.mrb[0].mxu0
      %777 = vmatprep.mubr.bf16.mxu0 0
      %778 = vmatmul.mubr.bf16.gmra.mrb[0].mxu0 %v654
      %v779 = vpop.f32.mrb[0].mxu0
      %v780 = vadd.f32 0.0, %v779
      %v781 = vpop.f32.mrb[0].mxu0
      %v782 = vpop.f32.mrb[0].mxu0
      %v783 = vadd.f32 0.0, %v782
      %v784 = vpop.f32.mrb[0].mxu0
      %785 = vmatprep.mubr.bf16.mxu0 0
      %786 = vmatmul.mubr.bf16.gmra.mrb[0].mxu0 %v657
      %v787 = vpop.f32.mrb[0].mxu0
      %v788 = vadd.f32 0.0, %v787
      %v789 = vpop.f32.mrb[0].mxu0
      %v790 = vpop.f32.mrb[0].mxu0
      %v791 = vadd.f32 0.0, %v790
      %v792 = vpop.f32.mrb[0].mxu0
      %793 = vmatprep.mubr.bf16.mxu0 0
      %794 = vmatmul.mubr.bf16.gmra.mrb[0].mxu0 %v660
      %v795 = vpop.f32.mrb[0].mxu0
      %v796 = vadd.f32 0.0, %v795
      %v797 = vpop.f32.mrb[0].mxu0
      %v798 = vpop.f32.mrb[0].mxu0
      %v799 = vadd.f32 0.0, %v798
      %v800 = vpop.f32.mrb[0].mxu0
      %801 = vmatprep.mubr.bf16.mxu0 0
      %802 = vmatmul.mubr.bf16.gmra.mrb[0].mxu0 %v663
      %v803 = vpop.f32.mrb[0].mxu0
      %v804 = vadd.f32 0.0, %v803
      %v805 = vpop.f32.mrb[0].mxu0
      %v806 = vpop.f32.mrb[0].mxu0
      %v807 = vadd.f32 0.0, %v806
      %v808 = vpop.f32.mrb[0].mxu0
      %809 = vmatprep.mubr.bf16.mxu0 0
      %810 = vmatmul.mubr.bf16.gmra.mrb[0].mxu0 %v666
      %v811 = vpop.f32.mrb[0].mxu0
      %v812 = vadd.f32 0.0, %v811
      %v813 = vpop.f32.mrb[0].mxu0
      %v814 = vpop.f32.mrb[0].mxu0
      %v815 = vadd.f32 0.0, %v814
      %v816 = vpop.f32.mrb[0].mxu0
      %817 = vmatprep.mubr.bf16.mxu0 0
      %818 = vmatmul.mubr.bf16.gmra.mrb[0].mxu0 %v669
      %v819 = vpop.f32.mrb[0].mxu0
      %v820 = vadd.f32 0.0, %v819
      %v821 = vpop.f32.mrb[0].mxu0
      %v822 = vpop.f32.mrb[0].mxu0
      %v823 = vadd.f32 0.0, %v822
      %v824 = vpop.f32.mrb[0].mxu0
      %825 = vmatprep.mubr.bf16.mxu0 0
      %826 = vmatmul.mubr.bf16.gmra.mrb[0].mxu0 %v672
      %v827 = vpop.f32.mrb[0].mxu0
      %v828 = vadd.f32 0.0, %v827
      %v829 = vpop.f32.mrb[0].mxu0
      %v830 = vpop.f32.mrb[0].mxu0
      %v831 = vadd.f32 0.0, %v830
      %v832 = vpop.f32.mrb[0].mxu0
      %833 = vmatprep.mubr.bf16.mxu0 0
      %834 = vmatmul.mubr.bf16.gmra.mrb[0].mxu0 %v675
      %v835 = vpop.f32.mrb[0].mxu0
      %v836 = vadd.f32 0.0, %v835
      %v837 = vpop.f32.mrb[0].mxu0
      %v838 = vpop.f32.mrb[0].mxu0
      %v839 = vadd.f32 0.0, %v838
      %v840 = vpop.f32.mrb[0].mxu0
      %841 = vdwg.mxu0
      %v843 = vsel %vm628, %v562, 0
      %v846 = vsel %vm628, %v563, 0
      %v849 = vsel %vm628, %v564, 0
      %v852 = vsel %vm628, %v565, 0
      %v855 = vsel %vm628, %v566, 0
      %v858 = vsel %vm628, %v567, 0
      %v861 = vsel %vm628, %v568, 0
      %v864 = vsel %vm628, %v569, 0
      %v867 = vsel %vm628, %v570, 0
      %v870 = vsel %vm628, %v571, 0
      %v873 = vsel %vm628, %v572, 0
      %v876 = vsel %vm628, %v573, 0
      %v879 = vsel %vm628, %v574, 0
      %v882 = vsel %vm628, %v575, 0
      %v885 = vsel %vm628, %v576, 0
      %v888 = vsel %vm628, %v577, 0
      %v891 = vsel %vm677, %v626, 0
      %893 = vmatprep.subr.bf16.mxu0 0
      %894 = vmatpush1.bf16.msra.mxu0 %v891
      %895 = vmatprep.subr.bf16.mxu0 0
      %896 = vmatpush1.bf16.msra.mxu0 0
      %897 = vmatprep.subr.bf16.mxu0 0
      %898 = vmatpush1.bf16.msra.mxu0 0
      %899 = vmatprep.subr.bf16.mxu0 0
      %900 = vmatpush1.bf16.msra.mxu0 0
      %901 = vmatprep.subr.bf16.mxu0 0
      %902 = vmatpush1.bf16.msra.mxu0 0
      %903 = vmatprep.subr.bf16.mxu0 0
      %904 = vmatpush1.bf16.msra.mxu0 0
      %905 = vmatprep.subr.bf16.mxu0 0
      %906 = vmatpush1.bf16.msra.mxu0 0
      %907 = vmatprep.subr.bf16.mxu0 0
      %908 = vmatpush1.bf16.msra.mxu0 0
      %909 = vmatprep.subr.bf16.mxu0 0
      %910 = vmatpush1.bf16.msra.mxu0 0
      %911 = vmatprep.subr.bf16.mxu0 0
      %912 = vmatpush1.bf16.msra.mxu0 0
      %913 = vmatprep.subr.bf16.mxu0 0
      %914 = vmatpush1.bf16.msra.mxu0 0
      %915 = vmatprep.subr.bf16.mxu0 0
      %916 = vmatpush1.bf16.msra.mxu0 0
      %917 = vmatprep.subr.bf16.mxu0 0
      %918 = vmatpush1.bf16.msra.mxu0 0
      %919 = vmatprep.subr.bf16.mxu0 0
      %920 = vmatpush1.bf16.msra.mxu0 0
      %921 = vmatprep.subr.bf16.mxu0 0
      %922 = vmatpush1.bf16.msra.mxu0 0
      %923 = vmatprep.subr.bf16.mxu0 0
      %924 = vmatpush1.bf16.msra.mxu0 0
      %925 = vmatprep.mubr.bf16.mxu0 0
      %926 = vmatmul.mubr.bf16.gmra.mrb[0].mxu0 %v843
      %v927 = vpop.f32.mrb[0].mxu0
      %v928 = vadd.f32 %v716, %v927
      %v929 = vpop.f32.mrb[0].mxu0
      %v930 = vpop.f32.mrb[0].mxu0
      %v931 = vadd.f32 %v719, %v930
      %v932 = vpop.f32.mrb[0].mxu0
      %933 = vmatprep.mubr.bf16.mxu0 0
      %934 = vmatmul.mubr.bf16.gmra.mrb[0].mxu0 %v846
      %v935 = vpop.f32.mrb[0].mxu0
      %v936 = vadd.f32 %v724, %v935
      %v937 = vpop.f32.mrb[0].mxu0
      %v938 = vpop.f32.mrb[0].mxu0
      %v939 = vadd.f32 %v727, %v938
      %v940 = vpop.f32.mrb[0].mxu0
      %941 = vmatprep.mubr.bf16.mxu0 0
      %942 = vmatmul.mubr.bf16.gmra.mrb[0].mxu0 %v849
      %v943 = vpop.f32.mrb[0].mxu0
      %v944 = vadd.f32 %v732, %v943
      %v945 = vpop.f32.mrb[0].mxu0
      %v946 = vpop.f32.mrb[0].mxu0
      %v947 = vadd.f32 %v735, %v946
      %v948 = vpop.f32.mrb[0].mxu0
      %949 = vmatprep.mubr.bf16.mxu0 0
      %950 = vmatmul.mubr.bf16.gmra.mrb[0].mxu0 %v852
      %v951 = vpop.f32.mrb[0].mxu0
      %v952 = vadd.f32 %v740, %v951
      %v953 = vpop.f32.mrb[0].mxu0
      %v954 = vpop.f32.mrb[0].mxu0
      %v955 = vadd.f32 %v743, %v954
      %v956 = vpop.f32.mrb[0].mxu0
      %957 = vmatprep.mubr.bf16.mxu0 0
      %958 = vmatmul.mubr.bf16.gmra.mrb[0].mxu0 %v855
      %v959 = vpop.f32.mrb[0].mxu0
      %v960 = vadd.f32 %v748, %v959
      %v961 = vpop.f32.mrb[0].mxu0
      %v962 = vpop.f32.mrb[0].mxu0
      %v963 = vadd.f32 %v751, %v962
      %v964 = vpop.f32.mrb[0].mxu0
      %965 = vmatprep.mubr.bf16.mxu0 0
      %966 = vmatmul.mubr.bf16.gmra.mrb[0].mxu0 %v858
      %v967 = vpop.f32.mrb[0].mxu0
      %v968 = vadd.f32 %v756, %v967
      %v969 = vpop.f32.mrb[0].mxu0
      %v970 = vpop.f32.mrb[0].mxu0
      %v971 = vadd.f32 %v759, %v970
      %v972 = vpop.f32.mrb[0].mxu0
      %973 = vmatprep.mubr.bf16.mxu0 0
      %974 = vmatmul.mubr.bf16.gmra.mrb[0].mxu0 %v861
      %v975 = vpop.f32.mrb[0].mxu0
      %v976 = vadd.f32 %v764, %v975
      %v977 = vpop.f32.mrb[0].mxu0
      %v978 = vpop.f32.mrb[0].mxu0
      %v979 = vadd.f32 %v767, %v978
      %v980 = vpop.f32.mrb[0].mxu0
      %981 = vmatprep.mubr.bf16.mxu0 0
      %982 = vmatmul.mubr.bf16.gmra.mrb[0].mxu0 %v864
      %v983 = vpop.f32.mrb[0].mxu0
      %v984 = vadd.f32 %v772, %v983
      %v985 = vpop.f32.mrb[0].mxu0
      %v986 = vpop.f32.mrb[0].mxu0
      %v987 = vadd.f32 %v775, %v986
      %v988 = vpop.f32.mrb[0].mxu0
      %989 = vmatprep.mubr.bf16.mxu0 0
      %990 = vmatmul.mubr.bf16.gmra.mrb[0].mxu0 %v867
      %v991 = vpop.f32.mrb[0].mxu0
      %v992 = vadd.f32 %v780, %v991
      %v993 = vpop.f32.mrb[0].mxu0
      %v994 = vpop.f32.mrb[0].mxu0
      %v995 = vadd.f32 %v783, %v994
      %v996 = vpop.f32.mrb[0].mxu0
      %997 = vmatprep.mubr.bf16.mxu0 0
      %998 = vmatmul.mubr.bf16.gmra.mrb[0].mxu0 %v870
      %v999 = vpop.f32.mrb[0].mxu0
      %v1000 = vadd.f32 %v788, %v999
      %v1001 = vpop.f32.mrb[0].mxu0
      %v1002 = vpop.f32.mrb[0].mxu0
      %v1003 = vadd.f32 %v791, %v1002
      %v1004 = vpop.f32.mrb[0].mxu0
      %1005 = vmatprep.mubr.bf16.mxu0 0
      %1006 = vmatmul.mubr.bf16.gmra.mrb[0].mxu0 %v873
      %v1007 = vpop.f32.mrb[0].mxu0
      %v1008 = vadd.f32 %v796, %v1007
      %v1009 = vpop.f32.mrb[0].mxu0
      %v1010 = vpop.f32.mrb[0].mxu0
      %v1011 = vadd.f32 %v799, %v1010
      %v1012 = vpop.f32.mrb[0].mxu0
      %1013 = vmatprep.mubr.bf16.mxu0 0
      %1014 = vmatmul.mubr.bf16.gmra.mrb[0].mxu0 %v876
      %v1015 = vpop.f32.mrb[0].mxu0
      %v1016 = vadd.f32 %v804, %v1015
      %v1017 = vpop.f32.mrb[0].mxu0
      %v1018 = vpop.f32.mrb[0].mxu0
      %v1019 = vadd.f32 %v807, %v1018
      %v1020 = vpop.f32.mrb[0].mxu0
      %1021 = vmatprep.mubr.bf16.mxu0 0
      %1022 = vmatmul.mubr.bf16.gmra.mrb[0].mxu0 %v879
      %v1023 = vpop.f32.mrb[0].mxu0
      %v1024 = vadd.f32 %v812, %v1023
      %v1025 = vpop.f32.mrb[0].mxu0
      %v1026 = vpop.f32.mrb[0].mxu0
      %v1027 = vadd.f32 %v815, %v1026
      %v1028 = vpop.f32.mrb[0].mxu0
      %1029 = vmatprep.mubr.bf16.mxu0 0
      %1030 = vmatmul.mubr.bf16.gmra.mrb[0].mxu0 %v882
      %v1031 = vpop.f32.mrb[0].mxu0
      %v1032 = vadd.f32 %v820, %v1031
      %v1033 = vpop.f32.mrb[0].mxu0
      %v1034 = vpop.f32.mrb[0].mxu0
      %v1035 = vadd.f32 %v823, %v1034
      %v1036 = vpop.f32.mrb[0].mxu0
      %1037 = vmatprep.mubr.bf16.mxu0 0
      %1038 = vmatmul.mubr.bf16.gmra.mrb[0].mxu0 %v885
      %v1039 = vpop.f32.mrb[0].mxu0
      %v1040 = vadd.f32 %v828, %v1039
      %v1041 = vpop.f32.mrb[0].mxu0
      %v1042 = vpop.f32.mrb[0].mxu0
      %v1043 = vadd.f32 %v831, %v1042
      %v1044 = vpop.f32.mrb[0].mxu0
      %1045 = vmatprep.mubr.bf16.mxu0 0
      %1046 = vmatmul.mubr.bf16.gmra.mrb[0].mxu0 %v888
      %v1047 = vpop.f32.mrb[0].mxu0
      %v1048 = vadd.f32 %v836, %v1047
      %v1049 = vpop.f32.mrb[0].mxu0
      %v1050 = vpop.f32.mrb[0].mxu0
      %v1051 = vadd.f32 %v839, %v1050
      %v1052 = vpop.f32.mrb[0].mxu0
      %1053 = vdwg.mxu0
      %v1054 = vld [vmem:[%s5] sm:$0x1]
      %v1056 = vlaneseq
      %v1057 = vshrl.u32 %v1056, 7
      %v1058 = vsub.s32 0, %v1057
      %v1059 = vrot.slane %v1054, %v1058
      %v1061 = vmul.f32 %v928, %v1059
      %v1062 = vmul.f32 %v931, %v1059
      %v1063 = vmul.f32 %v936, %v1059
      %v1064 = vmul.f32 %v939, %v1059
      %v1065 = vmul.f32 %v944, %v1059
      %v1066 = vmul.f32 %v947, %v1059
      %v1067 = vmul.f32 %v952, %v1059
      %v1068 = vmul.f32 %v955, %v1059
      %v1069 = vmul.f32 %v960, %v1059
      %v1070 = vmul.f32 %v963, %v1059
      %v1071 = vmul.f32 %v968, %v1059
      %v1072 = vmul.f32 %v971, %v1059
      %v1073 = vmul.f32 %v976, %v1059
      %v1074 = vmul.f32 %v979, %v1059
      %v1075 = vmul.f32 %v984, %v1059
      %v1076 = vmul.f32 %v987, %v1059
      %v1077 = vmul.f32 %v992, %v1059
      %v1078 = vmul.f32 %v995, %v1059
      %v1079 = vmul.f32 %v1000, %v1059
      %v1080 = vmul.f32 %v1003, %v1059
      %v1081 = vmul.f32 %v1008, %v1059
      %v1082 = vmul.f32 %v1011, %v1059
      %v1083 = vmul.f32 %v1016, %v1059
      %v1084 = vmul.f32 %v1019, %v1059
      %v1085 = vmul.f32 %v1024, %v1059
      %v1086 = vmul.f32 %v1027, %v1059
      %v1087 = vmul.f32 %v1032, %v1059
      %v1088 = vmul.f32 %v1035, %v1059
      %v1089 = vmul.f32 %v1040, %v1059
      %v1090 = vmul.f32 %v1043, %v1059
      %v1091 = vmul.f32 %v1048, %v1059
      %v1092 = vmul.f32 %v1051, %v1059
      %v1093 = vld [vmem:[%s6] sm:$0x1]
      %v1095 = vlaneseq
      %v1096 = vshrl.u32 %v1095, 7
      %v1097 = vsub.s32 0, %v1096
      %v1098 = vrot.slane %v1093, %v1097
      %v1100 = vadd.f32 %v1061, %v1098
      %v1101 = vadd.f32 %v1062, %v1098
      %v1102 = vadd.f32 %v1063, %v1098
      %v1103 = vadd.f32 %v1064, %v1098
      %v1104 = vadd.f32 %v1065, %v1098
      %v1105 = vadd.f32 %v1066, %v1098
      %v1106 = vadd.f32 %v1067, %v1098
      %v1107 = vadd.f32 %v1068, %v1098
      %v1108 = vadd.f32 %v1069, %v1098
      %v1109 = vadd.f32 %v1070, %v1098
      %v1110 = vadd.f32 %v1071, %v1098
      %v1111 = vadd.f32 %v1072, %v1098
      %v1112 = vadd.f32 %v1073, %v1098
      %v1113 = vadd.f32 %v1074, %v1098
      %v1114 = vadd.f32 %v1075, %v1098
      %v1115 = vadd.f32 %v1076, %v1098
      %v1116 = vadd.f32 %v1077, %v1098
      %v1117 = vadd.f32 %v1078, %v1098
      %v1118 = vadd.f32 %v1079, %v1098
      %v1119 = vadd.f32 %v1080, %v1098
      %v1120 = vadd.f32 %v1081, %v1098
      %v1121 = vadd.f32 %v1082, %v1098
      %v1122 = vadd.f32 %v1083, %v1098
      %v1123 = vadd.f32 %v1084, %v1098
      %v1124 = vadd.f32 %v1085, %v1098
      %v1125 = vadd.f32 %v1086, %v1098
      %v1126 = vadd.f32 %v1087, %v1098
      %v1127 = vadd.f32 %v1088, %v1098
      %v1128 = vadd.f32 %v1089, %v1098
      %v1129 = vadd.f32 %v1090, %v1098
      %v1130 = vadd.f32 %v1091, %v1098
      %v1131 = vadd.f32 %v1092, %v1098
      %v1132 = vmax.f32 %v1100, 0.0
      %v1133 = vmax.f32 %v1101, 0.0
      %v1134 = vmax.f32 %v1102, 0.0
      %v1135 = vmax.f32 %v1103, 0.0
      %v1136 = vmax.f32 %v1104, 0.0
      %v1137 = vmax.f32 %v1105, 0.0
      %v1138 = vmax.f32 %v1106, 0.0
      %v1139 = vmax.f32 %v1107, 0.0
      %v1140 = vmax.f32 %v1108, 0.0
      %v1141 = vmax.f32 %v1109, 0.0
      %v1142 = vmax.f32 %v1110, 0.0
      %v1143 = vmax.f32 %v1111, 0.0
      %v1144 = vmax.f32 %v1112, 0.0
      %v1145 = vmax.f32 %v1113, 0.0
      %v1146 = vmax.f32 %v1114, 0.0
      %v1147 = vmax.f32 %v1115, 0.0
      %v1148 = vmax.f32 %v1116, 0.0
      %v1149 = vmax.f32 %v1117, 0.0
      %v1150 = vmax.f32 %v1118, 0.0
      %v1151 = vmax.f32 %v1119, 0.0
      %v1152 = vmax.f32 %v1120, 0.0
      %v1153 = vmax.f32 %v1121, 0.0
      %v1154 = vmax.f32 %v1122, 0.0
      %v1155 = vmax.f32 %v1123, 0.0
      %v1156 = vmax.f32 %v1124, 0.0
      %v1157 = vmax.f32 %v1125, 0.0
      %v1158 = vmax.f32 %v1126, 0.0
      %v1159 = vmax.f32 %v1127, 0.0
      %v1160 = vmax.f32 %v1128, 0.0
      %v1161 = vmax.f32 %v1129, 0.0
      %v1162 = vmax.f32 %v1130, 0.0
      %v1163 = vmax.f32 %v1131, 0.0
      %s1164 = scalar_lea.vmem [#allocation2], 304
      %vm1165 = vcmask 64512
      %1166 = vst.msk [vmem:[%s1164] sm:$0xff] %vm1165, %v1132
      %1167 = vst.msk [vmem:[%s1164 + $0x8] sm:$0xff] %vm1165, %v1133
      %1168 = vst.msk [vmem:[%s1164 + $0x10] sm:$0xff] %vm1165, %v1134
      %1169 = vst.msk [vmem:[%s1164 + $0x18] sm:$0xff] %vm1165, %v1135
      %1170 = vst.msk [vmem:[%s1164 + $0x20] sm:$0xff] %vm1165, %v1136
      %1171 = vst.msk [vmem:[%s1164 + $0x28] sm:$0xff] %vm1165, %v1137
      %1172 = vst.msk [vmem:[%s1164 + $0x30] sm:$0xff] %vm1165, %v1138
      %1173 = vst.msk [vmem:[%s1164 + $0x38] sm:$0xff] %vm1165, %v1139
      %1174 = vst.msk [vmem:[%s1164 + $0x40] sm:$0xff] %vm1165, %v1140
      %1175 = vst.msk [vmem:[%s1164 + $0x48] sm:$0xff] %vm1165, %v1141
      %1176 = vst.msk [vmem:[%s1164 + $0x50] sm:$0xff] %vm1165, %v1142
      %1177 = vst.msk [vmem:[%s1164 + $0x58] sm:$0xff] %vm1165, %v1143
      %1178 = vst.msk [vmem:[%s1164 + $0x60] sm:$0xff] %vm1165, %v1144
      %1179 = vst.msk [vmem:[%s1164 + $0x68] sm:$0xff] %vm1165, %v1145
      %1180 = vst.msk [vmem:[%s1164 + $0x70] sm:$0xff] %vm1165, %v1146
      %1181 = vst.msk [vmem:[%s1164 + $0x78] sm:$0xff] %vm1165, %v1147
      %1182 = vst.msk [vmem:[%s1164 + $0x80] sm:$0xff] %vm1165, %v1148
      %1183 = vst.msk [vmem:[%s1164 + $0x88] sm:$0xff] %vm1165, %v1149
      %1184 = vst.msk [vmem:[%s1164 + $0x90] sm:$0xff] %vm1165, %v1150
      %1185 = vst.msk [vmem:[%s1164 + $0x98] sm:$0xff] %vm1165, %v1151
      %1186 = vst.msk [vmem:[%s1164 + $0xa0] sm:$0xff] %vm1165, %v1152
      %1187 = vst.msk [vmem:[%s1164 + $0xa8] sm:$0xff] %vm1165, %v1153
      %1188 = vst.msk [vmem:[%s1164 + $0xb0] sm:$0xff] %vm1165, %v1154
      %1189 = vst.msk [vmem:[%s1164 + $0xb8] sm:$0xff] %vm1165, %v1155
      %1190 = vst.msk [vmem:[%s1164 + $0xc0] sm:$0xff] %vm1165, %v1156
      %1191 = vst.msk [vmem:[%s1164 + $0xc8] sm:$0xff] %vm1165, %v1157
      %1192 = vst.msk [vmem:[%s1164 + $0xd0] sm:$0xff] %vm1165, %v1158
      %1193 = vst.msk [vmem:[%s1164 + $0xd8] sm:$0xff] %vm1165, %v1159
      %1194 = vst.msk [vmem:[%s1164 + $0xe0] sm:$0xff] %vm1165, %v1160
      %1195 = vst.msk [vmem:[%s1164 + $0xe8] sm:$0xff] %vm1165, %v1161
      %1196 = vst.msk [vmem:[%s1164 + $0xf0] sm:$0xff] %vm1165, %v1162
      %1197 = vst.msk [vmem:[%s1164 + $0xf8] sm:$0xff] %vm1165, %v1163
      %s1198 = scalar_lea.vmem [#allocation2], 288
      %1199 = vst.msk [vmem:[%s1198] sm:$0xff] %vm1165, 0.0
      %1200 = vst.msk [vmem:[%s1198 + $0x8] sm:$0xff] %vm1165, 0.0
      %s1201 = scalar_lea.vmem [#allocation2], 560
      %1202 = vst.msk [vmem:[%s1201] sm:$0xff] %vm1165, 0.0
      %1203 = vst.msk [vmem:[%s1201 + $0x8] sm:$0xff] %vm1165, 0.0
      %v1204 = vld [vmem:[%s1198] sm:$0xff]
      %v1205 = vld [vmem:[%s1198 + $0x8] sm:$0xff]
      %v1206 = vld [vmem:[%s1198 + $0x10] sm:$0xff]
      %v1207 = vld [vmem:[%s1198 + $0x18] sm:$0xff]
      %v1208 = vld [vmem:[%s1198 + $0x20] sm:$0xff]
      %v1209 = vld [vmem:[%s1198 + $0x28] sm:$0xff]
      %v1210 = vld [vmem:[%s1198 + $0x30] sm:$0xff]
      %v1211 = vld [vmem:[%s1198 + $0x38] sm:$0xff]
      %v1212 = vld [vmem:[%s1198 + $0x40] sm:$0xff]
      %v1213 = vld [vmem:[%s1198 + $0x48] sm:$0xff]
      %v1214 = vld [vmem:[%s1198 + $0x50] sm:$0xff]
      %v1215 = vld [vmem:[%s1198 + $0x58] sm:$0xff]
      %v1216 = vld [vmem:[%s1198 + $0x60] sm:$0xff]
      %v1217 = vld [vmem:[%s1198 + $0x68] sm:$0xff]
      %v1218 = vld [vmem:[%s1198 + $0x70] sm:$0xff]
      %v1219 = vld [vmem:[%s1198 + $0x78] sm:$0xff]
      %v1220 = vld [vmem:[%s1198 + $0x80] sm:$0xff]
      %v1221 = vld [vmem:[%s1198 + $0x88] sm:$0xff]
      %v1222 = vld [vmem:[%s1198 + $0x90] sm:$0xff]
      %v1223 = vld [vmem:[%s1198 + $0x98] sm:$0xff]
      %v1224 = vld [vmem:[%s1198 + $0xa0] sm:$0xff]
      %v1225 = vld [vmem:[%s1198 + $0xa8] sm:$0xff]
      %v1226 = vld [vmem:[%s1198 + $0xb0] sm:$0xff]
      %v1227 = vld [vmem:[%s1198 + $0xb8] sm:$0xff]
      %v1228 = vld [vmem:[%s1198 + $0xc0] sm:$0xff]
      %v1229 = vld [vmem:[%s1198 + $0xc8] sm:$0xff]
      %v1230 = vld [vmem:[%s1198 + $0xd0] sm:$0xff]
      %v1231 = vld [vmem:[%s1198 + $0xd8] sm:$0xff]
      %v1232 = vld [vmem:[%s1198 + $0xe0] sm:$0xff]
      %v1233 = vld [vmem:[%s1198 + $0xe8] sm:$0xff]
      %v1234 = vld [vmem:[%s1198 + $0xf0] sm:$0xff]
      %v1235 = vld [vmem:[%s1198 + $0xf8] sm:$0xff]
      %v1236 = vld [vmem:[%s1198 + $0x100] sm:$0xff]
      %v1237 = vld [vmem:[%s1198 + $0x108] sm:$0xff]
      %v1238 = vld [vmem:[%s1198 + $0x110] sm:$0xff]
      %v1239 = vld [vmem:[%s1198 + $0x118] sm:$0xff]
      %vm1240 = vcmp.eq.s32.totalorder %v402, 0
      %vm1241 = vcmp.eq.s32.totalorder %v403, 0
      %v1242 = vrot.slane %v1204, 7
      %v1243 = vrot.slane %v1206, 7
      %v1244 = vrot.slane %v1208, 7
      %v1245 = vrot.slane %v1210, 7
      %v1246 = vrot.slane %v1212, 7
      %v1247 = vrot.slane %v1214, 7
      %v1248 = vrot.slane %v1216, 7
      %v1249 = vrot.slane %v1218, 7
      %v1250 = vrot.slane %v1220, 7
      %v1251 = vrot.slane %v1222, 7
      %v1252 = vrot.slane %v1224, 7
      %v1253 = vrot.slane %v1226, 7
      %v1254 = vrot.slane %v1228, 7
      %v1255 = vrot.slane %v1230, 7
      %v1256 = vrot.slane %v1232, 7
      %v1257 = vrot.slane %v1234, 7
      %v1258 = vrot.slane %v1236, 7
      %v1259 = vrot.slane %v1238, 7
      %v1260 = vrot.slane %v1205, 7
      %v1261 = vrot.slane %v1207, 7
      %v1262 = vrot.slane %v1209, 7
      %v1263 = vrot.slane %v1211, 7
      %v1264 = vrot.slane %v1213, 7
      %v1265 = vrot.slane %v1215, 7
      %v1266 = vrot.slane %v1217, 7
      %v1267 = vrot.slane %v1219, 7
      %v1268 = vrot.slane %v1221, 7
      %v1269 = vrot.slane %v1223, 7
      %v1270 = vrot.slane %v1225, 7
      %v1271 = vrot.slane %v1227, 7
      %v1272 = vrot.slane %v1229, 7
      %v1273 = vrot.slane %v1231, 7
      %v1274 = vrot.slane %v1233, 7
      %v1275 = vrot.slane %v1235, 7
      %v1276 = vrot.slane %v1237, 7
      %v1277 = vrot.slane %v1239, 7
      %vm1278 = vcmp.lt.s32.totalorder %v402, 1
      %v1279 = vsel %vm1278, %v1242, %v1260
      %v1280 = vsel %vm1278, %v1243, %v1261
      %v1281 = vsel %vm1278, %v1244, %v1262
      %v1282 = vsel %vm1278, %v1245, %v1263
      %v1283 = vsel %vm1278, %v1246, %v1264
      %v1284 = vsel %vm1278, %v1247, %v1265
      %v1285 = vsel %vm1278, %v1248, %v1266
      %v1286 = vsel %vm1278, %v1249, %v1267
      %v1287 = vsel %vm1278, %v1250, %v1268
      %v1288 = vsel %vm1278, %v1251, %v1269
      %v1289 = vsel %vm1278, %v1252, %v1270
      %v1290 = vsel %vm1278, %v1253, %v1271
      %v1291 = vsel %vm1278, %v1254, %v1272
      %v1292 = vsel %vm1278, %v1255, %v1273
      %v1293 = vsel %vm1278, %v1256, %v1274
      %v1294 = vsel %vm1278, %v1257, %v1275
      %v1295 = vsel %vm1278, %v1258, %v1276
      %v1296 = vsel %vm1278, %v1259, %v1277
      %v1297 = vsel %vm1278, %v1260, %v1242
      %v1298 = vsel %vm1278, %v1261, %v1243
      %v1299 = vsel %vm1278, %v1262, %v1244
      %v1300 = vsel %vm1278, %v1263, %v1245
      %v1301 = vsel %vm1278, %v1264, %v1246
      %v1302 = vsel %vm1278, %v1265, %v1247
      %v1303 = vsel %vm1278, %v1266, %v1248
      %v1304 = vsel %vm1278, %v1267, %v1249
      %v1305 = vsel %vm1278, %v1268, %v1250
      %v1306 = vsel %vm1278, %v1269, %v1251
      %v1307 = vsel %vm1278, %v1270, %v1252
      %v1308 = vsel %vm1278, %v1271, %v1253
      %v1309 = vsel %vm1278, %v1272, %v1254
      %v1310 = vsel %vm1278, %v1273, %v1255
      %v1311 = vsel %vm1278, %v1274, %v1256
      %v1312 = vsel %vm1278, %v1275, %v1257
      %v1313 = vsel %vm1278, %v1276, %v1258
      %v1314 = vsel %vm1278, %v1277, %v1259
      %v1315 = vsel %vm1240, 0.0, %v1297
      %v1316 = vsel %vm1241, 0.0, %v1279
      %v1317 = vsel %vm1240, 0.0, %v1298
      %v1318 = vsel %vm1241, 0.0, %v1280
      %v1319 = vsel %vm1240, 0.0, %v1299
      %v1320 = vsel %vm1241, 0.0, %v1281
      %v1321 = vsel %vm1240, 0.0, %v1300
      %v1322 = vsel %vm1241, 0.0, %v1282
      %v1323 = vsel %vm1240, 0.0, %v1301
      %v1324 = vsel %vm1241, 0.0, %v1283
      %v1325 = vsel %vm1240, 0.0, %v1302
      %v1326 = vsel %vm1241, 0.0, %v1284
      %v1327 = vsel %vm1240, 0.0, %v1303
      %v1328 = vsel %vm1241, 0.0, %v1285
      %v1329 = vsel %vm1240, 0.0, %v1304
      %v1330 = vsel %vm1241, 0.0, %v1286
      %v1331 = vsel %vm1240, 0.0, %v1305
      %v1332 = vsel %vm1241, 0.0, %v1287
      %v1333 = vsel %vm1240, 0.0, %v1306
      %v1334 = vsel %vm1241, 0.0, %v1288
      %v1335 = vsel %vm1240, 0.0, %v1307
      %v1336 = vsel %vm1241, 0.0, %v1289
      %v1337 = vsel %vm1240, 0.0, %v1308
      %v1338 = vsel %vm1241, 0.0, %v1290
      %v1339 = vsel %vm1240, 0.0, %v1309
      %v1340 = vsel %vm1241, 0.0, %v1291
      %v1341 = vsel %vm1240, 0.0, %v1310
      %v1342 = vsel %vm1241, 0.0, %v1292
      %v1343 = vsel %vm1240, 0.0, %v1311
      %v1344 = vsel %vm1241, 0.0, %v1293
      %v1345 = vsel %vm1240, 0.0, %v1312
      %v1346 = vsel %vm1241, 0.0, %v1294
      %v1347 = vsel %vm1240, 0.0, %v1313
      %v1348 = vsel %vm1241, 0.0, %v1295
      %v1349 = vsel %vm1240, 0.0, %v1314
      %v1350 = vsel %vm1241, 0.0, %v1296
      %1351 = vst.msk [vmem:[#allocation2] sm:$0xff] %vm1165, %v1315
      %1352 = vst.msk [vmem:[#allocation2 + $0x8] sm:$0xff] %vm1165, %v1316
      %1353 = vst.msk [vmem:[#allocation2 + $0x10] sm:$0xff] %vm1165, %v1317
      %1354 = vst.msk [vmem:[#allocation2 + $0x18] sm:$0xff] %vm1165, %v1318
      %1355 = vst.msk [vmem:[#allocation2 + $0x20] sm:$0xff] %vm1165, %v1319
      %1356 = vst.msk [vmem:[#allocation2 + $0x28] sm:$0xff] %vm1165, %v1320
      %1357 = vst.msk [vmem:[#allocation2 + $0x30] sm:$0xff] %vm1165, %v1321
      %1358 = vst.msk [vmem:[#allocation2 + $0x38] sm:$0xff] %vm1165, %v1322
      %1359 = vst.msk [vmem:[#allocation2 + $0x40] sm:$0xff] %vm1165, %v1323
      %1360 = vst.msk [vmem:[#allocation2 + $0x48] sm:$0xff] %vm1165, %v1324
      %1361 = vst.msk [vmem:[#allocation2 + $0x50] sm:$0xff] %vm1165, %v1325
      %1362 = vst.msk [vmem:[#allocation2 + $0x58] sm:$0xff] %vm1165, %v1326
      %1363 = vst.msk [vmem:[#allocation2 + $0x60] sm:$0xff] %vm1165, %v1327
      %1364 = vst.msk [vmem:[#allocation2 + $0x68] sm:$0xff] %vm1165, %v1328
      %1365 = vst.msk [vmem:[#allocation2 + $0x70] sm:$0xff] %vm1165, %v1329
      %1366 = vst.msk [vmem:[#allocation2 + $0x78] sm:$0xff] %vm1165, %v1330
      %1367 = vst.msk [vmem:[#allocation2 + $0x80] sm:$0xff] %vm1165, %v1331
      %1368 = vst.msk [vmem:[#allocation2 + $0x88] sm:$0xff] %vm1165, %v1332
      %1369 = vst.msk [vmem:[#allocation2 + $0x90] sm:$0xff] %vm1165, %v1333
      %1370 = vst.msk [vmem:[#allocation2 + $0x98] sm:$0xff] %vm1165, %v1334
      %1371 = vst.msk [vmem:[#allocation2 + $0xa0] sm:$0xff] %vm1165, %v1335
      %1372 = vst.msk [vmem:[#allocation2 + $0xa8] sm:$0xff] %vm1165, %v1336
      %1373 = vst.msk [vmem:[#allocation2 + $0xb0] sm:$0xff] %vm1165, %v1337
      %1374 = vst.msk [vmem:[#allocation2 + $0xb8] sm:$0xff] %vm1165, %v1338
      %1375 = vst.msk [vmem:[#allocation2 + $0xc0] sm:$0xff] %vm1165, %v1339
      %1376 = vst.msk [vmem:[#allocation2 + $0xc8] sm:$0xff] %vm1165, %v1340
      %1377 = vst.msk [vmem:[#allocation2 + $0xd0] sm:$0xff] %vm1165, %v1341
      %1378 = vst.msk [vmem:[#allocation2 + $0xd8] sm:$0xff] %vm1165, %v1342
      %1379 = vst.msk [vmem:[#allocation2 + $0xe0] sm:$0xff] %vm1165, %v1343
      %1380 = vst.msk [vmem:[#allocation2 + $0xe8] sm:$0xff] %vm1165, %v1344
      %1381 = vst.msk [vmem:[#allocation2 + $0xf0] sm:$0xff] %vm1165, %v1345
      %1382 = vst.msk [vmem:[#allocation2 + $0xf8] sm:$0xff] %vm1165, %v1346
      %1383 = vst.msk [vmem:[#allocation2 + $0x100] sm:$0xff] %vm1165, %v1347
      %1384 = vst.msk [vmem:[#allocation2 + $0x108] sm:$0xff] %vm1165, %v1348
      %1385 = vst.msk [vmem:[#allocation2 + $0x110] sm:$0xff] %vm1165, %v1349
      %1386 = vst.msk [vmem:[#allocation2 + $0x118] sm:$0xff] %vm1165, %v1350
      %vm1387 = vcmp.eq.s32.totalorder %v402, 15
      %vm1388 = vcmp.eq.s32.totalorder %v403, 15
      %v1389 = vrot.slane %v1204, 1
      %v1390 = vrot.slane %v1206, 1
      %v1391 = vrot.slane %v1208, 1
      %v1392 = vrot.slane %v1210, 1
      %v1393 = vrot.slane %v1212, 1
      %v1394 = vrot.slane %v1214, 1
      %v1395 = vrot.slane %v1216, 1
      %v1396 = vrot.slane %v1218, 1
      %v1397 = vrot.slane %v1220, 1
      %v1398 = vrot.slane %v1222, 1
      %v1399 = vrot.slane %v1224, 1
      %v1400 = vrot.slane %v1226, 1
      %v1401 = vrot.slane %v1228, 1
      %v1402 = vrot.slane %v1230, 1
      %v1403 = vrot.slane %v1232, 1
      %v1404 = vrot.slane %v1234, 1
      %v1405 = vrot.slane %v1236, 1
      %v1406 = vrot.slane %v1238, 1
      %v1407 = vrot.slane %v1205, 1
      %v1408 = vrot.slane %v1207, 1
      %v1409 = vrot.slane %v1209, 1
      %v1410 = vrot.slane %v1211, 1
      %v1411 = vrot.slane %v1213, 1
      %v1412 = vrot.slane %v1215, 1
      %v1413 = vrot.slane %v1217, 1
      %v1414 = vrot.slane %v1219, 1
      %v1415 = vrot.slane %v1221, 1
      %v1416 = vrot.slane %v1223, 1
      %v1417 = vrot.slane %v1225, 1
      %v1418 = vrot.slane %v1227, 1
      %v1419 = vrot.slane %v1229, 1
      %v1420 = vrot.slane %v1231, 1
      %v1421 = vrot.slane %v1233, 1
      %v1422 = vrot.slane %v1235, 1
      %v1423 = vrot.slane %v1237, 1
      %v1424 = vrot.slane %v1239, 1
      %vm1425 = vcmp.lt.s32.totalorder %v402, 7
      %v1426 = vsel %vm1425, %v1389, %v1407
      %v1427 = vsel %vm1425, %v1390, %v1408
      %v1428 = vsel %vm1425, %v1391, %v1409
      %v1429 = vsel %vm1425, %v1392, %v1410
      %v1430 = vsel %vm1425, %v1393, %v1411
      %v1431 = vsel %vm1425, %v1394, %v1412
      %v1432 = vsel %vm1425, %v1395, %v1413
      %v1433 = vsel %vm1425, %v1396, %v1414
      %v1434 = vsel %vm1425, %v1397, %v1415
      %v1435 = vsel %vm1425, %v1398, %v1416
      %v1436 = vsel %vm1425, %v1399, %v1417
      %v1437 = vsel %vm1425, %v1400, %v1418
      %v1438 = vsel %vm1425, %v1401, %v1419
      %v1439 = vsel %vm1425, %v1402, %v1420
      %v1440 = vsel %vm1425, %v1403, %v1421
      %v1441 = vsel %vm1425, %v1404, %v1422
      %v1442 = vsel %vm1425, %v1405, %v1423
      %v1443 = vsel %vm1425, %v1406, %v1424
      %v1444 = vsel %vm1425, %v1407, %v1389
      %v1445 = vsel %vm1425, %v1408, %v1390
      %v1446 = vsel %vm1425, %v1409, %v1391
      %v1447 = vsel %vm1425, %v1410, %v1392
      %v1448 = vsel %vm1425, %v1411, %v1393
      %v1449 = vsel %vm1425, %v1412, %v1394
      %v1450 = vsel %vm1425, %v1413, %v1395
      %v1451 = vsel %vm1425, %v1414, %v1396
      %v1452 = vsel %vm1425, %v1415, %v1397
      %v1453 = vsel %vm1425, %v1416, %v1398
      %v1454 = vsel %vm1425, %v1417, %v1399
      %v1455 = vsel %vm1425, %v1418, %v1400
      %v1456 = vsel %vm1425, %v1419, %v1401
      %v1457 = vsel %vm1425, %v1420, %v1402
      %v1458 = vsel %vm1425, %v1421, %v1403
      %v1459 = vsel %vm1425, %v1422, %v1404
      %v1460 = vsel %vm1425, %v1423, %v1405
      %v1461 = vsel %vm1425, %v1424, %v1406
      %v1462 = vsel %vm1387, 0.0, %v1426
      %v1463 = vsel %vm1388, 0.0, %v1444
      %v1464 = vsel %vm1387, 0.0, %v1427
      %v1465 = vsel %vm1388, 0.0, %v1445
      %v1466 = vsel %vm1387, 0.0, %v1428
      %v1467 = vsel %vm1388, 0.0, %v1446
      %v1468 = vsel %vm1387, 0.0, %v1429
      %v1469 = vsel %vm1388, 0.0, %v1447
      %v1470 = vsel %vm1387, 0.0, %v1430
      %v1471 = vsel %vm1388, 0.0, %v1448
      %v1472 = vsel %vm1387, 0.0, %v1431
      %v1473 = vsel %vm1388, 0.0, %v1449
      %v1474 = vsel %vm1387, 0.0, %v1432
      %v1475 = vsel %vm1388, 0.0, %v1450
      %v1476 = vsel %vm1387, 0.0, %v1433
      %v1477 = vsel %vm1388, 0.0, %v1451
      %v1478 = vsel %vm1387, 0.0, %v1434
      %v1479 = vsel %vm1388, 0.0, %v1452
      %v1480 = vsel %vm1387, 0.0, %v1435
      %v1481 = vsel %vm1388, 0.0, %v1453
      %v1482 = vsel %vm1387, 0.0, %v1436
      %v1483 = vsel %vm1388, 0.0, %v1454
      %v1484 = vsel %vm1387, 0.0, %v1437
      %v1485 = vsel %vm1388, 0.0, %v1455
      %v1486 = vsel %vm1387, 0.0, %v1438
      %v1487 = vsel %vm1388, 0.0, %v1456
      %v1488 = vsel %vm1387, 0.0, %v1439
      %v1489 = vsel %vm1388, 0.0, %v1457
      %v1490 = vsel %vm1387, 0.0, %v1440
      %v1491 = vsel %vm1388, 0.0, %v1458
      %v1492 = vsel %vm1387, 0.0, %v1441
      %v1493 = vsel %vm1388, 0.0, %v1459
      %v1494 = vsel %vm1387, 0.0, %v1442
      %v1495 = vsel %vm1388, 0.0, %v1460
      %v1496 = vsel %vm1387, 0.0, %v1443
      %v1497 = vsel %vm1388, 0.0, %v1461
      %s1498 = scalar_lea.vmem [#allocation2], 576
      %1499 = vst.msk [vmem:[%s1498] sm:$0xff] %vm1165, %v1462
      %1500 = vst.msk [vmem:[%s1498 + $0x8] sm:$0xff] %vm1165, %v1463
      %1501 = vst.msk [vmem:[%s1498 + $0x10] sm:$0xff] %vm1165, %v1464
      %1502 = vst.msk [vmem:[%s1498 + $0x18] sm:$0xff] %vm1165, %v1465
      %1503 = vst.msk [vmem:[%s1498 + $0x20] sm:$0xff] %vm1165, %v1466
      %1504 = vst.msk [vmem:[%s1498 + $0x28] sm:$0xff] %vm1165, %v1467
      %1505 = vst.msk [vmem:[%s1498 + $0x30] sm:$0xff] %vm1165, %v1468
      %1506 = vst.msk [vmem:[%s1498 + $0x38] sm:$0xff] %vm1165, %v1469
      %1507 = vst.msk [vmem:[%s1498 + $0x40] sm:$0xff] %vm1165, %v1470
      %1508 = vst.msk [vmem:[%s1498 + $0x48] sm:$0xff] %vm1165, %v1471
      %1509 = vst.msk [vmem:[%s1498 + $0x50] sm:$0xff] %vm1165, %v1472
      %1510 = vst.msk [vmem:[%s1498 + $0x58] sm:$0xff] %vm1165, %v1473
      %1511 = vst.msk [vmem:[%s1498 + $0x60] sm:$0xff] %vm1165, %v1474
      %1512 = vst.msk [vmem:[%s1498 + $0x68] sm:$0xff] %vm1165, %v1475
      %1513 = vst.msk [vmem:[%s1498 + $0x70] sm:$0xff] %vm1165, %v1476
      %1514 = vst.msk [vmem:[%s1498 + $0x78] sm:$0xff] %vm1165, %v1477
      %1515 = vst.msk [vmem:[%s1498 + $0x80] sm:$0xff] %vm1165, %v1478
      %1516 = vst.msk [vmem:[%s1498 + $0x88] sm:$0xff] %vm1165, %v1479
      %1517 = vst.msk [vmem:[%s1498 + $0x90] sm:$0xff] %vm1165, %v1480
      %1518 = vst.msk [vmem:[%s1498 + $0x98] sm:$0xff] %vm1165, %v1481
      %1519 = vst.msk [vmem:[%s1498 + $0xa0] sm:$0xff] %vm1165, %v1482
      %1520 = vst.msk [vmem:[%s1498 + $0xa8] sm:$0xff] %vm1165, %v1483
      %1521 = vst.msk [vmem:[%s1498 + $0xb0] sm:$0xff] %vm1165, %v1484
      %1522 = vst.msk [vmem:[%s1498 + $0xb8] sm:$0xff] %vm1165, %v1485
      %1523 = vst.msk [vmem:[%s1498 + $0xc0] sm:$0xff] %vm1165, %v1486
      %1524 = vst.msk [vmem:[%s1498 + $0xc8] sm:$0xff] %vm1165, %v1487
      %1525 = vst.msk [vmem:[%s1498 + $0xd0] sm:$0xff] %vm1165, %v1488
      %1526 = vst.msk [vmem:[%s1498 + $0xd8] sm:$0xff] %vm1165, %v1489
      %1527 = vst.msk [vmem:[%s1498 + $0xe0] sm:$0xff] %vm1165, %v1490
      %1528 = vst.msk [vmem:[%s1498 + $0xe8] sm:$0xff] %vm1165, %v1491
      %1529 = vst.msk [vmem:[%s1498 + $0xf0] sm:$0xff] %vm1165, %v1492
      %1530 = vst.msk [vmem:[%s1498 + $0xf8] sm:$0xff] %vm1165, %v1493
      %1531 = vst.msk [vmem:[%s1498 + $0x100] sm:$0xff] %vm1165, %v1494
      %1532 = vst.msk [vmem:[%s1498 + $0x108] sm:$0xff] %vm1165, %v1495
      %1533 = vst.msk [vmem:[%s1498 + $0x110] sm:$0xff] %vm1165, %v1496
      %1534 = vst.msk [vmem:[%s1498 + $0x118] sm:$0xff] %vm1165, %v1497
      %1535 = vst.msk [vmem:[#allocation3] sm:$0xff] %vm1165, 0.0
      %1536 = vst.msk [vmem:[#allocation3 + $0x8] sm:$0xff] %vm1165, 0.0
      %1537 = vst.msk [vmem:[#allocation3 + $0x10] sm:$0xff] %vm1165, 0.0
      %1538 = vst.msk [vmem:[#allocation3 + $0x18] sm:$0xff] %vm1165, 0.0
      %1539 = vst.msk [vmem:[#allocation3 + $0x20] sm:$0xff] %vm1165, 0.0
      %1540 = vst.msk [vmem:[#allocation3 + $0x28] sm:$0xff] %vm1165, 0.0
      %1541 = vst.msk [vmem:[#allocation3 + $0x30] sm:$0xff] %vm1165, 0.0
      %1542 = vst.msk [vmem:[#allocation3 + $0x38] sm:$0xff] %vm1165, 0.0
      %1543 = vst.msk [vmem:[#allocation3 + $0x40] sm:$0xff] %vm1165, 0.0
      %1544 = vst.msk [vmem:[#allocation3 + $0x48] sm:$0xff] %vm1165, 0.0
      %1545 = vst.msk [vmem:[#allocation3 + $0x50] sm:$0xff] %vm1165, 0.0
      %1546 = vst.msk [vmem:[#allocation3 + $0x58] sm:$0xff] %vm1165, 0.0
      %1547 = vst.msk [vmem:[#allocation3 + $0x60] sm:$0xff] %vm1165, 0.0
      %1548 = vst.msk [vmem:[#allocation3 + $0x68] sm:$0xff] %vm1165, 0.0
      %1549 = vst.msk [vmem:[#allocation3 + $0x70] sm:$0xff] %vm1165, 0.0
      %1550 = vst.msk [vmem:[#allocation3 + $0x78] sm:$0xff] %vm1165, 0.0
      %1551 = vst.msk [vmem:[#allocation3 + $0x80] sm:$0xff] %vm1165, 0.0
      %1552 = vst.msk [vmem:[#allocation3 + $0x88] sm:$0xff] %vm1165, 0.0
      %1553 = vst.msk [vmem:[#allocation3 + $0x90] sm:$0xff] %vm1165, 0.0
      %1554 = vst.msk [vmem:[#allocation3 + $0x98] sm:$0xff] %vm1165, 0.0
      %1555 = vst.msk [vmem:[#allocation3 + $0xa0] sm:$0xff] %vm1165, 0.0
      %1556 = vst.msk [vmem:[#allocation3 + $0xa8] sm:$0xff] %vm1165, 0.0
      %1557 = vst.msk [vmem:[#allocation3 + $0xb0] sm:$0xff] %vm1165, 0.0
      %1558 = vst.msk [vmem:[#allocation3 + $0xb8] sm:$0xff] %vm1165, 0.0
      %1559 = vst.msk [vmem:[#allocation3 + $0xc0] sm:$0xff] %vm1165, 0.0
      %1560 = vst.msk [vmem:[#allocation3 + $0xc8] sm:$0xff] %vm1165, 0.0
      %1561 = vst.msk [vmem:[#allocation3 + $0xd0] sm:$0xff] %vm1165, 0.0
      %1562 = vst.msk [vmem:[#allocation3 + $0xd8] sm:$0xff] %vm1165, 0.0
      %1563 = vst.msk [vmem:[#allocation3 + $0xe0] sm:$0xff] %vm1165, 0.0
      %1564 = vst.msk [vmem:[#allocation3 + $0xe8] sm:$0xff] %vm1165, 0.0
      %1565 = vst.msk [vmem:[#allocation3 + $0xf0] sm:$0xff] %vm1165, 0.0
      %1566 = vst.msk [vmem:[#allocation3 + $0xf8] sm:$0xff] %vm1165, 0.0
      %v1567 = vld [vmem:[#allocation2] sm:$0xff]
      %v1568 = vld [vmem:[#allocation2 + $0x8] sm:$0xff]
      %v1569 = vld [vmem:[#allocation2 + $0x10] sm:$0xff]
      %v1570 = vld [vmem:[#allocation2 + $0x18] sm:$0xff]
      %v1571 = vld [vmem:[#allocation2 + $0x20] sm:$0xff]
      %v1572 = vld [vmem:[#allocation2 + $0x28] sm:$0xff]
      %v1573 = vld [vmem:[#allocation2 + $0x30] sm:$0xff]
      %v1574 = vld [vmem:[#allocation2 + $0x38] sm:$0xff]
      %v1575 = vld [vmem:[#allocation2 + $0x40] sm:$0xff]
      %v1576 = vld [vmem:[#allocation2 + $0x48] sm:$0xff]
      %v1577 = vld [vmem:[#allocation2 + $0x50] sm:$0xff]
      %v1578 = vld [vmem:[#allocation2 + $0x58] sm:$0xff]
      %v1579 = vld [vmem:[#allocation2 + $0x60] sm:$0xff]
      %v1580 = vld [vmem:[#allocation2 + $0x68] sm:$0xff]
      %v1581 = vld [vmem:[#allocation2 + $0x70] sm:$0xff]
      %v1582 = vld [vmem:[#allocation2 + $0x78] sm:$0xff]
      %v1583 = vld [vmem:[#allocation2 + $0x80] sm:$0xff]
      %v1584 = vld [vmem:[#allocation2 + $0x88] sm:$0xff]
      %v1585 = vld [vmem:[#allocation2 + $0x90] sm:$0xff]
      %v1586 = vld [vmem:[#allocation2 + $0x98] sm:$0xff]
      %v1587 = vld [vmem:[#allocation2 + $0xa0] sm:$0xff]
      %v1588 = vld [vmem:[#allocation2 + $0xa8] sm:$0xff]
      %v1589 = vld [vmem:[#allocation2 + $0xb0] sm:$0xff]
      %v1590 = vld [vmem:[#allocation2 + $0xb8] sm:$0xff]
      %v1591 = vld [vmem:[#allocation2 + $0xc0] sm:$0xff]
      %v1592 = vld [vmem:[#allocation2 + $0xc8] sm:$0xff]
      %v1593 = vld [vmem:[#allocation2 + $0xd0] sm:$0xff]
      %v1594 = vld [vmem:[#allocation2 + $0xd8] sm:$0xff]
      %v1595 = vld [vmem:[#allocation2 + $0xe0] sm:$0xff]
      %v1596 = vld [vmem:[#allocation2 + $0xe8] sm:$0xff]
      %v1597 = vld [vmem:[#allocation2 + $0xf0] sm:$0xff]
      %v1598 = vld [vmem:[#allocation2 + $0xf8] sm:$0xff]
      %v1599 = vld [vmem:[#allocation3] sm:$0xff]
      %v1600 = vld [vmem:[#allocation3 + $0x8] sm:$0xff]
      %v1601 = vld [vmem:[#allocation3 + $0x10] sm:$0xff]
      %v1602 = vld [vmem:[#allocation3 + $0x18] sm:$0xff]
      %v1603 = vld [vmem:[#allocation3 + $0x20] sm:$0xff]
      %v1604 = vld [vmem:[#allocation3 + $0x28] sm:$0xff]
      %v1605 = vld [vmem:[#allocation3 + $0x30] sm:$0xff]
      %v1606 = vld [vmem:[#allocation3 + $0x38] sm:$0xff]
      %v1607 = vld [vmem:[#allocation3 + $0x40] sm:$0xff]
      %v1608 = vld [vmem:[#allocation3 + $0x48] sm:$0xff]
      %v1609 = vld [vmem:[#allocation3 + $0x50] sm:$0xff]
      %v1610 = vld [vmem:[#allocation3 + $0x58] sm:$0xff]
      %v1611 = vld [vmem:[#allocation3 + $0x60] sm:$0xff]
      %v1612 = vld [vmem:[#allocation3 + $0x68] sm:$0xff]
      %v1613 = vld [vmem:[#allocation3 + $0x70] sm:$0xff]
      %v1614 = vld [vmem:[#allocation3 + $0x78] sm:$0xff]
      %v1615 = vld [vmem:[#allocation3 + $0x80] sm:$0xff]
      %v1616 = vld [vmem:[#allocation3 + $0x88] sm:$0xff]
      %v1617 = vld [vmem:[#allocation3 + $0x90] sm:$0xff]
      %v1618 = vld [vmem:[#allocation3 + $0x98] sm:$0xff]
      %v1619 = vld [vmem:[#allocation3 + $0xa0] sm:$0xff]
      %v1620 = vld [vmem:[#allocation3 + $0xa8] sm:$0xff]
      %v1621 = vld [vmem:[#allocation3 + $0xb0] sm:$0xff]
      %v1622 = vld [vmem:[#allocation3 + $0xb8] sm:$0xff]
      %v1623 = vld [vmem:[#allocation3 + $0xc0] sm:$0xff]
      %v1624 = vld [vmem:[#allocation3 + $0xc8] sm:$0xff]
      %v1625 = vld [vmem:[#allocation3 + $0xd0] sm:$0xff]
      %v1626 = vld [vmem:[#allocation3 + $0xd8] sm:$0xff]
      %v1627 = vld [vmem:[#allocation3 + $0xe0] sm:$0xff]
      %v1628 = vld [vmem:[#allocation3 + $0xe8] sm:$0xff]
      %v1629 = vld [vmem:[#allocation3 + $0xf0] sm:$0xff]
      %v1630 = vld [vmem:[#allocation3 + $0xf8] sm:$0xff]
      %v1631 = vpack.c.bf16 %v1568, %v1567
      %v1632 = vpack.c.bf16 %v1570, %v1569
      %v1633 = vpack.c.bf16 %v1572, %v1571
      %v1634 = vpack.c.bf16 %v1574, %v1573
      %v1635 = vpack.c.bf16 %v1576, %v1575
      %v1636 = vpack.c.bf16 %v1578, %v1577
      %v1637 = vpack.c.bf16 %v1580, %v1579
      %v1638 = vpack.c.bf16 %v1582, %v1581
      %v1639 = vpack.c.bf16 %v1584, %v1583
      %v1640 = vpack.c.bf16 %v1586, %v1585
      %v1641 = vpack.c.bf16 %v1588, %v1587
      %v1642 = vpack.c.bf16 %v1590, %v1589
      %v1643 = vpack.c.bf16 %v1592, %v1591
      %v1644 = vpack.c.bf16 %v1594, %v1593
      %v1645 = vpack.c.bf16 %v1596, %v1595
      %v1646 = vpack.c.bf16 %v1598, %v1597
      %v1647 = vld [vmem:[%s7] sm:$0xf]
      %v1649 = vsel %vm1165, %v1631, 0
      %v1652 = vsel %vm1165, %v1632, 0
      %v1655 = vsel %vm1165, %v1633, 0
      %v1658 = vsel %vm1165, %v1634, 0
      %v1661 = vsel %vm1165, %v1635, 0
      %v1664 = vsel %vm1165, %v1636, 0
      %v1667 = vsel %vm1165, %v1637, 0
      %v1670 = vsel %vm1165, %v1638, 0
      %v1673 = vsel %vm1165, %v1639, 0
      %v1676 = vsel %vm1165, %v1640, 0
      %v1679 = vsel %vm1165, %v1641, 0
      %v1682 = vsel %vm1165, %v1642, 0
      %v1685 = vsel %vm1165, %v1643, 0
      %v1688 = vsel %vm1165, %v1644, 0
      %v1691 = vsel %vm1165, %v1645, 0
      %v1694 = vsel %vm1165, %v1646, 0
      %vm1696 = vcmask 1043456
      %v1698 = vsel %vm1696, %v1647, 0
      %1700 = vmatprep.subr.bf16.mxu0 0
      %1701 = vmatpush1.bf16.msra.mxu0 %v1698
      %1702 = vmatprep.subr.bf16.mxu0 0
      %1703 = vmatpush1.bf16.msra.mxu0 0
      %1704 = vmatprep.subr.bf16.mxu0 0
      %1705 = vmatpush1.bf16.msra.mxu0 0
      %1706 = vmatprep.subr.bf16.mxu0 0
      %1707 = vmatpush1.bf16.msra.mxu0 0
      %1708 = vmatprep.subr.bf16.mxu0 0
      %1709 = vmatpush1.bf16.msra.mxu0 0
      %1710 = vmatprep.subr.bf16.mxu0 0
      %1711 = vmatpush1.bf16.msra.mxu0 0
      %1712 = vmatprep.subr.bf16.mxu0 0
      %1713 = vmatpush1.bf16.msra.mxu0 0
      %1714 = vmatprep.subr.bf16.mxu0 0
      %1715 = vmatpush1.bf16.msra.mxu0 0
      %1716 = vmatprep.subr.bf16.mxu0 0
      %1717 = vmatpush1.bf16.msra.mxu0 0
      %1718 = vmatprep.subr.bf16.mxu0 0
      %1719 = vmatpush1.bf16.msra.mxu0 0
      %1720 = vmatprep.subr.bf16.mxu0 0
      %1721 = vmatpush1.bf16.msra.mxu0 0
      %1722 = vmatprep.subr.bf16.mxu0 0
      %1723 = vmatpush1.bf16.msra.mxu0 0
      %1724 = vmatprep.subr.bf16.mxu0 0
      %1725 = vmatpush1.bf16.msra.mxu0 0
      %1726 = vmatprep.subr.bf16.mxu0 0
      %1727 = vmatpush1.bf16.msra.mxu0 0
      %1728 = vmatprep.subr.bf16.mxu0 0
      %1729 = vmatpush1.bf16.msra.mxu0 0
      %1730 = vmatprep.subr.bf16.mxu0 0
      %1731 = vmatpush1.bf16.msra.mxu0 0
      %1732 = vmatprep.mubr.bf16.mxu0 0
      %1733 = vmatmul.mubr.bf16.gmra.mrb[0].mxu0 %v1649
      %v1734 = vpop.f32.mrb[0].mxu0
      %v1735 = vadd.f32 0.0, %v1734
      %v1736 = vpop.f32.mrb[0].mxu0
      %v1737 = vpop.f32.mrb[0].mxu0
      %v1738 = vadd.f32 0.0, %v1737
      %v1739 = vpop.f32.mrb[0].mxu0
      %1740 = vmatprep.mubr.bf16.mxu0 0
      %1741 = vmatmul.mubr.bf16.gmra.mrb[0].mxu0 %v1652
      %v1742 = vpop.f32.mrb[0].mxu0
      %v1743 = vadd.f32 0.0, %v1742
      %v1744 = vpop.f32.mrb[0].mxu0
      %v1745 = vpop.f32.mrb[0].mxu0
      %v1746 = vadd.f32 0.0, %v1745
      %v1747 = vpop.f32.mrb[0].mxu0
      %1748 = vmatprep.mubr.bf16.mxu0 0
      %1749 = vmatmul.mubr.bf16.gmra.mrb[0].mxu0 %v1655
      %v1750 = vpop.f32.mrb[0].mxu0
      %v1751 = vadd.f32 0.0, %v1750
      %v1752 = vpop.f32.mrb[0].mxu0
      %v1753 = vpop.f32.mrb[0].mxu0
      %v1754 = vadd.f32 0.0, %v1753
      %v1755 = vpop.f32.mrb[0].mxu0
      %1756 = vmatprep.mubr.bf16.mxu0 0
      %1757 = vmatmul.mubr.bf16.gmra.mrb[0].mxu0 %v1658
      %v1758 = vpop.f32.mrb[0].mxu0
      %v1759 = vadd.f32 0.0, %v1758
      %v1760 = vpop.f32.mrb[0].mxu0
      %v1761 = vpop.f32.mrb[0].mxu0
      %v1762 = vadd.f32 0.0, %v1761
      %v1763 = vpop.f32.mrb[0].mxu0
      %1764 = vmatprep.mubr.bf16.mxu0 0
      %1765 = vmatmul.mubr.bf16.gmra.mrb[0].mxu0 %v1661
      %v1766 = vpop.f32.mrb[0].mxu0
      %v1767 = vadd.f32 0.0, %v1766
      %v1768 = vpop.f32.mrb[0].mxu0
      %v1769 = vpop.f32.mrb[0].mxu0
      %v1770 = vadd.f32 0.0, %v1769
      %v1771 = vpop.f32.mrb[0].mxu0
      %1772 = vmatprep.mubr.bf16.mxu0 0
      %1773 = vmatmul.mubr.bf16.gmra.mrb[0].mxu0 %v1664
      %v1774 = vpop.f32.mrb[0].mxu0
      %v1775 = vadd.f32 0.0, %v1774
      %v1776 = vpop.f32.mrb[0].mxu0
      %v1777 = vpop.f32.mrb[0].mxu0
      %v1778 = vadd.f32 0.0, %v1777
      %v1779 = vpop.f32.mrb[0].mxu0
      %1780 = vmatprep.mubr.bf16.mxu0 0
      %1781 = vmatmul.mubr.bf16.gmra.mrb[0].mxu0 %v1667
      %v1782 = vpop.f32.mrb[0].mxu0
      %v1783 = vadd.f32 0.0, %v1782
      %v1784 = vpop.f32.mrb[0].mxu0
      %v1785 = vpop.f32.mrb[0].mxu0
      %v1786 = vadd.f32 0.0, %v1785
      %v1787 = vpop.f32.mrb[0].mxu0
      %1788 = vmatprep.mubr.bf16.mxu0 0
      %1789 = vmatmul.mubr.bf16.gmra.mrb[0].mxu0 %v1670
      %v1790 = vpop.f32.mrb[0].mxu0
      %v1791 = vadd.f32 0.0, %v1790
      %v1792 = vpop.f32.mrb[0].mxu0
      %v1793 = vpop.f32.mrb[0].mxu0
      %v1794 = vadd.f32 0.0, %v1793
      %v1795 = vpop.f32.mrb[0].mxu0
      %1796 = vmatprep.mubr.bf16.mxu0 0
      %1797 = vmatmul.mubr.bf16.gmra.mrb[0].mxu0 %v1673
      %v1798 = vpop.f32.mrb[0].mxu0
      %v1799 = vadd.f32 0.0, %v1798
      %v1800 = vpop.f32.mrb[0].mxu0
      %v1801 = vpop.f32.mrb[0].mxu0
      %v1802 = vadd.f32 0.0, %v1801
      %v1803 = vpop.f32.mrb[0].mxu0
      %1804 = vmatprep.mubr.bf16.mxu0 0
      %1805 = vmatmul.mubr.bf16.gmra.mrb[0].mxu0 %v1676
      %v1806 = vpop.f32.mrb[0].mxu0
      %v1807 = vadd.f32 0.0, %v1806
      %v1808 = vpop.f32.mrb[0].mxu0
      %v1809 = vpop.f32.mrb[0].mxu0
      %v1810 = vadd.f32 0.0, %v1809
      %v1811 = vpop.f32.mrb[0].mxu0
      %1812 = vmatprep.mubr.bf16.mxu0 0
      %1813 = vmatmul.mubr.bf16.gmra.mrb[0].mxu0 %v1679
      %v1814 = vpop.f32.mrb[0].mxu0
      %v1815 = vadd.f32 0.0, %v1814
      %v1816 = vpop.f32.mrb[0].mxu0
      %v1817 = vpop.f32.mrb[0].mxu0
      %v1818 = vadd.f32 0.0, %v1817
      %v1819 = vpop.f32.mrb[0].mxu0
      %1820 = vmatprep.mubr.bf16.mxu0 0
      %1821 = vmatmul.mubr.bf16.gmra.mrb[0].mxu0 %v1682
      %v1822 = vpop.f32.mrb[0].mxu0
      %v1823 = vadd.f32 0.0, %v1822
      %v1824 = vpop.f32.mrb[0].mxu0
      %v1825 = vpop.f32.mrb[0].mxu0
      %v1826 = vadd.f32 0.0, %v1825
      %v1827 = vpop.f32.mrb[0].mxu0
      %1828 = vmatprep.mubr.bf16.mxu0 0
      %1829 = vmatmul.mubr.bf16.gmra.mrb[0].mxu0 %v1685
      %v1830 = vpop.f32.mrb[0].mxu0
      %v1831 = vadd.f32 0.0, %v1830
      %v1832 = vpop.f32.mrb[0].mxu0
      %v1833 = vpop.f32.mrb[0].mxu0
      %v1834 = vadd.f32 0.0, %v1833
      %v1835 = vpop.f32.mrb[0].mxu0
      %1836 = vmatprep.mubr.bf16.mxu0 0
      %1837 = vmatmul.mubr.bf16.gmra.mrb[0].mxu0 %v1688
      %v1838 = vpop.f32.mrb[0].mxu0
      %v1839 = vadd.f32 0.0, %v1838
      %v1840 = vpop.f32.mrb[0].mxu0
      %v1841 = vpop.f32.mrb[0].mxu0
      %v1842 = vadd.f32 0.0, %v1841
      %v1843 = vpop.f32.mrb[0].mxu0
      %1844 = vmatprep.mubr.bf16.mxu0 0
      %1845 = vmatmul.mubr.bf16.gmra.mrb[0].mxu0 %v1691
      %v1846 = vpop.f32.mrb[0].mxu0
      %v1847 = vadd.f32 0.0, %v1846
      %v1848 = vpop.f32.mrb[0].mxu0
      %v1849 = vpop.f32.mrb[0].mxu0
      %v1850 = vadd.f32 0.0, %v1849
      %v1851 = vpop.f32.mrb[0].mxu0
      %1852 = vmatprep.mubr.bf16.mxu0 0
      %1853 = vmatmul.mubr.bf16.gmra.mrb[0].mxu0 %v1694
      %v1854 = vpop.f32.mrb[0].mxu0
      %v1855 = vadd.f32 0.0, %v1854
      %v1856 = vpop.f32.mrb[0].mxu0
      %v1857 = vpop.f32.mrb[0].mxu0
      %v1858 = vadd.f32 0.0, %v1857
      %v1859 = vpop.f32.mrb[0].mxu0
      %1860 = vdwg.mxu0
      %v1861 = vadd.f32 %v1599, %v1735
      %v1862 = vadd.f32 %v1600, %v1738
      %v1863 = vadd.f32 %v1601, %v1743
      %v1864 = vadd.f32 %v1602, %v1746
      %v1865 = vadd.f32 %v1603, %v1751
      %v1866 = vadd.f32 %v1604, %v1754
      %v1867 = vadd.f32 %v1605, %v1759
      %v1868 = vadd.f32 %v1606, %v1762
      %v1869 = vadd.f32 %v1607, %v1767
      %v1870 = vadd.f32 %v1608, %v1770
      %v1871 = vadd.f32 %v1609, %v1775
      %v1872 = vadd.f32 %v1610, %v1778
      %v1873 = vadd.f32 %v1611, %v1783
      %v1874 = vadd.f32 %v1612, %v1786
      %v1875 = vadd.f32 %v1613, %v1791
      %v1876 = vadd.f32 %v1614, %v1794
      %v1877 = vadd.f32 %v1615, %v1799
      %v1878 = vadd.f32 %v1616, %v1802
      %v1879 = vadd.f32 %v1617, %v1807
      %v1880 = vadd.f32 %v1618, %v1810
      %v1881 = vadd.f32 %v1619, %v1815
      %v1882 = vadd.f32 %v1620, %v1818
      %v1883 = vadd.f32 %v1621, %v1823
      %v1884 = vadd.f32 %v1622, %v1826
      %v1885 = vadd.f32 %v1623, %v1831
      %v1886 = vadd.f32 %v1624, %v1834
      %v1887 = vadd.f32 %v1625, %v1839
      %v1888 = vadd.f32 %v1626, %v1842
      %v1889 = vadd.f32 %v1627, %v1847
      %v1890 = vadd.f32 %v1628, %v1850
      %v1891 = vadd.f32 %v1629, %v1855
      %v1892 = vadd.f32 %v1630, %v1858
      %1893 = vst.msk [vmem:[#allocation3] sm:$0xff] %vm1165, %v1861
      %1894 = vst.msk [vmem:[#allocation3 + $0x8] sm:$0xff] %vm1165, %v1862
      %1895 = vst.msk [vmem:[#allocation3 + $0x10] sm:$0xff] %vm1165, %v1863
      %1896 = vst.msk [vmem:[#allocation3 + $0x18] sm:$0xff] %vm1165, %v1864
      %1897 = vst.msk [vmem:[#allocation3 + $0x20] sm:$0xff] %vm1165, %v1865
      %1898 = vst.msk [vmem:[#allocation3 + $0x28] sm:$0xff] %vm1165, %v1866
      %1899 = vst.msk [vmem:[#allocation3 + $0x30] sm:$0xff] %vm1165, %v1867
      %1900 = vst.msk [vmem:[#allocation3 + $0x38] sm:$0xff] %vm1165, %v1868
      %1901 = vst.msk [vmem:[#allocation3 + $0x40] sm:$0xff] %vm1165, %v1869
      %1902 = vst.msk [vmem:[#allocation3 + $0x48] sm:$0xff] %vm1165, %v1870
      %1903 = vst.msk [vmem:[#allocation3 + $0x50] sm:$0xff] %vm1165, %v1871
      %1904 = vst.msk [vmem:[#allocation3 + $0x58] sm:$0xff] %vm1165, %v1872
      %1905 = vst.msk [vmem:[#allocation3 + $0x60] sm:$0xff] %vm1165, %v1873
      %1906 = vst.msk [vmem:[#allocation3 + $0x68] sm:$0xff] %vm1165, %v1874
      %1907 = vst.msk [vmem:[#allocation3 + $0x70] sm:$0xff] %vm1165, %v1875
      %1908 = vst.msk [vmem:[#allocation3 + $0x78] sm:$0xff] %vm1165, %v1876
      %1909 = vst.msk [vmem:[#allocation3 + $0x80] sm:$0xff] %vm1165, %v1877
      %1910 = vst.msk [vmem:[#allocation3 + $0x88] sm:$0xff] %vm1165, %v1878
      %1911 = vst.msk [vmem:[#allocation3 + $0x90] sm:$0xff] %vm1165, %v1879
      %1912 = vst.msk [vmem:[#allocation3 + $0x98] sm:$0xff] %vm1165, %v1880
      %1913 = vst.msk [vmem:[#allocation3 + $0xa0] sm:$0xff] %vm1165, %v1881
      %1914 = vst.msk [vmem:[#allocation3 + $0xa8] sm:$0xff] %vm1165, %v1882
      %1915 = vst.msk [vmem:[#allocation3 + $0xb0] sm:$0xff] %vm1165, %v1883
      %1916 = vst.msk [vmem:[#allocation3 + $0xb8] sm:$0xff] %vm1165, %v1884
      %1917 = vst.msk [vmem:[#allocation3 + $0xc0] sm:$0xff] %vm1165, %v1885
      %1918 = vst.msk [vmem:[#allocation3 + $0xc8] sm:$0xff] %vm1165, %v1886
      %1919 = vst.msk [vmem:[#allocation3 + $0xd0] sm:$0xff] %vm1165, %v1887
      %1920 = vst.msk [vmem:[#allocation3 + $0xd8] sm:$0xff] %vm1165, %v1888
      %1921 = vst.msk [vmem:[#allocation3 + $0xe0] sm:$0xff] %vm1165, %v1889
      %1922 = vst.msk [vmem:[#allocation3 + $0xe8] sm:$0xff] %vm1165, %v1890
      %1923 = vst.msk [vmem:[#allocation3 + $0xf0] sm:$0xff] %vm1165, %v1891
      %1924 = vst.msk [vmem:[#allocation3 + $0xf8] sm:$0xff] %vm1165, %v1892
      %v1925 = vld [vmem:[%s1198] sm:$0xff]
      %v1926 = vld [vmem:[%s1198 + $0x8] sm:$0xff]
      %v1927 = vld [vmem:[%s1198 + $0x10] sm:$0xff]
      %v1928 = vld [vmem:[%s1198 + $0x18] sm:$0xff]
      %v1929 = vld [vmem:[%s1198 + $0x20] sm:$0xff]
      %v1930 = vld [vmem:[%s1198 + $0x28] sm:$0xff]
      %v1931 = vld [vmem:[%s1198 + $0x30] sm:$0xff]
      %v1932 = vld [vmem:[%s1198 + $0x38] sm:$0xff]
      %v1933 = vld [vmem:[%s1198 + $0x40] sm:$0xff]
      %v1934 = vld [vmem:[%s1198 + $0x48] sm:$0xff]
      %v1935 = vld [vmem:[%s1198 + $0x50] sm:$0xff]
      %v1936 = vld [vmem:[%s1198 + $0x58] sm:$0xff]
      %v1937 = vld [vmem:[%s1198 + $0x60] sm:$0xff]
      %v1938 = vld [vmem:[%s1198 + $0x68] sm:$0xff]
      %v1939 = vld [vmem:[%s1198 + $0x70] sm:$0xff]
      %v1940 = vld [vmem:[%s1198 + $0x78] sm:$0xff]
      %v1941 = vld [vmem:[%s1198 + $0x80] sm:$0xff]
      %v1942 = vld [vmem:[%s1198 + $0x88] sm:$0xff]
      %v1943 = vld [vmem:[%s1198 + $0x90] sm:$0xff]
      %v1944 = vld [vmem:[%s1198 + $0x98] sm:$0xff]
      %v1945 = vld [vmem:[%s1198 + $0xa0] sm:$0xff]
      %v1946 = vld [vmem:[%s1198 + $0xa8] sm:$0xff]
      %v1947 = vld [vmem:[%s1198 + $0xb0] sm:$0xff]
      %v1948 = vld [vmem:[%s1198 + $0xb8] sm:$0xff]
      %v1949 = vld [vmem:[%s1198 + $0xc0] sm:$0xff]
      %v1950 = vld [vmem:[%s1198 + $0xc8] sm:$0xff]
      %v1951 = vld [vmem:[%s1198 + $0xd0] sm:$0xff]
      %v1952 = vld [vmem:[%s1198 + $0xd8] sm:$0xff]
      %v1953 = vld [vmem:[%s1198 + $0xe0] sm:$0xff]
      %v1954 = vld [vmem:[%s1198 + $0xe8] sm:$0xff]
      %v1955 = vld [vmem:[%s1198 + $0xf0] sm:$0xff]
      %v1956 = vld [vmem:[%s1198 + $0xf8] sm:$0xff]
      %v1957 = vld [vmem:[#allocation3] sm:$0xff]
      %v1958 = vld [vmem:[#allocation3 + $0x8] sm:$0xff]
      %v1959 = vld [vmem:[#allocation3 + $0x10] sm:$0xff]
      %v1960 = vld [vmem:[#allocation3 + $0x18] sm:$0xff]
      %v1961 = vld [vmem:[#allocation3 + $0x20] sm:$0xff]
      %v1962 = vld [vmem:[#allocation3 + $0x28] sm:$0xff]
      %v1963 = vld [vmem:[#allocation3 + $0x30] sm:$0xff]
      %v1964 = vld [vmem:[#allocation3 + $0x38] sm:$0xff]
      %v1965 = vld [vmem:[#allocation3 + $0x40] sm:$0xff]
      %v1966 = vld [vmem:[#allocation3 + $0x48] sm:$0xff]
      %v1967 = vld [vmem:[#allocation3 + $0x50] sm:$0xff]
      %v1968 = vld [vmem:[#allocation3 + $0x58] sm:$0xff]
      %v1969 = vld [vmem:[#allocation3 + $0x60] sm:$0xff]
      %v1970 = vld [vmem:[#allocation3 + $0x68] sm:$0xff]
      %v1971 = vld [vmem:[#allocation3 + $0x70] sm:$0xff]
      %v1972 = vld [vmem:[#allocation3 + $0x78] sm:$0xff]
      %v1973 = vld [vmem:[#allocation3 + $0x80] sm:$0xff]
      %v1974 = vld [vmem:[#allocation3 + $0x88] sm:$0xff]
      %v1975 = vld [vmem:[#allocation3 + $0x90] sm:$0xff]
      %v1976 = vld [vmem:[#allocation3 + $0x98] sm:$0xff]
      %v1977 = vld [vmem:[#allocation3 + $0xa0] sm:$0xff]
      %v1978 = vld [vmem:[#allocation3 + $0xa8] sm:$0xff]
      %v1979 = vld [vmem:[#allocation3 + $0xb0] sm:$0xff]
      %v1980 = vld [vmem:[#allocation3 + $0xb8] sm:$0xff]
      %v1981 = vld [vmem:[#allocation3 + $0xc0] sm:$0xff]
      %v1982 = vld [vmem:[#allocation3 + $0xc8] sm:$0xff]
      %v1983 = vld [vmem:[#allocation3 + $0xd0] sm:$0xff]
      %v1984 = vld [vmem:[#allocation3 + $0xd8] sm:$0xff]
      %v1985 = vld [vmem:[#allocation3 + $0xe0] sm:$0xff]
      %v1986 = vld [vmem:[#allocation3 + $0xe8] sm:$0xff]
      %v1987 = vld [vmem:[#allocation3 + $0xf0] sm:$0xff]
      %v1988 = vld [vmem:[#allocation3 + $0xf8] sm:$0xff]
      %v1989 = vpack.c.bf16 %v1926, %v1925
      %v1990 = vpack.c.bf16 %v1928, %v1927
      %v1991 = vpack.c.bf16 %v1930, %v1929
      %v1992 = vpack.c.bf16 %v1932, %v1931
      %v1993 = vpack.c.bf16 %v1934, %v1933
      %v1994 = vpack.c.bf16 %v1936, %v1935
      %v1995 = vpack.c.bf16 %v1938, %v1937
      %v1996 = vpack.c.bf16 %v1940, %v1939
      %v1997 = vpack.c.bf16 %v1942, %v1941
      %v1998 = vpack.c.bf16 %v1944, %v1943
      %v1999 = vpack.c.bf16 %v1946, %v1945
      %v2000 = vpack.c.bf16 %v1948, %v1947
      %v2001 = vpack.c.bf16 %v1950, %v1949
      %v2002 = vpack.c.bf16 %v1952, %v1951
      %v2003 = vpack.c.bf16 %v1954, %v1953
      %v2004 = vpack.c.bf16 %v1956, %v1955
      %s2005 = scalar_lea.vmem %s7, 4
      %v2006 = vld [vmem:[%s2005] sm:$0xf]
      %v2008 = vsel %vm1165, %v1989, 0
      %v2011 = vsel %vm1165, %v1990, 0
      %v2014 = vsel %vm1165, %v1991, 0
      %v2017 = vsel %vm1165, %v1992, 0
      %v2020 = vsel %vm1165, %v1993, 0
      %v2023 = vsel %vm1165, %v1994, 0
      %v2026 = vsel %vm1165, %v1995, 0
      %v2029 = vsel %vm1165, %v1996, 0
      %v2032 = vsel %vm1165, %v1997, 0
      %v2035 = vsel %vm1165, %v1998, 0
      %v2038 = vsel %vm1165, %v1999, 0
      %v2041 = vsel %vm1165, %v2000, 0
      %v2044 = vsel %vm1165, %v2001, 0
      %v2047 = vsel %vm1165, %v2002, 0
      %v2050 = vsel %vm1165, %v2003, 0
      %v2053 = vsel %vm1165, %v2004, 0
      %v2056 = vsel %vm1696, %v2006, 0
      %2058 = vmatprep.subr.bf16.mxu0 0
      %2059 = vmatpush1.bf16.msra.mxu0 %v2056
      %2060 = vmatprep.subr.bf16.mxu0 0
      %2061 = vmatpush1.bf16.msra.mxu0 0
      %2062 = vmatprep.subr.bf16.mxu0 0
      %2063 = vmatpush1.bf16.msra.mxu0 0
      %2064 = vmatprep.subr.bf16.mxu0 0
      %2065 = vmatpush1.bf16.msra.mxu0 0
      %2066 = vmatprep.subr.bf16.mxu0 0
      %2067 = vmatpush1.bf16.msra.mxu0 0
      %2068 = vmatprep.subr.bf16.mxu0 0
      %2069 = vmatpush1.bf16.msra.mxu0 0
      %2070 = vmatprep.subr.bf16.mxu0 0
      %2071 = vmatpush1.bf16.msra.mxu0 0
      %2072 = vmatprep.subr.bf16.mxu0 0
      %2073 = vmatpush1.bf16.msra.mxu0 0
      %2074 = vmatprep.subr.bf16.mxu0 0
      %2075 = vmatpush1.bf16.msra.mxu0 0
      %2076 = vmatprep.subr.bf16.mxu0 0
      %2077 = vmatpush1.bf16.msra.mxu0 0
      %2078 = vmatprep.subr.bf16.mxu0 0
      %2079 = vmatpush1.bf16.msra.mxu0 0
      %2080 = vmatprep.subr.bf16.mxu0 0
      %2081 = vmatpush1.bf16.msra.mxu0 0
      %2082 = vmatprep.subr.bf16.mxu0 0
      %2083 = vmatpush1.bf16.msra.mxu0 0
      %2084 = vmatprep.subr.bf16.mxu0 0
      %2085 = vmatpush1.bf16.msra.mxu0 0
      %2086 = vmatprep.subr.bf16.mxu0 0
      %2087 = vmatpush1.bf16.msra.mxu0 0
      %2088 = vmatprep.subr.bf16.mxu0 0
      %2089 = vmatpush1.bf16.msra.mxu0 0
      %2090 = vmatprep.mubr.bf16.mxu0 0
      %2091 = vmatmul.mubr.bf16.gmra.mrb[0].mxu0 %v2008
      %v2092 = vpop.f32.mrb[0].mxu0
      %v2093 = vadd.f32 0.0, %v2092
      %v2094 = vpop.f32.mrb[0].mxu0
      %v2095 = vpop.f32.mrb[0].mxu0
      %v2096 = vadd.f32 0.0, %v2095
      %v2097 = vpop.f32.mrb[0].mxu0
      %2098 = vmatprep.mubr.bf16.mxu0 0
      %2099 = vmatmul.mubr.bf16.gmra.mrb[0].mxu0 %v2011
      %v2100 = vpop.f32.mrb[0].mxu0
      %v2101 = vadd.f32 0.0, %v2100
      %v2102 = vpop.f32.mrb[0].mxu0
      %v2103 = vpop.f32.mrb[0].mxu0
      %v2104 = vadd.f32 0.0, %v2103
      %v2105 = vpop.f32.mrb[0].mxu0
      %2106 = vmatprep.mubr.bf16.mxu0 0
      %2107 = vmatmul.mubr.bf16.gmra.mrb[0].mxu0 %v2014
      %v2108 = vpop.f32.mrb[0].mxu0
      %v2109 = vadd.f32 0.0, %v2108
      %v2110 = vpop.f32.mrb[0].mxu0
      %v2111 = vpop.f32.mrb[0].mxu0
      %v2112 = vadd.f32 0.0, %v2111
      %v2113 = vpop.f32.mrb[0].mxu0
      %2114 = vmatprep.mubr.bf16.mxu0 0
      %2115 = vmatmul.mubr.bf16.gmra.mrb[0].mxu0 %v2017
      %v2116 = vpop.f32.mrb[0].mxu0
      %v2117 = vadd.f32 0.0, %v2116
      %v2118 = vpop.f32.mrb[0].mxu0
      %v2119 = vpop.f32.mrb[0].mxu0
      %v2120 = vadd.f32 0.0, %v2119
      %v2121 = vpop.f32.mrb[0].mxu0
      %2122 = vmatprep.mubr.bf16.mxu0 0
      %2123 = vmatmul.mubr.bf16.gmra.mrb[0].mxu0 %v2020
      %v2124 = vpop.f32.mrb[0].mxu0
      %v2125 = vadd.f32 0.0, %v2124
      %v2126 = vpop.f32.mrb[0].mxu0
      %v2127 = vpop.f32.mrb[0].mxu0
      %v2128 = vadd.f32 0.0, %v2127
      %v2129 = vpop.f32.mrb[0].mxu0
      %2130 = vmatprep.mubr.bf16.mxu0 0
      %2131 = vmatmul.mubr.bf16.gmra.mrb[0].mxu0 %v2023
      %v2132 = vpop.f32.mrb[0].mxu0
      %v2133 = vadd.f32 0.0, %v2132
      %v2134 = vpop.f32.mrb[0].mxu0
      %v2135 = vpop.f32.mrb[0].mxu0
      %v2136 = vadd.f32 0.0, %v2135
      %v2137 = vpop.f32.mrb[0].mxu0
      %2138 = vmatprep.mubr.bf16.mxu0 0
      %2139 = vmatmul.mubr.bf16.gmra.mrb[0].mxu0 %v2026
      %v2140 = vpop.f32.mrb[0].mxu0
      %v2141 = vadd.f32 0.0, %v2140
      %v2142 = vpop.f32.mrb[0].mxu0
      %v2143 = vpop.f32.mrb[0].mxu0
      %v2144 = vadd.f32 0.0, %v2143
      %v2145 = vpop.f32.mrb[0].mxu0
      %2146 = vmatprep.mubr.bf16.mxu0 0
      %2147 = vmatmul.mubr.bf16.gmra.mrb[0].mxu0 %v2029
      %v2148 = vpop.f32.mrb[0].mxu0
      %v2149 = vadd.f32 0.0, %v2148
      %v2150 = vpop.f32.mrb[0].mxu0
      %v2151 = vpop.f32.mrb[0].mxu0
      %v2152 = vadd.f32 0.0, %v2151
      %v2153 = vpop.f32.mrb[0].mxu0
      %2154 = vmatprep.mubr.bf16.mxu0 0
      %2155 = vmatmul.mubr.bf16.gmra.mrb[0].mxu0 %v2032
      %v2156 = vpop.f32.mrb[0].mxu0
      %v2157 = vadd.f32 0.0, %v2156
      %v2158 = vpop.f32.mrb[0].mxu0
      %v2159 = vpop.f32.mrb[0].mxu0
      %v2160 = vadd.f32 0.0, %v2159
      %v2161 = vpop.f32.mrb[0].mxu0
      %2162 = vmatprep.mubr.bf16.mxu0 0
      %2163 = vmatmul.mubr.bf16.gmra.mrb[0].mxu0 %v2035
      %v2164 = vpop.f32.mrb[0].mxu0
      %v2165 = vadd.f32 0.0, %v2164
      %v2166 = vpop.f32.mrb[0].mxu0
      %v2167 = vpop.f32.mrb[0].mxu0
      %v2168 = vadd.f32 0.0, %v2167
      %v2169 = vpop.f32.mrb[0].mxu0
      %2170 = vmatprep.mubr.bf16.mxu0 0
      %2171 = vmatmul.mubr.bf16.gmra.mrb[0].mxu0 %v2038
      %v2172 = vpop.f32.mrb[0].mxu0
      %v2173 = vadd.f32 0.0, %v2172
      %v2174 = vpop.f32.mrb[0].mxu0
      %v2175 = vpop.f32.mrb[0].mxu0
      %v2176 = vadd.f32 0.0, %v2175
      %v2177 = vpop.f32.mrb[0].mxu0
      %2178 = vmatprep.mubr.bf16.mxu0 0
      %2179 = vmatmul.mubr.bf16.gmra.mrb[0].mxu0 %v2041
      %v2180 = vpop.f32.mrb[0].mxu0
      %v2181 = vadd.f32 0.0, %v2180
      %v2182 = vpop.f32.mrb[0].mxu0
      %v2183 = vpop.f32.mrb[0].mxu0
      %v2184 = vadd.f32 0.0, %v2183
      %v2185 = vpop.f32.mrb[0].mxu0
      %2186 = vmatprep.mubr.bf16.mxu0 0
      %2187 = vmatmul.mubr.bf16.gmra.mrb[0].mxu0 %v2044
      %v2188 = vpop.f32.mrb[0].mxu0
      %v2189 = vadd.f32 0.0, %v2188
      %v2190 = vpop.f32.mrb[0].mxu0
      %v2191 = vpop.f32.mrb[0].mxu0
      %v2192 = vadd.f32 0.0, %v2191
      %v2193 = vpop.f32.mrb[0].mxu0
      %2194 = vmatprep.mubr.bf16.mxu0 0
      %2195 = vmatmul.mubr.bf16.gmra.mrb[0].mxu0 %v2047
      %v2196 = vpop.f32.mrb[0].mxu0
      %v2197 = vadd.f32 0.0, %v2196
      %v2198 = vpop.f32.mrb[0].mxu0
      %v2199 = vpop.f32.mrb[0].mxu0
      %v2200 = vadd.f32 0.0, %v2199
      %v2201 = vpop.f32.mrb[0].mxu0
      %2202 = vmatprep.mubr.bf16.mxu0 0
      %2203 = vmatmul.mubr.bf16.gmra.mrb[0].mxu0 %v2050
      %v2204 = vpop.f32.mrb[0].mxu0
      %v2205 = vadd.f32 0.0, %v2204
      %v2206 = vpop.f32.mrb[0].mxu0
      %v2207 = vpop.f32.mrb[0].mxu0
      %v2208 = vadd.f32 0.0, %v2207
      %v2209 = vpop.f32.mrb[0].mxu0
      %2210 = vmatprep.mubr.bf16.mxu0 0
      %2211 = vmatmul.mubr.bf16.gmra.mrb[0].mxu0 %v2053
      %v2212 = vpop.f32.mrb[0].mxu0
      %v2213 = vadd.f32 0.0, %v2212
      %v2214 = vpop.f32.mrb[0].mxu0
      %v2215 = vpop.f32.mrb[0].mxu0
      %v2216 = vadd.f32 0.0, %v2215
      %v2217 = vpop.f32.mrb[0].mxu0
      %2218 = vdwg.mxu0
      %v2219 = vadd.f32 %v1957, %v2093
      %v2220 = vadd.f32 %v1958, %v2096
      %v2221 = vadd.f32 %v1959, %v2101
      %v2222 = vadd.f32 %v1960, %v2104
      %v2223 = vadd.f32 %v1961, %v2109
      %v2224 = vadd.f32 %v1962, %v2112
      %v2225 = vadd.f32 %v1963, %v2117
      %v2226 = vadd.f32 %v1964, %v2120
      %v2227 = vadd.f32 %v1965, %v2125
      %v2228 = vadd.f32 %v1966, %v2128
      %v2229 = vadd.f32 %v1967, %v2133
      %v2230 = vadd.f32 %v1968, %v2136
      %v2231 = vadd.f32 %v1969, %v2141
      %v2232 = vadd.f32 %v1970, %v2144
      %v2233 = vadd.f32 %v1971, %v2149
      %v2234 = vadd.f32 %v1972, %v2152
      %v2235 = vadd.f32 %v1973, %v2157
      %v2236 = vadd.f32 %v1974, %v2160
      %v2237 = vadd.f32 %v1975, %v2165
      %v2238 = vadd.f32 %v1976, %v2168
      %v2239 = vadd.f32 %v1977, %v2173
      %v2240 = vadd.f32 %v1978, %v2176
      %v2241 = vadd.f32 %v1979, %v2181
      %v2242 = vadd.f32 %v1980, %v2184
      %v2243 = vadd.f32 %v1981, %v2189
      %v2244 = vadd.f32 %v1982, %v2192
      %v2245 = vadd.f32 %v1983, %v2197
      %v2246 = vadd.f32 %v1984, %v2200
      %v2247 = vadd.f32 %v1985, %v2205
      %v2248 = vadd.f32 %v1986, %v2208
      %v2249 = vadd.f32 %v1987, %v2213
      %v2250 = vadd.f32 %v1988, %v2216
      %2251 = vst.msk [vmem:[#allocation3] sm:$0xff] %vm1165, %v2219
      %2252 = vst.msk [vmem:[#allocation3 + $0x8] sm:$0xff] %vm1165, %v2220
      %2253 = vst.msk [vmem:[#allocation3 + $0x10] sm:$0xff] %vm1165, %v2221
      %2254 = vst.msk [vmem:[#allocation3 + $0x18] sm:$0xff] %vm1165, %v2222
      %2255 = vst.msk [vmem:[#allocation3 + $0x20] sm:$0xff] %vm1165, %v2223
      %2256 = vst.msk [vmem:[#allocation3 + $0x28] sm:$0xff] %vm1165, %v2224
      %2257 = vst.msk [vmem:[#allocation3 + $0x30] sm:$0xff] %vm1165, %v2225
      %2258 = vst.msk [vmem:[#allocation3 + $0x38] sm:$0xff] %vm1165, %v2226
      %2259 = vst.msk [vmem:[#allocation3 + $0x40] sm:$0xff] %vm1165, %v2227
      %2260 = vst.msk [vmem:[#allocation3 + $0x48] sm:$0xff] %vm1165, %v2228
      %2261 = vst.msk [vmem:[#allocation3 + $0x50] sm:$0xff] %vm1165, %v2229
      %2262 = vst.msk [vmem:[#allocation3 + $0x58] sm:$0xff] %vm1165, %v2230
      %2263 = vst.msk [vmem:[#allocation3 + $0x60] sm:$0xff] %vm1165, %v2231
      %2264 = vst.msk [vmem:[#allocation3 + $0x68] sm:$0xff] %vm1165, %v2232
      %2265 = vst.msk [vmem:[#allocation3 + $0x70] sm:$0xff] %vm1165, %v2233
      %2266 = vst.msk [vmem:[#allocation3 + $0x78] sm:$0xff] %vm1165, %v2234
      %2267 = vst.msk [vmem:[#allocation3 + $0x80] sm:$0xff] %vm1165, %v2235
      %2268 = vst.msk [vmem:[#allocation3 + $0x88] sm:$0xff] %vm1165, %v2236
      %2269 = vst.msk [vmem:[#allocation3 + $0x90] sm:$0xff] %vm1165, %v2237
      %2270 = vst.msk [vmem:[#allocation3 + $0x98] sm:$0xff] %vm1165, %v2238
      %2271 = vst.msk [vmem:[#allocation3 + $0xa0] sm:$0xff] %vm1165, %v2239
      %2272 = vst.msk [vmem:[#allocation3 + $0xa8] sm:$0xff] %vm1165, %v2240
      %2273 = vst.msk [vmem:[#allocation3 + $0xb0] sm:$0xff] %vm1165, %v2241
      %2274 = vst.msk [vmem:[#allocation3 + $0xb8] sm:$0xff] %vm1165, %v2242
      %2275 = vst.msk [vmem:[#allocation3 + $0xc0] sm:$0xff] %vm1165, %v2243
      %2276 = vst.msk [vmem:[#allocation3 + $0xc8] sm:$0xff] %vm1165, %v2244
      %2277 = vst.msk [vmem:[#allocation3 + $0xd0] sm:$0xff] %vm1165, %v2245
      %2278 = vst.msk [vmem:[#allocation3 + $0xd8] sm:$0xff] %vm1165, %v2246
      %2279 = vst.msk [vmem:[#allocation3 + $0xe0] sm:$0xff] %vm1165, %v2247
      %2280 = vst.msk [vmem:[#allocation3 + $0xe8] sm:$0xff] %vm1165, %v2248
      %2281 = vst.msk [vmem:[#allocation3 + $0xf0] sm:$0xff] %vm1165, %v2249
      %2282 = vst.msk [vmem:[#allocation3 + $0xf8] sm:$0xff] %vm1165, %v2250
      %v2283 = vld [vmem:[%s1498] sm:$0xff]
      %v2284 = vld [vmem:[%s1498 + $0x8] sm:$0xff]
      %v2285 = vld [vmem:[%s1498 + $0x10] sm:$0xff]
      %v2286 = vld [vmem:[%s1498 + $0x18] sm:$0xff]
      %v2287 = vld [vmem:[%s1498 + $0x20] sm:$0xff]
      %v2288 = vld [vmem:[%s1498 + $0x28] sm:$0xff]
      %v2289 = vld [vmem:[%s1498 + $0x30] sm:$0xff]
      %v2290 = vld [vmem:[%s1498 + $0x38] sm:$0xff]
      %v2291 = vld [vmem:[%s1498 + $0x40] sm:$0xff]
      %v2292 = vld [vmem:[%s1498 + $0x48] sm:$0xff]
      %v2293 = vld [vmem:[%s1498 + $0x50] sm:$0xff]
      %v2294 = vld [vmem:[%s1498 + $0x58] sm:$0xff]
      %v2295 = vld [vmem:[%s1498 + $0x60] sm:$0xff]
      %v2296 = vld [vmem:[%s1498 + $0x68] sm:$0xff]
      %v2297 = vld [vmem:[%s1498 + $0x70] sm:$0xff]
      %v2298 = vld [vmem:[%s1498 + $0x78] sm:$0xff]
      %v2299 = vld [vmem:[%s1498 + $0x80] sm:$0xff]
      %v2300 = vld [vmem:[%s1498 + $0x88] sm:$0xff]
      %v2301 = vld [vmem:[%s1498 + $0x90] sm:$0xff]
      %v2302 = vld [vmem:[%s1498 + $0x98] sm:$0xff]
      %v2303 = vld [vmem:[%s1498 + $0xa0] sm:$0xff]
      %v2304 = vld [vmem:[%s1498 + $0xa8] sm:$0xff]
      %v2305 = vld [vmem:[%s1498 + $0xb0] sm:$0xff]
      %v2306 = vld [vmem:[%s1498 + $0xb8] sm:$0xff]
      %v2307 = vld [vmem:[%s1498 + $0xc0] sm:$0xff]
      %v2308 = vld [vmem:[%s1498 + $0xc8] sm:$0xff]
      %v2309 = vld [vmem:[%s1498 + $0xd0] sm:$0xff]
      %v2310 = vld [vmem:[%s1498 + $0xd8] sm:$0xff]
      %v2311 = vld [vmem:[%s1498 + $0xe0] sm:$0xff]
      %v2312 = vld [vmem:[%s1498 + $0xe8] sm:$0xff]
      %v2313 = vld [vmem:[%s1498 + $0xf0] sm:$0xff]
      %v2314 = vld [vmem:[%s1498 + $0xf8] sm:$0xff]
      %v2315 = vld [vmem:[#allocation3] sm:$0xff]
      %v2316 = vld [vmem:[#allocation3 + $0x8] sm:$0xff]
      %v2317 = vld [vmem:[#allocation3 + $0x10] sm:$0xff]
      %v2318 = vld [vmem:[#allocation3 + $0x18] sm:$0xff]
      %v2319 = vld [vmem:[#allocation3 + $0x20] sm:$0xff]
      %v2320 = vld [vmem:[#allocation3 + $0x28] sm:$0xff]
      %v2321 = vld [vmem:[#allocation3 + $0x30] sm:$0xff]
      %v2322 = vld [vmem:[#allocation3 + $0x38] sm:$0xff]
      %v2323 = vld [vmem:[#allocation3 + $0x40] sm:$0xff]
      %v2324 = vld [vmem:[#allocation3 + $0x48] sm:$0xff]
      %v2325 = vld [vmem:[#allocation3 + $0x50] sm:$0xff]
      %v2326 = vld [vmem:[#allocation3 + $0x58] sm:$0xff]
      %v2327 = vld [vmem:[#allocation3 + $0x60] sm:$0xff]
      %v2328 = vld [vmem:[#allocation3 + $0x68] sm:$0xff]
      %v2329 = vld [vmem:[#allocation3 + $0x70] sm:$0xff]
      %v2330 = vld [vmem:[#allocation3 + $0x78] sm:$0xff]
      %v2331 = vld [vmem:[#allocation3 + $0x80] sm:$0xff]
      %v2332 = vld [vmem:[#allocation3 + $0x88] sm:$0xff]
      %v2333 = vld [vmem:[#allocation3 + $0x90] sm:$0xff]
      %v2334 = vld [vmem:[#allocation3 + $0x98] sm:$0xff]
      %v2335 = vld [vmem:[#allocation3 + $0xa0] sm:$0xff]
      %v2336 = vld [vmem:[#allocation3 + $0xa8] sm:$0xff]
      %v2337 = vld [vmem:[#allocation3 + $0xb0] sm:$0xff]
      %v2338 = vld [vmem:[#allocation3 + $0xb8] sm:$0xff]
      %v2339 = vld [vmem:[#allocation3 + $0xc0] sm:$0xff]
      %v2340 = vld [vmem:[#allocation3 + $0xc8] sm:$0xff]
      %v2341 = vld [vmem:[#allocation3 + $0xd0] sm:$0xff]
      %v2342 = vld [vmem:[#allocation3 + $0xd8] sm:$0xff]
      %v2343 = vld [vmem:[#allocation3 + $0xe0] sm:$0xff]
      %v2344 = vld [vmem:[#allocation3 + $0xe8] sm:$0xff]
      %v2345 = vld [vmem:[#allocation3 + $0xf0] sm:$0xff]
      %v2346 = vld [vmem:[#allocation3 + $0xf8] sm:$0xff]
      %v2347 = vpack.c.bf16 %v2284, %v2283
      %v2348 = vpack.c.bf16 %v2286, %v2285
      %v2349 = vpack.c.bf16 %v2288, %v2287
      %v2350 = vpack.c.bf16 %v2290, %v2289
      %v2351 = vpack.c.bf16 %v2292, %v2291
      %v2352 = vpack.c.bf16 %v2294, %v2293
      %v2353 = vpack.c.bf16 %v2296, %v2295
      %v2354 = vpack.c.bf16 %v2298, %v2297
      %v2355 = vpack.c.bf16 %v2300, %v2299
      %v2356 = vpack.c.bf16 %v2302, %v2301
      %v2357 = vpack.c.bf16 %v2304, %v2303
      %v2358 = vpack.c.bf16 %v2306, %v2305
      %v2359 = vpack.c.bf16 %v2308, %v2307
      %v2360 = vpack.c.bf16 %v2310, %v2309
      %v2361 = vpack.c.bf16 %v2312, %v2311
      %v2362 = vpack.c.bf16 %v2314, %v2313
      %s2363 = scalar_lea.vmem %s7, 8
      %v2364 = vld [vmem:[%s2363] sm:$0xf]
      %v2366 = vsel %vm1165, %v2347, 0
      %v2369 = vsel %vm1165, %v2348, 0
      %v2372 = vsel %vm1165, %v2349, 0
      %v2375 = vsel %vm1165, %v2350, 0
      %v2378 = vsel %vm1165, %v2351, 0
      %v2381 = vsel %vm1165, %v2352, 0
      %v2384 = vsel %vm1165, %v2353, 0
      %v2387 = vsel %vm1165, %v2354, 0
      %v2390 = vsel %vm1165, %v2355, 0
      %v2393 = vsel %vm1165, %v2356, 0
      %v2396 = vsel %vm1165, %v2357, 0
      %v2399 = vsel %vm1165, %v2358, 0
      %v2402 = vsel %vm1165, %v2359, 0
      %v2405 = vsel %vm1165, %v2360, 0
      %v2408 = vsel %vm1165, %v2361, 0
      %v2411 = vsel %vm1165, %v2362, 0
      %v2414 = vsel %vm1696, %v2364, 0
      %2416 = vmatprep.subr.bf16.mxu0 0
      %2417 = vmatpush1.bf16.msra.mxu0 %v2414
      %2418 = vmatprep.subr.bf16.mxu0 0
      %2419 = vmatpush1.bf16.msra.mxu0 0
      %2420 = vmatprep.subr.bf16.mxu0 0
      %2421 = vmatpush1.bf16.msra.mxu0 0
      %2422 = vmatprep.subr.bf16.mxu0 0
      %2423 = vmatpush1.bf16.msra.mxu0 0
      %2424 = vmatprep.subr.bf16.mxu0 0
      %2425 = vmatpush1.bf16.msra.mxu0 0
      %2426 = vmatprep.subr.bf16.mxu0 0
      %2427 = vmatpush1.bf16.msra.mxu0 0
      %2428 = vmatprep.subr.bf16.mxu0 0
      %2429 = vmatpush1.bf16.msra.mxu0 0
      %2430 = vmatprep.subr.bf16.mxu0 0
      %2431 = vmatpush1.bf16.msra.mxu0 0
      %2432 = vmatprep.subr.bf16.mxu0 0
      %2433 = vmatpush1.bf16.msra.mxu0 0
      %2434 = vmatprep.subr.bf16.mxu0 0
      %2435 = vmatpush1.bf16.msra.mxu0 0
      %2436 = vmatprep.subr.bf16.mxu0 0
      %2437 = vmatpush1.bf16.msra.mxu0 0
      %2438 = vmatprep.subr.bf16.mxu0 0
      %2439 = vmatpush1.bf16.msra.mxu0 0
      %2440 = vmatprep.subr.bf16.mxu0 0
      %2441 = vmatpush1.bf16.msra.mxu0 0
      %2442 = vmatprep.subr.bf16.mxu0 0
      %2443 = vmatpush1.bf16.msra.mxu0 0
      %2444 = vmatprep.subr.bf16.mxu0 0
      %2445 = vmatpush1.bf16.msra.mxu0 0
      %2446 = vmatprep.subr.bf16.mxu0 0
      %2447 = vmatpush1.bf16.msra.mxu0 0
      %2448 = vmatprep.mubr.bf16.mxu0 0
      %2449 = vmatmul.mubr.bf16.gmra.mrb[0].mxu0 %v2366
      %v2450 = vpop.f32.mrb[0].mxu0
      %v2451 = vadd.f32 0.0, %v2450
      %v2452 = vpop.f32.mrb[0].mxu0
      %v2453 = vpop.f32.mrb[0].mxu0
      %v2454 = vadd.f32 0.0, %v2453
      %v2455 = vpop.f32.mrb[0].mxu0
      %2456 = vmatprep.mubr.bf16.mxu0 0
      %2457 = vmatmul.mubr.bf16.gmra.mrb[0].mxu0 %v2369
      %v2458 = vpop.f32.mrb[0].mxu0
      %v2459 = vadd.f32 0.0, %v2458
      %v2460 = vpop.f32.mrb[0].mxu0
      %v2461 = vpop.f32.mrb[0].mxu0
      %v2462 = vadd.f32 0.0, %v2461
      %v2463 = vpop.f32.mrb[0].mxu0
      %2464 = vmatprep.mubr.bf16.mxu0 0
      %2465 = vmatmul.mubr.bf16.gmra.mrb[0].mxu0 %v2372
      %v2466 = vpop.f32.mrb[0].mxu0
      %v2467 = vadd.f32 0.0, %v2466
      %v2468 = vpop.f32.mrb[0].mxu0
      %v2469 = vpop.f32.mrb[0].mxu0
      %v2470 = vadd.f32 0.0, %v2469
      %v2471 = vpop.f32.mrb[0].mxu0
      %2472 = vmatprep.mubr.bf16.mxu0 0
      %2473 = vmatmul.mubr.bf16.gmra.mrb[0].mxu0 %v2375
      %v2474 = vpop.f32.mrb[0].mxu0
      %v2475 = vadd.f32 0.0, %v2474
      %v2476 = vpop.f32.mrb[0].mxu0
      %v2477 = vpop.f32.mrb[0].mxu0
      %v2478 = vadd.f32 0.0, %v2477
      %v2479 = vpop.f32.mrb[0].mxu0
      %2480 = vmatprep.mubr.bf16.mxu0 0
      %2481 = vmatmul.mubr.bf16.gmra.mrb[0].mxu0 %v2378
      %v2482 = vpop.f32.mrb[0].mxu0
      %v2483 = vadd.f32 0.0, %v2482
      %v2484 = vpop.f32.mrb[0].mxu0
      %v2485 = vpop.f32.mrb[0].mxu0
      %v2486 = vadd.f32 0.0, %v2485
      %v2487 = vpop.f32.mrb[0].mxu0
      %2488 = vmatprep.mubr.bf16.mxu0 0
      %2489 = vmatmul.mubr.bf16.gmra.mrb[0].mxu0 %v2381
      %v2490 = vpop.f32.mrb[0].mxu0
      %v2491 = vadd.f32 0.0, %v2490
      %v2492 = vpop.f32.mrb[0].mxu0
      %v2493 = vpop.f32.mrb[0].mxu0
      %v2494 = vadd.f32 0.0, %v2493
      %v2495 = vpop.f32.mrb[0].mxu0
      %2496 = vmatprep.mubr.bf16.mxu0 0
      %2497 = vmatmul.mubr.bf16.gmra.mrb[0].mxu0 %v2384
      %v2498 = vpop.f32.mrb[0].mxu0
      %v2499 = vadd.f32 0.0, %v2498
      %v2500 = vpop.f32.mrb[0].mxu0
      %v2501 = vpop.f32.mrb[0].mxu0
      %v2502 = vadd.f32 0.0, %v2501
      %v2503 = vpop.f32.mrb[0].mxu0
      %2504 = vmatprep.mubr.bf16.mxu0 0
      %2505 = vmatmul.mubr.bf16.gmra.mrb[0].mxu0 %v2387
      %v2506 = vpop.f32.mrb[0].mxu0
      %v2507 = vadd.f32 0.0, %v2506
      %v2508 = vpop.f32.mrb[0].mxu0
      %v2509 = vpop.f32.mrb[0].mxu0
      %v2510 = vadd.f32 0.0, %v2509
      %v2511 = vpop.f32.mrb[0].mxu0
      %2512 = vmatprep.mubr.bf16.mxu0 0
      %2513 = vmatmul.mubr.bf16.gmra.mrb[0].mxu0 %v2390
      %v2514 = vpop.f32.mrb[0].mxu0
      %v2515 = vadd.f32 0.0, %v2514
      %v2516 = vpop.f32.mrb[0].mxu0
      %v2517 = vpop.f32.mrb[0].mxu0
      %v2518 = vadd.f32 0.0, %v2517
      %v2519 = vpop.f32.mrb[0].mxu0
      %2520 = vmatprep.mubr.bf16.mxu0 0
      %2521 = vmatmul.mubr.bf16.gmra.mrb[0].mxu0 %v2393
      %v2522 = vpop.f32.mrb[0].mxu0
      %v2523 = vadd.f32 0.0, %v2522
      %v2524 = vpop.f32.mrb[0].mxu0
      %v2525 = vpop.f32.mrb[0].mxu0
      %v2526 = vadd.f32 0.0, %v2525
      %v2527 = vpop.f32.mrb[0].mxu0
      %2528 = vmatprep.mubr.bf16.mxu0 0
      %2529 = vmatmul.mubr.bf16.gmra.mrb[0].mxu0 %v2396
      %v2530 = vpop.f32.mrb[0].mxu0
      %v2531 = vadd.f32 0.0, %v2530
      %v2532 = vpop.f32.mrb[0].mxu0
      %v2533 = vpop.f32.mrb[0].mxu0
      %v2534 = vadd.f32 0.0, %v2533
      %v2535 = vpop.f32.mrb[0].mxu0
      %2536 = vmatprep.mubr.bf16.mxu0 0
      %2537 = vmatmul.mubr.bf16.gmra.mrb[0].mxu0 %v2399
      %v2538 = vpop.f32.mrb[0].mxu0
      %v2539 = vadd.f32 0.0, %v2538
      %v2540 = vpop.f32.mrb[0].mxu0
      %v2541 = vpop.f32.mrb[0].mxu0
      %v2542 = vadd.f32 0.0, %v2541
      %v2543 = vpop.f32.mrb[0].mxu0
      %2544 = vmatprep.mubr.bf16.mxu0 0
      %2545 = vmatmul.mubr.bf16.gmra.mrb[0].mxu0 %v2402
      %v2546 = vpop.f32.mrb[0].mxu0
      %v2547 = vadd.f32 0.0, %v2546
      %v2548 = vpop.f32.mrb[0].mxu0
      %v2549 = vpop.f32.mrb[0].mxu0
      %v2550 = vadd.f32 0.0, %v2549
      %v2551 = vpop.f32.mrb[0].mxu0
      %2552 = vmatprep.mubr.bf16.mxu0 0
      %2553 = vmatmul.mubr.bf16.gmra.mrb[0].mxu0 %v2405
      %v2554 = vpop.f32.mrb[0].mxu0
      %v2555 = vadd.f32 0.0, %v2554
      %v2556 = vpop.f32.mrb[0].mxu0
      %v2557 = vpop.f32.mrb[0].mxu0
      %v2558 = vadd.f32 0.0, %v2557
      %v2559 = vpop.f32.mrb[0].mxu0
      %2560 = vmatprep.mubr.bf16.mxu0 0
      %2561 = vmatmul.mubr.bf16.gmra.mrb[0].mxu0 %v2408
      %v2562 = vpop.f32.mrb[0].mxu0
      %v2563 = vadd.f32 0.0, %v2562
      %v2564 = vpop.f32.mrb[0].mxu0
      %v2565 = vpop.f32.mrb[0].mxu0
      %v2566 = vadd.f32 0.0, %v2565
      %v2567 = vpop.f32.mrb[0].mxu0
      %2568 = vmatprep.mubr.bf16.mxu0 0
      %2569 = vmatmul.mubr.bf16.gmra.mrb[0].mxu0 %v2411
      %v2570 = vpop.f32.mrb[0].mxu0
      %v2571 = vadd.f32 0.0, %v2570
      %v2572 = vpop.f32.mrb[0].mxu0
      %v2573 = vpop.f32.mrb[0].mxu0
      %v2574 = vadd.f32 0.0, %v2573
      %v2575 = vpop.f32.mrb[0].mxu0
      %2576 = vdwg.mxu0
      %v2577 = vadd.f32 %v2315, %v2451
      %v2578 = vadd.f32 %v2316, %v2454
      %v2579 = vadd.f32 %v2317, %v2459
      %v2580 = vadd.f32 %v2318, %v2462
      %v2581 = vadd.f32 %v2319, %v2467
      %v2582 = vadd.f32 %v2320, %v2470
      %v2583 = vadd.f32 %v2321, %v2475
      %v2584 = vadd.f32 %v2322, %v2478
      %v2585 = vadd.f32 %v2323, %v2483
      %v2586 = vadd.f32 %v2324, %v2486
      %v2587 = vadd.f32 %v2325, %v2491
      %v2588 = vadd.f32 %v2326, %v2494
      %v2589 = vadd.f32 %v2327, %v2499
      %v2590 = vadd.f32 %v2328, %v2502
      %v2591 = vadd.f32 %v2329, %v2507
      %v2592 = vadd.f32 %v2330, %v2510
      %v2593 = vadd.f32 %v2331, %v2515
      %v2594 = vadd.f32 %v2332, %v2518
      %v2595 = vadd.f32 %v2333, %v2523
      %v2596 = vadd.f32 %v2334, %v2526
      %v2597 = vadd.f32 %v2335, %v2531
      %v2598 = vadd.f32 %v2336, %v2534
      %v2599 = vadd.f32 %v2337, %v2539
      %v2600 = vadd.f32 %v2338, %v2542
      %v2601 = vadd.f32 %v2339, %v2547
      %v2602 = vadd.f32 %v2340, %v2550
      %v2603 = vadd.f32 %v2341, %v2555
      %v2604 = vadd.f32 %v2342, %v2558
      %v2605 = vadd.f32 %v2343, %v2563
      %v2606 = vadd.f32 %v2344, %v2566
      %v2607 = vadd.f32 %v2345, %v2571
      %v2608 = vadd.f32 %v2346, %v2574
      %2609 = vst.msk [vmem:[#allocation3] sm:$0xff] %vm1165, %v2577
      %2610 = vst.msk [vmem:[#allocation3 + $0x8] sm:$0xff] %vm1165, %v2578
      %2611 = vst.msk [vmem:[#allocation3 + $0x10] sm:$0xff] %vm1165, %v2579
      %2612 = vst.msk [vmem:[#allocation3 + $0x18] sm:$0xff] %vm1165, %v2580
      %2613 = vst.msk [vmem:[#allocation3 + $0x20] sm:$0xff] %vm1165, %v2581
      %2614 = vst.msk [vmem:[#allocation3 + $0x28] sm:$0xff] %vm1165, %v2582
      %2615 = vst.msk [vmem:[#allocation3 + $0x30] sm:$0xff] %vm1165, %v2583
      %2616 = vst.msk [vmem:[#allocation3 + $0x38] sm:$0xff] %vm1165, %v2584
      %2617 = vst.msk [vmem:[#allocation3 + $0x40] sm:$0xff] %vm1165, %v2585
      %2618 = vst.msk [vmem:[#allocation3 + $0x48] sm:$0xff] %vm1165, %v2586
      %2619 = vst.msk [vmem:[#allocation3 + $0x50] sm:$0xff] %vm1165, %v2587
      %2620 = vst.msk [vmem:[#allocation3 + $0x58] sm:$0xff] %vm1165, %v2588
      %2621 = vst.msk [vmem:[#allocation3 + $0x60] sm:$0xff] %vm1165, %v2589
      %2622 = vst.msk [vmem:[#allocation3 + $0x68] sm:$0xff] %vm1165, %v2590
      %2623 = vst.msk [vmem:[#allocation3 + $0x70] sm:$0xff] %vm1165, %v2591
      %2624 = vst.msk [vmem:[#allocation3 + $0x78] sm:$0xff] %vm1165, %v2592
      %2625 = vst.msk [vmem:[#allocation3 + $0x80] sm:$0xff] %vm1165, %v2593
      %2626 = vst.msk [vmem:[#allocation3 + $0x88] sm:$0xff] %vm1165, %v2594
      %2627 = vst.msk [vmem:[#allocation3 + $0x90] sm:$0xff] %vm1165, %v2595
      %2628 = vst.msk [vmem:[#allocation3 + $0x98] sm:$0xff] %vm1165, %v2596
      %2629 = vst.msk [vmem:[#allocation3 + $0xa0] sm:$0xff] %vm1165, %v2597
      %2630 = vst.msk [vmem:[#allocation3 + $0xa8] sm:$0xff] %vm1165, %v2598
      %2631 = vst.msk [vmem:[#allocation3 + $0xb0] sm:$0xff] %vm1165, %v2599
      %2632 = vst.msk [vmem:[#allocation3 + $0xb8] sm:$0xff] %vm1165, %v2600
      %2633 = vst.msk [vmem:[#allocation3 + $0xc0] sm:$0xff] %vm1165, %v2601
      %2634 = vst.msk [vmem:[#allocation3 + $0xc8] sm:$0xff] %vm1165, %v2602
      %2635 = vst.msk [vmem:[#allocation3 + $0xd0] sm:$0xff] %vm1165, %v2603
      %2636 = vst.msk [vmem:[#allocation3 + $0xd8] sm:$0xff] %vm1165, %v2604
      %2637 = vst.msk [vmem:[#allocation3 + $0xe0] sm:$0xff] %vm1165, %v2605
      %2638 = vst.msk [vmem:[#allocation3 + $0xe8] sm:$0xff] %vm1165, %v2606
      %2639 = vst.msk [vmem:[#allocation3 + $0xf0] sm:$0xff] %vm1165, %v2607
      %2640 = vst.msk [vmem:[#allocation3 + $0xf8] sm:$0xff] %vm1165, %v2608
      %s2641 = scalar_lea.vmem [#allocation2], 16
      %v2642 = vld [vmem:[%s2641] sm:$0xff]
      %v2643 = vld [vmem:[%s2641 + $0x8] sm:$0xff]
      %v2644 = vld [vmem:[%s2641 + $0x10] sm:$0xff]
      %v2645 = vld [vmem:[%s2641 + $0x18] sm:$0xff]
      %v2646 = vld [vmem:[%s2641 + $0x20] sm:$0xff]
      %v2647 = vld [vmem:[%s2641 + $0x28] sm:$0xff]
      %v2648 = vld [vmem:[%s2641 + $0x30] sm:$0xff]
      %v2649 = vld [vmem:[%s2641 + $0x38] sm:$0xff]
      %v2650 = vld [vmem:[%s2641 + $0x40] sm:$0xff]
      %v2651 = vld [vmem:[%s2641 + $0x48] sm:$0xff]
      %v2652 = vld [vmem:[%s2641 + $0x50] sm:$0xff]
      %v2653 = vld [vmem:[%s2641 + $0x58] sm:$0xff]
      %v2654 = vld [vmem:[%s2641 + $0x60] sm:$0xff]
      %v2655 = vld [vmem:[%s2641 + $0x68] sm:$0xff]
      %v2656 = vld [vmem:[%s2641 + $0x70] sm:$0xff]
      %v2657 = vld [vmem:[%s2641 + $0x78] sm:$0xff]
      %v2658 = vld [vmem:[%s2641 + $0x80] sm:$0xff]
      %v2659 = vld [vmem:[%s2641 + $0x88] sm:$0xff]
      %v2660 = vld [vmem:[%s2641 + $0x90] sm:$0xff]
      %v2661 = vld [vmem:[%s2641 + $0x98] sm:$0xff]
      %v2662 = vld [vmem:[%s2641 + $0xa0] sm:$0xff]
      %v2663 = vld [vmem:[%s2641 + $0xa8] sm:$0xff]
      %v2664 = vld [vmem:[%s2641 + $0xb0] sm:$0xff]
      %v2665 = vld [vmem:[%s2641 + $0xb8] sm:$0xff]
      %v2666 = vld [vmem:[%s2641 + $0xc0] sm:$0xff]
      %v2667 = vld [vmem:[%s2641 + $0xc8] sm:$0xff]
      %v2668 = vld [vmem:[%s2641 + $0xd0] sm:$0xff]
      %v2669 = vld [vmem:[%s2641 + $0xd8] sm:$0xff]
      %v2670 = vld [vmem:[%s2641 + $0xe0] sm:$0xff]
      %v2671 = vld [vmem:[%s2641 + $0xe8] sm:$0xff]
      %v2672 = vld [vmem:[%s2641 + $0xf0] sm:$0xff]
      %v2673 = vld [vmem:[%s2641 + $0xf8] sm:$0xff]
      %v2674 = vld [vmem:[#allocation3] sm:$0xff]
      %v2675 = vld [vmem:[#allocation3 + $0x8] sm:$0xff]
      %v2676 = vld [vmem:[#allocation3 + $0x10] sm:$0xff]
      %v2677 = vld [vmem:[#allocation3 + $0x18] sm:$0xff]
      %v2678 = vld [vmem:[#allocation3 + $0x20] sm:$0xff]
      %v2679 = vld [vmem:[#allocation3 + $0x28] sm:$0xff]
      %v2680 = vld [vmem:[#allocation3 + $0x30] sm:$0xff]
      %v2681 = vld [vmem:[#allocation3 + $0x38] sm:$0xff]
      %v2682 = vld [vmem:[#allocation3 + $0x40] sm:$0xff]
      %v2683 = vld [vmem:[#allocation3 + $0x48] sm:$0xff]
      %v2684 = vld [vmem:[#allocation3 + $0x50] sm:$0xff]
      %v2685 = vld [vmem:[#allocation3 + $0x58] sm:$0xff]
      %v2686 = vld [vmem:[#allocation3 + $0x60] sm:$0xff]
      %v2687 = vld [vmem:[#allocation3 + $0x68] sm:$0xff]
      %v2688 = vld [vmem:[#allocation3 + $0x70] sm:$0xff]
      %v2689 = vld [vmem:[#allocation3 + $0x78] sm:$0xff]
      %v2690 = vld [vmem:[#allocation3 + $0x80] sm:$0xff]
      %v2691 = vld [vmem:[#allocation3 + $0x88] sm:$0xff]
      %v2692 = vld [vmem:[#allocation3 + $0x90] sm:$0xff]
      %v2693 = vld [vmem:[#allocation3 + $0x98] sm:$0xff]
      %v2694 = vld [vmem:[#allocation3 + $0xa0] sm:$0xff]
      %v2695 = vld [vmem:[#allocation3 + $0xa8] sm:$0xff]
      %v2696 = vld [vmem:[#allocation3 + $0xb0] sm:$0xff]
      %v2697 = vld [vmem:[#allocation3 + $0xb8] sm:$0xff]
      %v2698 = vld [vmem:[#allocation3 + $0xc0] sm:$0xff]
      %v2699 = vld [vmem:[#allocation3 + $0xc8] sm:$0xff]
      %v2700 = vld [vmem:[#allocation3 + $0xd0] sm:$0xff]
      %v2701 = vld [vmem:[#allocation3 + $0xd8] sm:$0xff]
      %v2702 = vld [vmem:[#allocation3 + $0xe0] sm:$0xff]
      %v2703 = vld [vmem:[#allocation3 + $0xe8] sm:$0xff]
      %v2704 = vld [vmem:[#allocation3 + $0xf0] sm:$0xff]
      %v2705 = vld [vmem:[#allocation3 + $0xf8] sm:$0xff]
      %v2706 = vpack.c.bf16 %v2643, %v2642
      %v2707 = vpack.c.bf16 %v2645, %v2644
      %v2708 = vpack.c.bf16 %v2647, %v2646
      %v2709 = vpack.c.bf16 %v2649, %v2648
      %v2710 = vpack.c.bf16 %v2651, %v2650
      %v2711 = vpack.c.bf16 %v2653, %v2652
      %v2712 = vpack.c.bf16 %v2655, %v2654
      %v2713 = vpack.c.bf16 %v2657, %v2656
      %v2714 = vpack.c.bf16 %v2659, %v2658
      %v2715 = vpack.c.bf16 %v2661, %v2660
      %v2716 = vpack.c.bf16 %v2663, %v2662
      %v2717 = vpack.c.bf16 %v2665, %v2664
      %v2718 = vpack.c.bf16 %v2667, %v2666
      %v2719 = vpack.c.bf16 %v2669, %v2668
      %v2720 = vpack.c.bf16 %v2671, %v2670
      %v2721 = vpack.c.bf16 %v2673, %v2672
      %s2722 = scalar_lea.vmem %s7, 12
      %v2723 = vld [vmem:[%s2722] sm:$0xf]
      %v2725 = vsel %vm1165, %v2706, 0
      %v2728 = vsel %vm1165, %v2707, 0
      %v2731 = vsel %vm1165, %v2708, 0
      %v2734 = vsel %vm1165, %v2709, 0
      %v2737 = vsel %vm1165, %v2710, 0
      %v2740 = vsel %vm1165, %v2711, 0
      %v2743 = vsel %vm1165, %v2712, 0
      %v2746 = vsel %vm1165, %v2713, 0
      %v2749 = vsel %vm1165, %v2714, 0
      %v2752 = vsel %vm1165, %v2715, 0
      %v2755 = vsel %vm1165, %v2716, 0
      %v2758 = vsel %vm1165, %v2717, 0
      %v2761 = vsel %vm1165, %v2718, 0
      %v2764 = vsel %vm1165, %v2719, 0
      %v2767 = vsel %vm1165, %v2720, 0
      %v2770 = vsel %vm1165, %v2721, 0
      %v2773 = vsel %vm1696, %v2723, 0
      %2775 = vmatprep.subr.bf16.mxu0 0
      %2776 = vmatpush1.bf16.msra.mxu0 %v2773
      %2777 = vmatprep.subr.bf16.mxu0 0
      %2778 = vmatpush1.bf16.msra.mxu0 0
      %2779 = vmatprep.subr.bf16.mxu0 0
      %2780 = vmatpush1.bf16.msra.mxu0 0
      %2781 = vmatprep.subr.bf16.mxu0 0
      %2782 = vmatpush1.bf16.msra.mxu0 0
      %2783 = vmatprep.subr.bf16.mxu0 0
      %2784 = vmatpush1.bf16.msra.mxu0 0
      %2785 = vmatprep.subr.bf16.mxu0 0
      %2786 = vmatpush1.bf16.msra.mxu0 0
      %2787 = vmatprep.subr.bf16.mxu0 0
      %2788 = vmatpush1.bf16.msra.mxu0 0
      %2789 = vmatprep.subr.bf16.mxu0 0
      %2790 = vmatpush1.bf16.msra.mxu0 0
      %2791 = vmatprep.subr.bf16.mxu0 0
      %2792 = vmatpush1.bf16.msra.mxu0 0
      %2793 = vmatprep.subr.bf16.mxu0 0
      %2794 = vmatpush1.bf16.msra.mxu0 0
      %2795 = vmatprep.subr.bf16.mxu0 0
      %2796 = vmatpush1.bf16.msra.mxu0 0
      %2797 = vmatprep.subr.bf16.mxu0 0
      %2798 = vmatpush1.bf16.msra.mxu0 0
      %2799 = vmatprep.subr.bf16.mxu0 0
      %2800 = vmatpush1.bf16.msra.mxu0 0
      %2801 = vmatprep.subr.bf16.mxu0 0
      %2802 = vmatpush1.bf16.msra.mxu0 0
      %2803 = vmatprep.subr.bf16.mxu0 0
      %2804 = vmatpush1.bf16.msra.mxu0 0
      %2805 = vmatprep.subr.bf16.mxu0 0
      %2806 = vmatpush1.bf16.msra.mxu0 0
      %2807 = vmatprep.mubr.bf16.mxu0 0
      %2808 = vmatmul.mubr.bf16.gmra.mrb[0].mxu0 %v2725
      %v2809 = vpop.f32.mrb[0].mxu0
      %v2810 = vadd.f32 0.0, %v2809
      %v2811 = vpop.f32.mrb[0].mxu0
      %v2812 = vpop.f32.mrb[0].mxu0
      %v2813 = vadd.f32 0.0, %v2812
      %v2814 = vpop.f32.mrb[0].mxu0
      %2815 = vmatprep.mubr.bf16.mxu0 0
      %2816 = vmatmul.mubr.bf16.gmra.mrb[0].mxu0 %v2728
      %v2817 = vpop.f32.mrb[0].mxu0
      %v2818 = vadd.f32 0.0, %v2817
      %v2819 = vpop.f32.mrb[0].mxu0
      %v2820 = vpop.f32.mrb[0].mxu0
      %v2821 = vadd.f32 0.0, %v2820
      %v2822 = vpop.f32.mrb[0].mxu0
      %2823 = vmatprep.mubr.bf16.mxu0 0
      %2824 = vmatmul.mubr.bf16.gmra.mrb[0].mxu0 %v2731
      %v2825 = vpop.f32.mrb[0].mxu0
      %v2826 = vadd.f32 0.0, %v2825
      %v2827 = vpop.f32.mrb[0].mxu0
      %v2828 = vpop.f32.mrb[0].mxu0
      %v2829 = vadd.f32 0.0, %v2828
      %v2830 = vpop.f32.mrb[0].mxu0
      %2831 = vmatprep.mubr.bf16.mxu0 0
      %2832 = vmatmul.mubr.bf16.gmra.mrb[0].mxu0 %v2734
      %v2833 = vpop.f32.mrb[0].mxu0
      %v2834 = vadd.f32 0.0, %v2833
      %v2835 = vpop.f32.mrb[0].mxu0
      %v2836 = vpop.f32.mrb[0].mxu0
      %v2837 = vadd.f32 0.0, %v2836
      %v2838 = vpop.f32.mrb[0].mxu0
      %2839 = vmatprep.mubr.bf16.mxu0 0
      %2840 = vmatmul.mubr.bf16.gmra.mrb[0].mxu0 %v2737
      %v2841 = vpop.f32.mrb[0].mxu0
      %v2842 = vadd.f32 0.0, %v2841
      %v2843 = vpop.f32.mrb[0].mxu0
      %v2844 = vpop.f32.mrb[0].mxu0
      %v2845 = vadd.f32 0.0, %v2844
      %v2846 = vpop.f32.mrb[0].mxu0
      %2847 = vmatprep.mubr.bf16.mxu0 0
      %2848 = vmatmul.mubr.bf16.gmra.mrb[0].mxu0 %v2740
      %v2849 = vpop.f32.mrb[0].mxu0
      %v2850 = vadd.f32 0.0, %v2849
      %v2851 = vpop.f32.mrb[0].mxu0
      %v2852 = vpop.f32.mrb[0].mxu0
      %v2853 = vadd.f32 0.0, %v2852
      %v2854 = vpop.f32.mrb[0].mxu0
      %2855 = vmatprep.mubr.bf16.mxu0 0
      %2856 = vmatmul.mubr.bf16.gmra.mrb[0].mxu0 %v2743
      %v2857 = vpop.f32.mrb[0].mxu0
      %v2858 = vadd.f32 0.0, %v2857
      %v2859 = vpop.f32.mrb[0].mxu0
      %v2860 = vpop.f32.mrb[0].mxu0
      %v2861 = vadd.f32 0.0, %v2860
      %v2862 = vpop.f32.mrb[0].mxu0
      %2863 = vmatprep.mubr.bf16.mxu0 0
      %2864 = vmatmul.mubr.bf16.gmra.mrb[0].mxu0 %v2746
      %v2865 = vpop.f32.mrb[0].mxu0
      %v2866 = vadd.f32 0.0, %v2865
      %v2867 = vpop.f32.mrb[0].mxu0
      %v2868 = vpop.f32.mrb[0].mxu0
      %v2869 = vadd.f32 0.0, %v2868
      %v2870 = vpop.f32.mrb[0].mxu0
      %2871 = vmatprep.mubr.bf16.mxu0 0
      %2872 = vmatmul.mubr.bf16.gmra.mrb[0].mxu0 %v2749
      %v2873 = vpop.f32.mrb[0].mxu0
      %v2874 = vadd.f32 0.0, %v2873
      %v2875 = vpop.f32.mrb[0].mxu0
      %v2876 = vpop.f32.mrb[0].mxu0
      %v2877 = vadd.f32 0.0, %v2876
      %v2878 = vpop.f32.mrb[0].mxu0
      %2879 = vmatprep.mubr.bf16.mxu0 0
      %2880 = vmatmul.mubr.bf16.gmra.mrb[0].mxu0 %v2752
      %v2881 = vpop.f32.mrb[0].mxu0
      %v2882 = vadd.f32 0.0, %v2881
      %v2883 = vpop.f32.mrb[0].mxu0
      %v2884 = vpop.f32.mrb[0].mxu0
      %v2885 = vadd.f32 0.0, %v2884
      %v2886 = vpop.f32.mrb[0].mxu0
      %2887 = vmatprep.mubr.bf16.mxu0 0
      %2888 = vmatmul.mubr.bf16.gmra.mrb[0].mxu0 %v2755
      %v2889 = vpop.f32.mrb[0].mxu0
      %v2890 = vadd.f32 0.0, %v2889
      %v2891 = vpop.f32.mrb[0].mxu0
      %v2892 = vpop.f32.mrb[0].mxu0
      %v2893 = vadd.f32 0.0, %v2892
      %v2894 = vpop.f32.mrb[0].mxu0
      %2895 = vmatprep.mubr.bf16.mxu0 0
      %2896 = vmatmul.mubr.bf16.gmra.mrb[0].mxu0 %v2758
      %v2897 = vpop.f32.mrb[0].mxu0
      %v2898 = vadd.f32 0.0, %v2897
      %v2899 = vpop.f32.mrb[0].mxu0
      %v2900 = vpop.f32.mrb[0].mxu0
      %v2901 = vadd.f32 0.0, %v2900
      %v2902 = vpop.f32.mrb[0].mxu0
      %2903 = vmatprep.mubr.bf16.mxu0 0
      %2904 = vmatmul.mubr.bf16.gmra.mrb[0].mxu0 %v2761
      %v2905 = vpop.f32.mrb[0].mxu0
      %v2906 = vadd.f32 0.0, %v2905
      %v2907 = vpop.f32.mrb[0].mxu0
      %v2908 = vpop.f32.mrb[0].mxu0
      %v2909 = vadd.f32 0.0, %v2908
      %v2910 = vpop.f32.mrb[0].mxu0
      %2911 = vmatprep.mubr.bf16.mxu0 0
      %2912 = vmatmul.mubr.bf16.gmra.mrb[0].mxu0 %v2764
      %v2913 = vpop.f32.mrb[0].mxu0
      %v2914 = vadd.f32 0.0, %v2913
      %v2915 = vpop.f32.mrb[0].mxu0
      %v2916 = vpop.f32.mrb[0].mxu0
      %v2917 = vadd.f32 0.0, %v2916
      %v2918 = vpop.f32.mrb[0].mxu0
      %2919 = vmatprep.mubr.bf16.mxu0 0
      %2920 = vmatmul.mubr.bf16.gmra.mrb[0].mxu0 %v2767
      %v2921 = vpop.f32.mrb[0].mxu0
      %v2922 = vadd.f32 0.0, %v2921
      %v2923 = vpop.f32.mrb[0].mxu0
      %v2924 = vpop.f32.mrb[0].mxu0
      %v2925 = vadd.f32 0.0, %v2924
      %v2926 = vpop.f32.mrb[0].mxu0
      %2927 = vmatprep.mubr.bf16.mxu0 0
      %2928 = vmatmul.mubr.bf16.gmra.mrb[0].mxu0 %v2770
      %v2929 = vpop.f32.mrb[0].mxu0
      %v2930 = vadd.f32 0.0, %v2929
      %v2931 = vpop.f32.mrb[0].mxu0
      %v2932 = vpop.f32.mrb[0].mxu0
      %v2933 = vadd.f32 0.0, %v2932
      %v2934 = vpop.f32.mrb[0].mxu0
      %2935 = vdwg.mxu0
      %v2936 = vadd.f32 %v2674, %v2810
      %v2937 = vadd.f32 %v2675, %v2813
      %v2938 = vadd.f32 %v2676, %v2818
      %v2939 = vadd.f32 %v2677, %v2821
      %v2940 = vadd.f32 %v2678, %v2826
      %v2941 = vadd.f32 %v2679, %v2829
      %v2942 = vadd.f32 %v2680, %v2834
      %v2943 = vadd.f32 %v2681, %v2837
      %v2944 = vadd.f32 %v2682, %v2842
      %v2945 = vadd.f32 %v2683, %v2845
      %v2946 = vadd.f32 %v2684, %v2850
      %v2947 = vadd.f32 %v2685, %v2853
      %v2948 = vadd.f32 %v2686, %v2858
      %v2949 = vadd.f32 %v2687, %v2861
      %v2950 = vadd.f32 %v2688, %v2866
      %v2951 = vadd.f32 %v2689, %v2869
      %v2952 = vadd.f32 %v2690, %v2874
      %v2953 = vadd.f32 %v2691, %v2877
      %v2954 = vadd.f32 %v2692, %v2882
      %v2955 = vadd.f32 %v2693, %v2885
      %v2956 = vadd.f32 %v2694, %v2890
      %v2957 = vadd.f32 %v2695, %v2893
      %v2958 = vadd.f32 %v2696, %v2898
      %v2959 = vadd.f32 %v2697, %v2901
      %v2960 = vadd.f32 %v2698, %v2906
      %v2961 = vadd.f32 %v2699, %v2909
      %v2962 = vadd.f32 %v2700, %v2914
      %v2963 = vadd.f32 %v2701, %v2917
      %v2964 = vadd.f32 %v2702, %v2922
      %v2965 = vadd.f32 %v2703, %v2925
      %v2966 = vadd.f32 %v2704, %v2930
      %v2967 = vadd.f32 %v2705, %v2933
      %2968 = vst.msk [vmem:[#allocation3] sm:$0xff] %vm1165, %v2936
      %2969 = vst.msk [vmem:[#allocation3 + $0x8] sm:$0xff] %vm1165, %v2937
      %2970 = vst.msk [vmem:[#allocation3 + $0x10] sm:$0xff] %vm1165, %v2938
      %2971 = vst.msk [vmem:[#allocation3 + $0x18] sm:$0xff] %vm1165, %v2939
      %2972 = vst.msk [vmem:[#allocation3 + $0x20] sm:$0xff] %vm1165, %v2940
      %2973 = vst.msk [vmem:[#allocation3 + $0x28] sm:$0xff] %vm1165, %v2941
      %2974 = vst.msk [vmem:[#allocation3 + $0x30] sm:$0xff] %vm1165, %v2942
      %2975 = vst.msk [vmem:[#allocation3 + $0x38] sm:$0xff] %vm1165, %v2943
      %2976 = vst.msk [vmem:[#allocation3 + $0x40] sm:$0xff] %vm1165, %v2944
      %2977 = vst.msk [vmem:[#allocation3 + $0x48] sm:$0xff] %vm1165, %v2945
      %2978 = vst.msk [vmem:[#allocation3 + $0x50] sm:$0xff] %vm1165, %v2946
      %2979 = vst.msk [vmem:[#allocation3 + $0x58] sm:$0xff] %vm1165, %v2947
      %2980 = vst.msk [vmem:[#allocation3 + $0x60] sm:$0xff] %vm1165, %v2948
      %2981 = vst.msk [vmem:[#allocation3 + $0x68] sm:$0xff] %vm1165, %v2949
      %2982 = vst.msk [vmem:[#allocation3 + $0x70] sm:$0xff] %vm1165, %v2950
      %2983 = vst.msk [vmem:[#allocation3 + $0x78] sm:$0xff] %vm1165, %v2951
      %2984 = vst.msk [vmem:[#allocation3 + $0x80] sm:$0xff] %vm1165, %v2952
      %2985 = vst.msk [vmem:[#allocation3 + $0x88] sm:$0xff] %vm1165, %v2953
      %2986 = vst.msk [vmem:[#allocation3 + $0x90] sm:$0xff] %vm1165, %v2954
      %2987 = vst.msk [vmem:[#allocation3 + $0x98] sm:$0xff] %vm1165, %v2955
      %2988 = vst.msk [vmem:[#allocation3 + $0xa0] sm:$0xff] %vm1165, %v2956
      %2989 = vst.msk [vmem:[#allocation3 + $0xa8] sm:$0xff] %vm1165, %v2957
      %2990 = vst.msk [vmem:[#allocation3 + $0xb0] sm:$0xff] %vm1165, %v2958
      %2991 = vst.msk [vmem:[#allocation3 + $0xb8] sm:$0xff] %vm1165, %v2959
      %2992 = vst.msk [vmem:[#allocation3 + $0xc0] sm:$0xff] %vm1165, %v2960
      %2993 = vst.msk [vmem:[#allocation3 + $0xc8] sm:$0xff] %vm1165, %v2961
      %2994 = vst.msk [vmem:[#allocation3 + $0xd0] sm:$0xff] %vm1165, %v2962
      %2995 = vst.msk [vmem:[#allocation3 + $0xd8] sm:$0xff] %vm1165, %v2963
      %2996 = vst.msk [vmem:[#allocation3 + $0xe0] sm:$0xff] %vm1165, %v2964
      %2997 = vst.msk [vmem:[#allocation3 + $0xe8] sm:$0xff] %vm1165, %v2965
      %2998 = vst.msk [vmem:[#allocation3 + $0xf0] sm:$0xff] %vm1165, %v2966
      %2999 = vst.msk [vmem:[#allocation3 + $0xf8] sm:$0xff] %vm1165, %v2967
      %v3000 = vld [vmem:[%s1164] sm:$0xff]
      %v3001 = vld [vmem:[%s1164 + $0x8] sm:$0xff]
      %v3002 = vld [vmem:[%s1164 + $0x10] sm:$0xff]
      %v3003 = vld [vmem:[%s1164 + $0x18] sm:$0xff]
      %v3004 = vld [vmem:[%s1164 + $0x20] sm:$0xff]
      %v3005 = vld [vmem:[%s1164 + $0x28] sm:$0xff]
      %v3006 = vld [vmem:[%s1164 + $0x30] sm:$0xff]
      %v3007 = vld [vmem:[%s1164 + $0x38] sm:$0xff]
      %v3008 = vld [vmem:[%s1164 + $0x40] sm:$0xff]
      %v3009 = vld [vmem:[%s1164 + $0x48] sm:$0xff]
      %v3010 = vld [vmem:[%s1164 + $0x50] sm:$0xff]
      %v3011 = vld [vmem:[%s1164 + $0x58] sm:$0xff]
      %v3012 = vld [vmem:[%s1164 + $0x60] sm:$0xff]
      %v3013 = vld [vmem:[%s1164 + $0x68] sm:$0xff]
      %v3014 = vld [vmem:[%s1164 + $0x70] sm:$0xff]
      %v3015 = vld [vmem:[%s1164 + $0x78] sm:$0xff]
      %v3016 = vld [vmem:[%s1164 + $0x80] sm:$0xff]
      %v3017 = vld [vmem:[%s1164 + $0x88] sm:$0xff]
      %v3018 = vld [vmem:[%s1164 + $0x90] sm:$0xff]
      %v3019 = vld [vmem:[%s1164 + $0x98] sm:$0xff]
      %v3020 = vld [vmem:[%s1164 + $0xa0] sm:$0xff]
      %v3021 = vld [vmem:[%s1164 + $0xa8] sm:$0xff]
      %v3022 = vld [vmem:[%s1164 + $0xb0] sm:$0xff]
      %v3023 = vld [vmem:[%s1164 + $0xb8] sm:$0xff]
      %v3024 = vld [vmem:[%s1164 + $0xc0] sm:$0xff]
      %v3025 = vld [vmem:[%s1164 + $0xc8] sm:$0xff]
      %v3026 = vld [vmem:[%s1164 + $0xd0] sm:$0xff]
      %v3027 = vld [vmem:[%s1164 + $0xd8] sm:$0xff]
      %v3028 = vld [vmem:[%s1164 + $0xe0] sm:$0xff]
      %v3029 = vld [vmem:[%s1164 + $0xe8] sm:$0xff]
      %v3030 = vld [vmem:[%s1164 + $0xf0] sm:$0xff]
      %v3031 = vld [vmem:[%s1164 + $0xf8] sm:$0xff]
      %v3032 = vld [vmem:[#allocation3] sm:$0xff]
      %v3033 = vld [vmem:[#allocation3 + $0x8] sm:$0xff]
      %v3034 = vld [vmem:[#allocation3 + $0x10] sm:$0xff]
      %v3035 = vld [vmem:[#allocation3 + $0x18] sm:$0xff]
      %v3036 = vld [vmem:[#allocation3 + $0x20] sm:$0xff]
      %v3037 = vld [vmem:[#allocation3 + $0x28] sm:$0xff]
      %v3038 = vld [vmem:[#allocation3 + $0x30] sm:$0xff]
      %v3039 = vld [vmem:[#allocation3 + $0x38] sm:$0xff]
      %v3040 = vld [vmem:[#allocation3 + $0x40] sm:$0xff]
      %v3041 = vld [vmem:[#allocation3 + $0x48] sm:$0xff]
      %v3042 = vld [vmem:[#allocation3 + $0x50] sm:$0xff]
      %v3043 = vld [vmem:[#allocation3 + $0x58] sm:$0xff]
      %v3044 = vld [vmem:[#allocation3 + $0x60] sm:$0xff]
      %v3045 = vld [vmem:[#allocation3 + $0x68] sm:$0xff]
      %v3046 = vld [vmem:[#allocation3 + $0x70] sm:$0xff]
      %v3047 = vld [vmem:[#allocation3 + $0x78] sm:$0xff]
      %v3048 = vld [vmem:[#allocation3 + $0x80] sm:$0xff]
      %v3049 = vld [vmem:[#allocation3 + $0x88] sm:$0xff]
      %v3050 = vld [vmem:[#allocation3 + $0x90] sm:$0xff]
      %v3051 = vld [vmem:[#allocation3 + $0x98] sm:$0xff]
      %v3052 = vld [vmem:[#allocation3 + $0xa0] sm:$0xff]
      %v3053 = vld [vmem:[#allocation3 + $0xa8] sm:$0xff]
      %v3054 = vld [vmem:[#allocation3 + $0xb0] sm:$0xff]
      %v3055 = vld [vmem:[#allocation3 + $0xb8] sm:$0xff]
      %v3056 = vld [vmem:[#allocation3 + $0xc0] sm:$0xff]
      %v3057 = vld [vmem:[#allocation3 + $0xc8] sm:$0xff]
      %v3058 = vld [vmem:[#allocation3 + $0xd0] sm:$0xff]
      %v3059 = vld [vmem:[#allocation3 + $0xd8] sm:$0xff]
      %v3060 = vld [vmem:[#allocation3 + $0xe0] sm:$0xff]
      %v3061 = vld [vmem:[#allocation3 + $0xe8] sm:$0xff]
      %v3062 = vld [vmem:[#allocation3 + $0xf0] sm:$0xff]
      %v3063 = vld [vmem:[#allocation3 + $0xf8] sm:$0xff]
      %v3064 = vpack.c.bf16 %v3001, %v3000
      %v3065 = vpack.c.bf16 %v3003, %v3002
      %v3066 = vpack.c.bf16 %v3005, %v3004
      %v3067 = vpack.c.bf16 %v3007, %v3006
      %v3068 = vpack.c.bf16 %v3009, %v3008
      %v3069 = vpack.c.bf16 %v3011, %v3010
      %v3070 = vpack.c.bf16 %v3013, %v3012
      %v3071 = vpack.c.bf16 %v3015, %v3014
      %v3072 = vpack.c.bf16 %v3017, %v3016
      %v3073 = vpack.c.bf16 %v3019, %v3018
      %v3074 = vpack.c.bf16 %v3021, %v3020
      %v3075 = vpack.c.bf16 %v3023, %v3022
      %v3076 = vpack.c.bf16 %v3025, %v3024
      %v3077 = vpack.c.bf16 %v3027, %v3026
      %v3078 = vpack.c.bf16 %v3029, %v3028
      %v3079 = vpack.c.bf16 %v3031, %v3030
      %s3080 = scalar_lea.vmem %s7, 16
      %v3081 = vld [vmem:[%s3080] sm:$0xf]
      %v3083 = vsel %vm1165, %v3064, 0
      %v3086 = vsel %vm1165, %v3065, 0
      %v3089 = vsel %vm1165, %v3066, 0
      %v3092 = vsel %vm1165, %v3067, 0
      %v3095 = vsel %vm1165, %v3068, 0
      %v3098 = vsel %vm1165, %v3069, 0
      %v3101 = vsel %vm1165, %v3070, 0
      %v3104 = vsel %vm1165, %v3071, 0
      %v3107 = vsel %vm1165, %v3072, 0
      %v3110 = vsel %vm1165, %v3073, 0
      %v3113 = vsel %vm1165, %v3074, 0
      %v3116 = vsel %vm1165, %v3075, 0
      %v3119 = vsel %vm1165, %v3076, 0
      %v3122 = vsel %vm1165, %v3077, 0
      %v3125 = vsel %vm1165, %v3078, 0
      %v3128 = vsel %vm1165, %v3079, 0
      %v3131 = vsel %vm1696, %v3081, 0
      %3133 = vmatprep.subr.bf16.mxu0 0
      %3134 = vmatpush1.bf16.msra.mxu0 %v3131
      %3135 = vmatprep.subr.bf16.mxu0 0
      %3136 = vmatpush1.bf16.msra.mxu0 0
      %3137 = vmatprep.subr.bf16.mxu0 0
      %3138 = vmatpush1.bf16.msra.mxu0 0
      %3139 = vmatprep.subr.bf16.mxu0 0
      %3140 = vmatpush1.bf16.msra.mxu0 0
      %3141 = vmatprep.subr.bf16.mxu0 0
      %3142 = vmatpush1.bf16.msra.mxu0 0
      %3143 = vmatprep.subr.bf16.mxu0 0
      %3144 = vmatpush1.bf16.msra.mxu0 0
      %3145 = vmatprep.subr.bf16.mxu0 0
      %3146 = vmatpush1.bf16.msra.mxu0 0
      %3147 = vmatprep.subr.bf16.mxu0 0
      %3148 = vmatpush1.bf16.msra.mxu0 0
      %3149 = vmatprep.subr.bf16.mxu0 0
      %3150 = vmatpush1.bf16.msra.mxu0 0
      %3151 = vmatprep.subr.bf16.mxu0 0
      %3152 = vmatpush1.bf16.msra.mxu0 0
      %3153 = vmatprep.subr.bf16.mxu0 0
      %3154 = vmatpush1.bf16.msra.mxu0 0
      %3155 = vmatprep.subr.bf16.mxu0 0
      %3156 = vmatpush1.bf16.msra.mxu0 0
      %3157 = vmatprep.subr.bf16.mxu0 0
      %3158 = vmatpush1.bf16.msra.mxu0 0
      %3159 = vmatprep.subr.bf16.mxu0 0
      %3160 = vmatpush1.bf16.msra.mxu0 0
      %3161 = vmatprep.subr.bf16.mxu0 0
      %3162 = vmatpush1.bf16.msra.mxu0 0
      %3163 = vmatprep.subr.bf16.mxu0 0
      %3164 = vmatpush1.bf16.msra.mxu0 0
      %3165 = vmatprep.mubr.bf16.mxu0 0
      %3166 = vmatmul.mubr.bf16.gmra.mrb[0].mxu0 %v3083
      %v3167 = vpop.f32.mrb[0].mxu0
      %v3168 = vadd.f32 0.0, %v3167
      %v3169 = vpop.f32.mrb[0].mxu0
      %v3170 = vpop.f32.mrb[0].mxu0
      %v3171 = vadd.f32 0.0, %v3170
      %v3172 = vpop.f32.mrb[0].mxu0
      %3173 = vmatprep.mubr.bf16.mxu0 0
      %3174 = vmatmul.mubr.bf16.gmra.mrb[0].mxu0 %v3086
      %v3175 = vpop.f32.mrb[0].mxu0
      %v3176 = vadd.f32 0.0, %v3175
      %v3177 = vpop.f32.mrb[0].mxu0
      %v3178 = vpop.f32.mrb[0].mxu0
      %v3179 = vadd.f32 0.0, %v3178
      %v3180 = vpop.f32.mrb[0].mxu0
      %3181 = vmatprep.mubr.bf16.mxu0 0
      %3182 = vmatmul.mubr.bf16.gmra.mrb[0].mxu0 %v3089
      %v3183 = vpop.f32.mrb[0].mxu0
      %v3184 = vadd.f32 0.0, %v3183
      %v3185 = vpop.f32.mrb[0].mxu0
      %v3186 = vpop.f32.mrb[0].mxu0
      %v3187 = vadd.f32 0.0, %v3186
      %v3188 = vpop.f32.mrb[0].mxu0
      %3189 = vmatprep.mubr.bf16.mxu0 0
      %3190 = vmatmul.mubr.bf16.gmra.mrb[0].mxu0 %v3092
      %v3191 = vpop.f32.mrb[0].mxu0
      %v3192 = vadd.f32 0.0, %v3191
      %v3193 = vpop.f32.mrb[0].mxu0
      %v3194 = vpop.f32.mrb[0].mxu0
      %v3195 = vadd.f32 0.0, %v3194
      %v3196 = vpop.f32.mrb[0].mxu0
      %3197 = vmatprep.mubr.bf16.mxu0 0
      %3198 = vmatmul.mubr.bf16.gmra.mrb[0].mxu0 %v3095
      %v3199 = vpop.f32.mrb[0].mxu0
      %v3200 = vadd.f32 0.0, %v3199
      %v3201 = vpop.f32.mrb[0].mxu0
      %v3202 = vpop.f32.mrb[0].mxu0
      %v3203 = vadd.f32 0.0, %v3202
      %v3204 = vpop.f32.mrb[0].mxu0
      %3205 = vmatprep.mubr.bf16.mxu0 0
      %3206 = vmatmul.mubr.bf16.gmra.mrb[0].mxu0 %v3098
      %v3207 = vpop.f32.mrb[0].mxu0
      %v3208 = vadd.f32 0.0, %v3207
      %v3209 = vpop.f32.mrb[0].mxu0
      %v3210 = vpop.f32.mrb[0].mxu0
      %v3211 = vadd.f32 0.0, %v3210
      %v3212 = vpop.f32.mrb[0].mxu0
      %3213 = vmatprep.mubr.bf16.mxu0 0
      %3214 = vmatmul.mubr.bf16.gmra.mrb[0].mxu0 %v3101
      %v3215 = vpop.f32.mrb[0].mxu0
      %v3216 = vadd.f32 0.0, %v3215
      %v3217 = vpop.f32.mrb[0].mxu0
      %v3218 = vpop.f32.mrb[0].mxu0
      %v3219 = vadd.f32 0.0, %v3218
      %v3220 = vpop.f32.mrb[0].mxu0
      %3221 = vmatprep.mubr.bf16.mxu0 0
      %3222 = vmatmul.mubr.bf16.gmra.mrb[0].mxu0 %v3104
      %v3223 = vpop.f32.mrb[0].mxu0
      %v3224 = vadd.f32 0.0, %v3223
      %v3225 = vpop.f32.mrb[0].mxu0
      %v3226 = vpop.f32.mrb[0].mxu0
      %v3227 = vadd.f32 0.0, %v3226
      %v3228 = vpop.f32.mrb[0].mxu0
      %3229 = vmatprep.mubr.bf16.mxu0 0
      %3230 = vmatmul.mubr.bf16.gmra.mrb[0].mxu0 %v3107
      %v3231 = vpop.f32.mrb[0].mxu0
      %v3232 = vadd.f32 0.0, %v3231
      %v3233 = vpop.f32.mrb[0].mxu0
      %v3234 = vpop.f32.mrb[0].mxu0
      %v3235 = vadd.f32 0.0, %v3234
      %v3236 = vpop.f32.mrb[0].mxu0
      %3237 = vmatprep.mubr.bf16.mxu0 0
      %3238 = vmatmul.mubr.bf16.gmra.mrb[0].mxu0 %v3110
      %v3239 = vpop.f32.mrb[0].mxu0
      %v3240 = vadd.f32 0.0, %v3239
      %v3241 = vpop.f32.mrb[0].mxu0
      %v3242 = vpop.f32.mrb[0].mxu0
      %v3243 = vadd.f32 0.0, %v3242
      %v3244 = vpop.f32.mrb[0].mxu0
      %3245 = vmatprep.mubr.bf16.mxu0 0
      %3246 = vmatmul.mubr.bf16.gmra.mrb[0].mxu0 %v3113
      %v3247 = vpop.f32.mrb[0].mxu0
      %v3248 = vadd.f32 0.0, %v3247
      %v3249 = vpop.f32.mrb[0].mxu0
      %v3250 = vpop.f32.mrb[0].mxu0
      %v3251 = vadd.f32 0.0, %v3250
      %v3252 = vpop.f32.mrb[0].mxu0
      %3253 = vmatprep.mubr.bf16.mxu0 0
      %3254 = vmatmul.mubr.bf16.gmra.mrb[0].mxu0 %v3116
      %v3255 = vpop.f32.mrb[0].mxu0
      %v3256 = vadd.f32 0.0, %v3255
      %v3257 = vpop.f32.mrb[0].mxu0
      %v3258 = vpop.f32.mrb[0].mxu0
      %v3259 = vadd.f32 0.0, %v3258
      %v3260 = vpop.f32.mrb[0].mxu0
      %3261 = vmatprep.mubr.bf16.mxu0 0
      %3262 = vmatmul.mubr.bf16.gmra.mrb[0].mxu0 %v3119
      %v3263 = vpop.f32.mrb[0].mxu0
      %v3264 = vadd.f32 0.0, %v3263
      %v3265 = vpop.f32.mrb[0].mxu0
      %v3266 = vpop.f32.mrb[0].mxu0
      %v3267 = vadd.f32 0.0, %v3266
      %v3268 = vpop.f32.mrb[0].mxu0
      %3269 = vmatprep.mubr.bf16.mxu0 0
      %3270 = vmatmul.mubr.bf16.gmra.mrb[0].mxu0 %v3122
      %v3271 = vpop.f32.mrb[0].mxu0
      %v3272 = vadd.f32 0.0, %v3271
      %v3273 = vpop.f32.mrb[0].mxu0
      %v3274 = vpop.f32.mrb[0].mxu0
      %v3275 = vadd.f32 0.0, %v3274
      %v3276 = vpop.f32.mrb[0].mxu0
      %3277 = vmatprep.mubr.bf16.mxu0 0
      %3278 = vmatmul.mubr.bf16.gmra.mrb[0].mxu0 %v3125
      %v3279 = vpop.f32.mrb[0].mxu0
      %v3280 = vadd.f32 0.0, %v3279
      %v3281 = vpop.f32.mrb[0].mxu0
      %v3282 = vpop.f32.mrb[0].mxu0
      %v3283 = vadd.f32 0.0, %v3282
      %v3284 = vpop.f32.mrb[0].mxu0
      %3285 = vmatprep.mubr.bf16.mxu0 0
      %3286 = vmatmul.mubr.bf16.gmra.mrb[0].mxu0 %v3128
      %v3287 = vpop.f32.mrb[0].mxu0
      %v3288 = vadd.f32 0.0, %v3287
      %v3289 = vpop.f32.mrb[0].mxu0
      %v3290 = vpop.f32.mrb[0].mxu0
      %v3291 = vadd.f32 0.0, %v3290
      %v3292 = vpop.f32.mrb[0].mxu0
      %3293 = vdwg.mxu0
      %v3294 = vadd.f32 %v3032, %v3168
      %v3295 = vadd.f32 %v3033, %v3171
      %v3296 = vadd.f32 %v3034, %v3176
      %v3297 = vadd.f32 %v3035, %v3179
      %v3298 = vadd.f32 %v3036, %v3184
      %v3299 = vadd.f32 %v3037, %v3187
      %v3300 = vadd.f32 %v3038, %v3192
      %v3301 = vadd.f32 %v3039, %v3195
      %v3302 = vadd.f32 %v3040, %v3200
      %v3303 = vadd.f32 %v3041, %v3203
      %v3304 = vadd.f32 %v3042, %v3208
      %v3305 = vadd.f32 %v3043, %v3211
      %v3306 = vadd.f32 %v3044, %v3216
      %v3307 = vadd.f32 %v3045, %v3219
      %v3308 = vadd.f32 %v3046, %v3224
      %v3309 = vadd.f32 %v3047, %v3227
      %v3310 = vadd.f32 %v3048, %v3232
      %v3311 = vadd.f32 %v3049, %v3235
      %v3312 = vadd.f32 %v3050, %v3240
      %v3313 = vadd.f32 %v3051, %v3243
      %v3314 = vadd.f32 %v3052, %v3248
      %v3315 = vadd.f32 %v3053, %v3251
      %v3316 = vadd.f32 %v3054, %v3256
      %v3317 = vadd.f32 %v3055, %v3259
      %v3318 = vadd.f32 %v3056, %v3264
      %v3319 = vadd.f32 %v3057, %v3267
      %v3320 = vadd.f32 %v3058, %v3272
      %v3321 = vadd.f32 %v3059, %v3275
      %v3322 = vadd.f32 %v3060, %v3280
      %v3323 = vadd.f32 %v3061, %v3283
      %v3324 = vadd.f32 %v3062, %v3288
      %v3325 = vadd.f32 %v3063, %v3291
      %3326 = vst.msk [vmem:[#allocation3] sm:$0xff] %vm1165, %v3294
      %3327 = vst.msk [vmem:[#allocation3 + $0x8] sm:$0xff] %vm1165, %v3295
      %3328 = vst.msk [vmem:[#allocation3 + $0x10] sm:$0xff] %vm1165, %v3296
      %3329 = vst.msk [vmem:[#allocation3 + $0x18] sm:$0xff] %vm1165, %v3297
      %3330 = vst.msk [vmem:[#allocation3 + $0x20] sm:$0xff] %vm1165, %v3298
      %3331 = vst.msk [vmem:[#allocation3 + $0x28] sm:$0xff] %vm1165, %v3299
      %3332 = vst.msk [vmem:[#allocation3 + $0x30] sm:$0xff] %vm1165, %v3300
      %3333 = vst.msk [vmem:[#allocation3 + $0x38] sm:$0xff] %vm1165, %v3301
      %3334 = vst.msk [vmem:[#allocation3 + $0x40] sm:$0xff] %vm1165, %v3302
      %3335 = vst.msk [vmem:[#allocation3 + $0x48] sm:$0xff] %vm1165, %v3303
      %3336 = vst.msk [vmem:[#allocation3 + $0x50] sm:$0xff] %vm1165, %v3304
      %3337 = vst.msk [vmem:[#allocation3 + $0x58] sm:$0xff] %vm1165, %v3305
      %3338 = vst.msk [vmem:[#allocation3 + $0x60] sm:$0xff] %vm1165, %v3306
      %3339 = vst.msk [vmem:[#allocation3 + $0x68] sm:$0xff] %vm1165, %v3307
      %3340 = vst.msk [vmem:[#allocation3 + $0x70] sm:$0xff] %vm1165, %v3308
      %3341 = vst.msk [vmem:[#allocation3 + $0x78] sm:$0xff] %vm1165, %v3309
      %3342 = vst.msk [vmem:[#allocation3 + $0x80] sm:$0xff] %vm1165, %v3310
      %3343 = vst.msk [vmem:[#allocation3 + $0x88] sm:$0xff] %vm1165, %v3311
      %3344 = vst.msk [vmem:[#allocation3 + $0x90] sm:$0xff] %vm1165, %v3312
      %3345 = vst.msk [vmem:[#allocation3 + $0x98] sm:$0xff] %vm1165, %v3313
      %3346 = vst.msk [vmem:[#allocation3 + $0xa0] sm:$0xff] %vm1165, %v3314
      %3347 = vst.msk [vmem:[#allocation3 + $0xa8] sm:$0xff] %vm1165, %v3315
      %3348 = vst.msk [vmem:[#allocation3 + $0xb0] sm:$0xff] %vm1165, %v3316
      %3349 = vst.msk [vmem:[#allocation3 + $0xb8] sm:$0xff] %vm1165, %v3317
      %3350 = vst.msk [vmem:[#allocation3 + $0xc0] sm:$0xff] %vm1165, %v3318
      %3351 = vst.msk [vmem:[#allocation3 + $0xc8] sm:$0xff] %vm1165, %v3319
      %3352 = vst.msk [vmem:[#allocation3 + $0xd0] sm:$0xff] %vm1165, %v3320
      %3353 = vst.msk [vmem:[#allocation3 + $0xd8] sm:$0xff] %vm1165, %v3321
      %3354 = vst.msk [vmem:[#allocation3 + $0xe0] sm:$0xff] %vm1165, %v3322
      %3355 = vst.msk [vmem:[#allocation3 + $0xe8] sm:$0xff] %vm1165, %v3323
      %3356 = vst.msk [vmem:[#allocation3 + $0xf0] sm:$0xff] %vm1165, %v3324
      %3357 = vst.msk [vmem:[#allocation3 + $0xf8] sm:$0xff] %vm1165, %v3325
      %s3358 = scalar_lea.vmem [#allocation2], 592
      %v3359 = vld [vmem:[%s3358] sm:$0xff]
      %v3360 = vld [vmem:[%s3358 + $0x8] sm:$0xff]
      %v3361 = vld [vmem:[%s3358 + $0x10] sm:$0xff]
      %v3362 = vld [vmem:[%s3358 + $0x18] sm:$0xff]
      %v3363 = vld [vmem:[%s3358 + $0x20] sm:$0xff]
      %v3364 = vld [vmem:[%s3358 + $0x28] sm:$0xff]
      %v3365 = vld [vmem:[%s3358 + $0x30] sm:$0xff]
      %v3366 = vld [vmem:[%s3358 + $0x38] sm:$0xff]
      %v3367 = vld [vmem:[%s3358 + $0x40] sm:$0xff]
      %v3368 = vld [vmem:[%s3358 + $0x48] sm:$0xff]
      %v3369 = vld [vmem:[%s3358 + $0x50] sm:$0xff]
      %v3370 = vld [vmem:[%s3358 + $0x58] sm:$0xff]
      %v3371 = vld [vmem:[%s3358 + $0x60] sm:$0xff]
      %v3372 = vld [vmem:[%s3358 + $0x68] sm:$0xff]
      %v3373 = vld [vmem:[%s3358 + $0x70] sm:$0xff]
      %v3374 = vld [vmem:[%s3358 + $0x78] sm:$0xff]
      %v3375 = vld [vmem:[%s3358 + $0x80] sm:$0xff]
      %v3376 = vld [vmem:[%s3358 + $0x88] sm:$0xff]
      %v3377 = vld [vmem:[%s3358 + $0x90] sm:$0xff]
      %v3378 = vld [vmem:[%s3358 + $0x98] sm:$0xff]
      %v3379 = vld [vmem:[%s3358 + $0xa0] sm:$0xff]
      %v3380 = vld [vmem:[%s3358 + $0xa8] sm:$0xff]
      %v3381 = vld [vmem:[%s3358 + $0xb0] sm:$0xff]
      %v3382 = vld [vmem:[%s3358 + $0xb8] sm:$0xff]
      %v3383 = vld [vmem:[%s3358 + $0xc0] sm:$0xff]
      %v3384 = vld [vmem:[%s3358 + $0xc8] sm:$0xff]
      %v3385 = vld [vmem:[%s3358 + $0xd0] sm:$0xff]
      %v3386 = vld [vmem:[%s3358 + $0xd8] sm:$0xff]
      %v3387 = vld [vmem:[%s3358 + $0xe0] sm:$0xff]
      %v3388 = vld [vmem:[%s3358 + $0xe8] sm:$0xff]
      %v3389 = vld [vmem:[%s3358 + $0xf0] sm:$0xff]
      %v3390 = vld [vmem:[%s3358 + $0xf8] sm:$0xff]
      %v3391 = vld [vmem:[#allocation3] sm:$0xff]
      %v3392 = vld [vmem:[#allocation3 + $0x8] sm:$0xff]
      %v3393 = vld [vmem:[#allocation3 + $0x10] sm:$0xff]
      %v3394 = vld [vmem:[#allocation3 + $0x18] sm:$0xff]
      %v3395 = vld [vmem:[#allocation3 + $0x20] sm:$0xff]
      %v3396 = vld [vmem:[#allocation3 + $0x28] sm:$0xff]
      %v3397 = vld [vmem:[#allocation3 + $0x30] sm:$0xff]
      %v3398 = vld [vmem:[#allocation3 + $0x38] sm:$0xff]
      %v3399 = vld [vmem:[#allocation3 + $0x40] sm:$0xff]
      %v3400 = vld [vmem:[#allocation3 + $0x48] sm:$0xff]
      %v3401 = vld [vmem:[#allocation3 + $0x50] sm:$0xff]
      %v3402 = vld [vmem:[#allocation3 + $0x58] sm:$0xff]
      %v3403 = vld [vmem:[#allocation3 + $0x60] sm:$0xff]
      %v3404 = vld [vmem:[#allocation3 + $0x68] sm:$0xff]
      %v3405 = vld [vmem:[#allocation3 + $0x70] sm:$0xff]
      %v3406 = vld [vmem:[#allocation3 + $0x78] sm:$0xff]
      %v3407 = vld [vmem:[#allocation3 + $0x80] sm:$0xff]
      %v3408 = vld [vmem:[#allocation3 + $0x88] sm:$0xff]
      %v3409 = vld [vmem:[#allocation3 + $0x90] sm:$0xff]
      %v3410 = vld [vmem:[#allocation3 + $0x98] sm:$0xff]
      %v3411 = vld [vmem:[#allocation3 + $0xa0] sm:$0xff]
      %v3412 = vld [vmem:[#allocation3 + $0xa8] sm:$0xff]
      %v3413 = vld [vmem:[#allocation3 + $0xb0] sm:$0xff]
      %v3414 = vld [vmem:[#allocation3 + $0xb8] sm:$0xff]
      %v3415 = vld [vmem:[#allocation3 + $0xc0] sm:$0xff]
      %v3416 = vld [vmem:[#allocation3 + $0xc8] sm:$0xff]
      %v3417 = vld [vmem:[#allocation3 + $0xd0] sm:$0xff]
      %v3418 = vld [vmem:[#allocation3 + $0xd8] sm:$0xff]
      %v3419 = vld [vmem:[#allocation3 + $0xe0] sm:$0xff]
      %v3420 = vld [vmem:[#allocation3 + $0xe8] sm:$0xff]
      %v3421 = vld [vmem:[#allocation3 + $0xf0] sm:$0xff]
      %v3422 = vld [vmem:[#allocation3 + $0xf8] sm:$0xff]
      %v3423 = vpack.c.bf16 %v3360, %v3359
      %v3424 = vpack.c.bf16 %v3362, %v3361
      %v3425 = vpack.c.bf16 %v3364, %v3363
      %v3426 = vpack.c.bf16 %v3366, %v3365
      %v3427 = vpack.c.bf16 %v3368, %v3367
      %v3428 = vpack.c.bf16 %v3370, %v3369
      %v3429 = vpack.c.bf16 %v3372, %v3371
      %v3430 = vpack.c.bf16 %v3374, %v3373
      %v3431 = vpack.c.bf16 %v3376, %v3375
      %v3432 = vpack.c.bf16 %v3378, %v3377
      %v3433 = vpack.c.bf16 %v3380, %v3379
      %v3434 = vpack.c.bf16 %v3382, %v3381
      %v3435 = vpack.c.bf16 %v3384, %v3383
      %v3436 = vpack.c.bf16 %v3386, %v3385
      %v3437 = vpack.c.bf16 %v3388, %v3387
      %v3438 = vpack.c.bf16 %v3390, %v3389
      %s3439 = scalar_lea.vmem %s7, 20
      %v3440 = vld [vmem:[%s3439] sm:$0xf]
      %v3442 = vsel %vm1165, %v3423, 0
      %v3445 = vsel %vm1165, %v3424, 0
      %v3448 = vsel %vm1165, %v3425, 0
      %v3451 = vsel %vm1165, %v3426, 0
      %v3454 = vsel %vm1165, %v3427, 0
      %v3457 = vsel %vm1165, %v3428, 0
      %v3460 = vsel %vm1165, %v3429, 0
      %v3463 = vsel %vm1165, %v3430, 0
      %v3466 = vsel %vm1165, %v3431, 0
      %v3469 = vsel %vm1165, %v3432, 0
      %v3472 = vsel %vm1165, %v3433, 0
      %v3475 = vsel %vm1165, %v3434, 0
      %v3478 = vsel %vm1165, %v3435, 0
      %v3481 = vsel %vm1165, %v3436, 0
      %v3484 = vsel %vm1165, %v3437, 0
      %v3487 = vsel %vm1165, %v3438, 0
      %v3490 = vsel %vm1696, %v3440, 0
      %3492 = vmatprep.subr.bf16.mxu0 0
      %3493 = vmatpush1.bf16.msra.mxu0 %v3490
      %3494 = vmatprep.subr.bf16.mxu0 0
      %3495 = vmatpush1.bf16.msra.mxu0 0
      %3496 = vmatprep.subr.bf16.mxu0 0
      %3497 = vmatpush1.bf16.msra.mxu0 0
      %3498 = vmatprep.subr.bf16.mxu0 0
      %3499 = vmatpush1.bf16.msra.mxu0 0
      %3500 = vmatprep.subr.bf16.mxu0 0
      %3501 = vmatpush1.bf16.msra.mxu0 0
      %3502 = vmatprep.subr.bf16.mxu0 0
      %3503 = vmatpush1.bf16.msra.mxu0 0
      %3504 = vmatprep.subr.bf16.mxu0 0
      %3505 = vmatpush1.bf16.msra.mxu0 0
      %3506 = vmatprep.subr.bf16.mxu0 0
      %3507 = vmatpush1.bf16.msra.mxu0 0
      %3508 = vmatprep.subr.bf16.mxu0 0
      %3509 = vmatpush1.bf16.msra.mxu0 0
      %3510 = vmatprep.subr.bf16.mxu0 0
      %3511 = vmatpush1.bf16.msra.mxu0 0
      %3512 = vmatprep.subr.bf16.mxu0 0
      %3513 = vmatpush1.bf16.msra.mxu0 0
      %3514 = vmatprep.subr.bf16.mxu0 0
      %3515 = vmatpush1.bf16.msra.mxu0 0
      %3516 = vmatprep.subr.bf16.mxu0 0
      %3517 = vmatpush1.bf16.msra.mxu0 0
      %3518 = vmatprep.subr.bf16.mxu0 0
      %3519 = vmatpush1.bf16.msra.mxu0 0
      %3520 = vmatprep.subr.bf16.mxu0 0
      %3521 = vmatpush1.bf16.msra.mxu0 0
      %3522 = vmatprep.subr.bf16.mxu0 0
      %3523 = vmatpush1.bf16.msra.mxu0 0
      %3524 = vmatprep.mubr.bf16.mxu0 0
      %3525 = vmatmul.mubr.bf16.gmra.mrb[0].mxu0 %v3442
      %v3526 = vpop.f32.mrb[0].mxu0
      %v3527 = vadd.f32 0.0, %v3526
      %v3528 = vpop.f32.mrb[0].mxu0
      %v3529 = vpop.f32.mrb[0].mxu0
      %v3530 = vadd.f32 0.0, %v3529
      %v3531 = vpop.f32.mrb[0].mxu0
      %3532 = vmatprep.mubr.bf16.mxu0 0
      %3533 = vmatmul.mubr.bf16.gmra.mrb[0].mxu0 %v3445
      %v3534 = vpop.f32.mrb[0].mxu0
      %v3535 = vadd.f32 0.0, %v3534
      %v3536 = vpop.f32.mrb[0].mxu0
      %v3537 = vpop.f32.mrb[0].mxu0
      %v3538 = vadd.f32 0.0, %v3537
      %v3539 = vpop.f32.mrb[0].mxu0
      %3540 = vmatprep.mubr.bf16.mxu0 0
      %3541 = vmatmul.mubr.bf16.gmra.mrb[0].mxu0 %v3448
      %v3542 = vpop.f32.mrb[0].mxu0
      %v3543 = vadd.f32 0.0, %v3542
      %v3544 = vpop.f32.mrb[0].mxu0
      %v3545 = vpop.f32.mrb[0].mxu0
      %v3546 = vadd.f32 0.0, %v3545
      %v3547 = vpop.f32.mrb[0].mxu0
      %3548 = vmatprep.mubr.bf16.mxu0 0
      %3549 = vmatmul.mubr.bf16.gmra.mrb[0].mxu0 %v3451
      %v3550 = vpop.f32.mrb[0].mxu0
      %v3551 = vadd.f32 0.0, %v3550
      %v3552 = vpop.f32.mrb[0].mxu0
      %v3553 = vpop.f32.mrb[0].mxu0
      %v3554 = vadd.f32 0.0, %v3553
      %v3555 = vpop.f32.mrb[0].mxu0
      %3556 = vmatprep.mubr.bf16.mxu0 0
      %3557 = vmatmul.mubr.bf16.gmra.mrb[0].mxu0 %v3454
      %v3558 = vpop.f32.mrb[0].mxu0
      %v3559 = vadd.f32 0.0, %v3558
      %v3560 = vpop.f32.mrb[0].mxu0
      %v3561 = vpop.f32.mrb[0].mxu0
      %v3562 = vadd.f32 0.0, %v3561
      %v3563 = vpop.f32.mrb[0].mxu0
      %3564 = vmatprep.mubr.bf16.mxu0 0
      %3565 = vmatmul.mubr.bf16.gmra.mrb[0].mxu0 %v3457
      %v3566 = vpop.f32.mrb[0].mxu0
      %v3567 = vadd.f32 0.0, %v3566
      %v3568 = vpop.f32.mrb[0].mxu0
      %v3569 = vpop.f32.mrb[0].mxu0
      %v3570 = vadd.f32 0.0, %v3569
      %v3571 = vpop.f32.mrb[0].mxu0
      %3572 = vmatprep.mubr.bf16.mxu0 0
      %3573 = vmatmul.mubr.bf16.gmra.mrb[0].mxu0 %v3460
      %v3574 = vpop.f32.mrb[0].mxu0
      %v3575 = vadd.f32 0.0, %v3574
      %v3576 = vpop.f32.mrb[0].mxu0
      %v3577 = vpop.f32.mrb[0].mxu0
      %v3578 = vadd.f32 0.0, %v3577
      %v3579 = vpop.f32.mrb[0].mxu0
      %3580 = vmatprep.mubr.bf16.mxu0 0
      %3581 = vmatmul.mubr.bf16.gmra.mrb[0].mxu0 %v3463
      %v3582 = vpop.f32.mrb[0].mxu0
      %v3583 = vadd.f32 0.0, %v3582
      %v3584 = vpop.f32.mrb[0].mxu0
      %v3585 = vpop.f32.mrb[0].mxu0
      %v3586 = vadd.f32 0.0, %v3585
      %v3587 = vpop.f32.mrb[0].mxu0
      %3588 = vmatprep.mubr.bf16.mxu0 0
      %3589 = vmatmul.mubr.bf16.gmra.mrb[0].mxu0 %v3466
      %v3590 = vpop.f32.mrb[0].mxu0
      %v3591 = vadd.f32 0.0, %v3590
      %v3592 = vpop.f32.mrb[0].mxu0
      %v3593 = vpop.f32.mrb[0].mxu0
      %v3594 = vadd.f32 0.0, %v3593
      %v3595 = vpop.f32.mrb[0].mxu0
      %3596 = vmatprep.mubr.bf16.mxu0 0
      %3597 = vmatmul.mubr.bf16.gmra.mrb[0].mxu0 %v3469
      %v3598 = vpop.f32.mrb[0].mxu0
      %v3599 = vadd.f32 0.0, %v3598
      %v3600 = vpop.f32.mrb[0].mxu0
      %v3601 = vpop.f32.mrb[0].mxu0
      %v3602 = vadd.f32 0.0, %v3601
      %v3603 = vpop.f32.mrb[0].mxu0
      %3604 = vmatprep.mubr.bf16.mxu0 0
      %3605 = vmatmul.mubr.bf16.gmra.mrb[0].mxu0 %v3472
      %v3606 = vpop.f32.mrb[0].mxu0
      %v3607 = vadd.f32 0.0, %v3606
      %v3608 = vpop.f32.mrb[0].mxu0
      %v3609 = vpop.f32.mrb[0].mxu0
      %v3610 = vadd.f32 0.0, %v3609
      %v3611 = vpop.f32.mrb[0].mxu0
      %3612 = vmatprep.mubr.bf16.mxu0 0
      %3613 = vmatmul.mubr.bf16.gmra.mrb[0].mxu0 %v3475
      %v3614 = vpop.f32.mrb[0].mxu0
      %v3615 = vadd.f32 0.0, %v3614
      %v3616 = vpop.f32.mrb[0].mxu0
      %v3617 = vpop.f32.mrb[0].mxu0
      %v3618 = vadd.f32 0.0, %v3617
      %v3619 = vpop.f32.mrb[0].mxu0
      %3620 = vmatprep.mubr.bf16.mxu0 0
      %3621 = vmatmul.mubr.bf16.gmra.mrb[0].mxu0 %v3478
      %v3622 = vpop.f32.mrb[0].mxu0
      %v3623 = vadd.f32 0.0, %v3622
      %v3624 = vpop.f32.mrb[0].mxu0
      %v3625 = vpop.f32.mrb[0].mxu0
      %v3626 = vadd.f32 0.0, %v3625
      %v3627 = vpop.f32.mrb[0].mxu0
      %3628 = vmatprep.mubr.bf16.mxu0 0
      %3629 = vmatmul.mubr.bf16.gmra.mrb[0].mxu0 %v3481
      %v3630 = vpop.f32.mrb[0].mxu0
      %v3631 = vadd.f32 0.0, %v3630
      %v3632 = vpop.f32.mrb[0].mxu0
      %v3633 = vpop.f32.mrb[0].mxu0
      %v3634 = vadd.f32 0.0, %v3633
      %v3635 = vpop.f32.mrb[0].mxu0
      %3636 = vmatprep.mubr.bf16.mxu0 0
      %3637 = vmatmul.mubr.bf16.gmra.mrb[0].mxu0 %v3484
      %v3638 = vpop.f32.mrb[0].mxu0
      %v3639 = vadd.f32 0.0, %v3638
      %v3640 = vpop.f32.mrb[0].mxu0
      %v3641 = vpop.f32.mrb[0].mxu0
      %v3642 = vadd.f32 0.0, %v3641
      %v3643 = vpop.f32.mrb[0].mxu0
      %3644 = vmatprep.mubr.bf16.mxu0 0
      %3645 = vmatmul.mubr.bf16.gmra.mrb[0].mxu0 %v3487
      %v3646 = vpop.f32.mrb[0].mxu0
      %v3647 = vadd.f32 0.0, %v3646
      %v3648 = vpop.f32.mrb[0].mxu0
      %v3649 = vpop.f32.mrb[0].mxu0
      %v3650 = vadd.f32 0.0, %v3649
      %v3651 = vpop.f32.mrb[0].mxu0
      %3652 = vdwg.mxu0
      %v3653 = vadd.f32 %v3391, %v3527
      %v3654 = vadd.f32 %v3392, %v3530
      %v3655 = vadd.f32 %v3393, %v3535
      %v3656 = vadd.f32 %v3394, %v3538
      %v3657 = vadd.f32 %v3395, %v3543
      %v3658 = vadd.f32 %v3396, %v3546
      %v3659 = vadd.f32 %v3397, %v3551
      %v3660 = vadd.f32 %v3398, %v3554
      %v3661 = vadd.f32 %v3399, %v3559
      %v3662 = vadd.f32 %v3400, %v3562
      %v3663 = vadd.f32 %v3401, %v3567
      %v3664 = vadd.f32 %v3402, %v3570
      %v3665 = vadd.f32 %v3403, %v3575
      %v3666 = vadd.f32 %v3404, %v3578
      %v3667 = vadd.f32 %v3405, %v3583
      %v3668 = vadd.f32 %v3406, %v3586
      %v3669 = vadd.f32 %v3407, %v3591
      %v3670 = vadd.f32 %v3408, %v3594
      %v3671 = vadd.f32 %v3409, %v3599
      %v3672 = vadd.f32 %v3410, %v3602
      %v3673 = vadd.f32 %v3411, %v3607
      %v3674 = vadd.f32 %v3412, %v3610
      %v3675 = vadd.f32 %v3413, %v3615
      %v3676 = vadd.f32 %v3414, %v3618
      %v3677 = vadd.f32 %v3415, %v3623
      %v3678 = vadd.f32 %v3416, %v3626
      %v3679 = vadd.f32 %v3417, %v3631
      %v3680 = vadd.f32 %v3418, %v3634
      %v3681 = vadd.f32 %v3419, %v3639
      %v3682 = vadd.f32 %v3420, %v3642
      %v3683 = vadd.f32 %v3421, %v3647
      %v3684 = vadd.f32 %v3422, %v3650
      %3685 = vst.msk [vmem:[#allocation3] sm:$0xff] %vm1165, %v3653
      %3686 = vst.msk [vmem:[#allocation3 + $0x8] sm:$0xff] %vm1165, %v3654
      %3687 = vst.msk [vmem:[#allocation3 + $0x10] sm:$0xff] %vm1165, %v3655
      %3688 = vst.msk [vmem:[#allocation3 + $0x18] sm:$0xff] %vm1165, %v3656
      %3689 = vst.msk [vmem:[#allocation3 + $0x20] sm:$0xff] %vm1165, %v3657
      %3690 = vst.msk [vmem:[#allocation3 + $0x28] sm:$0xff] %vm1165, %v3658
      %3691 = vst.msk [vmem:[#allocation3 + $0x30] sm:$0xff] %vm1165, %v3659
      %3692 = vst.msk [vmem:[#allocation3 + $0x38] sm:$0xff] %vm1165, %v3660
      %3693 = vst.msk [vmem:[#allocation3 + $0x40] sm:$0xff] %vm1165, %v3661
      %3694 = vst.msk [vmem:[#allocation3 + $0x48] sm:$0xff] %vm1165, %v3662
      %3695 = vst.msk [vmem:[#allocation3 + $0x50] sm:$0xff] %vm1165, %v3663
      %3696 = vst.msk [vmem:[#allocation3 + $0x58] sm:$0xff] %vm1165, %v3664
      %3697 = vst.msk [vmem:[#allocation3 + $0x60] sm:$0xff] %vm1165, %v3665
      %3698 = vst.msk [vmem:[#allocation3 + $0x68] sm:$0xff] %vm1165, %v3666
      %3699 = vst.msk [vmem:[#allocation3 + $0x70] sm:$0xff] %vm1165, %v3667
      %3700 = vst.msk [vmem:[#allocation3 + $0x78] sm:$0xff] %vm1165, %v3668
      %3701 = vst.msk [vmem:[#allocation3 + $0x80] sm:$0xff] %vm1165, %v3669
      %3702 = vst.msk [vmem:[#allocation3 + $0x88] sm:$0xff] %vm1165, %v3670
      %3703 = vst.msk [vmem:[#allocation3 + $0x90] sm:$0xff] %vm1165, %v3671
      %3704 = vst.msk [vmem:[#allocation3 + $0x98] sm:$0xff] %vm1165, %v3672
      %3705 = vst.msk [vmem:[#allocation3 + $0xa0] sm:$0xff] %vm1165, %v3673
      %3706 = vst.msk [vmem:[#allocation3 + $0xa8] sm:$0xff] %vm1165, %v3674
      %3707 = vst.msk [vmem:[#allocation3 + $0xb0] sm:$0xff] %vm1165, %v3675
      %3708 = vst.msk [vmem:[#allocation3 + $0xb8] sm:$0xff] %vm1165, %v3676
      %3709 = vst.msk [vmem:[#allocation3 + $0xc0] sm:$0xff] %vm1165, %v3677
      %3710 = vst.msk [vmem:[#allocation3 + $0xc8] sm:$0xff] %vm1165, %v3678
      %3711 = vst.msk [vmem:[#allocation3 + $0xd0] sm:$0xff] %vm1165, %v3679
      %3712 = vst.msk [vmem:[#allocation3 + $0xd8] sm:$0xff] %vm1165, %v3680
      %3713 = vst.msk [vmem:[#allocation3 + $0xe0] sm:$0xff] %vm1165, %v3681
      %3714 = vst.msk [vmem:[#allocation3 + $0xe8] sm:$0xff] %vm1165, %v3682
      %3715 = vst.msk [vmem:[#allocation3 + $0xf0] sm:$0xff] %vm1165, %v3683
      %3716 = vst.msk [vmem:[#allocation3 + $0xf8] sm:$0xff] %vm1165, %v3684
      %s3717 = scalar_lea.vmem [#allocation2], 32
      %v3718 = vld [vmem:[%s3717] sm:$0xff]
      %v3719 = vld [vmem:[%s3717 + $0x8] sm:$0xff]
      %v3720 = vld [vmem:[%s3717 + $0x10] sm:$0xff]
      %v3721 = vld [vmem:[%s3717 + $0x18] sm:$0xff]
      %v3722 = vld [vmem:[%s3717 + $0x20] sm:$0xff]
      %v3723 = vld [vmem:[%s3717 + $0x28] sm:$0xff]
      %v3724 = vld [vmem:[%s3717 + $0x30] sm:$0xff]
      %v3725 = vld [vmem:[%s3717 + $0x38] sm:$0xff]
      %v3726 = vld [vmem:[%s3717 + $0x40] sm:$0xff]
      %v3727 = vld [vmem:[%s3717 + $0x48] sm:$0xff]
      %v3728 = vld [vmem:[%s3717 + $0x50] sm:$0xff]
      %v3729 = vld [vmem:[%s3717 + $0x58] sm:$0xff]
      %v3730 = vld [vmem:[%s3717 + $0x60] sm:$0xff]
      %v3731 = vld [vmem:[%s3717 + $0x68] sm:$0xff]
      %v3732 = vld [vmem:[%s3717 + $0x70] sm:$0xff]
      %v3733 = vld [vmem:[%s3717 + $0x78] sm:$0xff]
      %v3734 = vld [vmem:[%s3717 + $0x80] sm:$0xff]
      %v3735 = vld [vmem:[%s3717 + $0x88] sm:$0xff]
      %v3736 = vld [vmem:[%s3717 + $0x90] sm:$0xff]
      %v3737 = vld [vmem:[%s3717 + $0x98] sm:$0xff]
      %v3738 = vld [vmem:[%s3717 + $0xa0] sm:$0xff]
      %v3739 = vld [vmem:[%s3717 + $0xa8] sm:$0xff]
      %v3740 = vld [vmem:[%s3717 + $0xb0] sm:$0xff]
      %v3741 = vld [vmem:[%s3717 + $0xb8] sm:$0xff]
      %v3742 = vld [vmem:[%s3717 + $0xc0] sm:$0xff]
      %v3743 = vld [vmem:[%s3717 + $0xc8] sm:$0xff]
      %v3744 = vld [vmem:[%s3717 + $0xd0] sm:$0xff]
      %v3745 = vld [vmem:[%s3717 + $0xd8] sm:$0xff]
      %v3746 = vld [vmem:[%s3717 + $0xe0] sm:$0xff]
      %v3747 = vld [vmem:[%s3717 + $0xe8] sm:$0xff]
      %v3748 = vld [vmem:[%s3717 + $0xf0] sm:$0xff]
      %v3749 = vld [vmem:[%s3717 + $0xf8] sm:$0xff]
      %v3750 = vld [vmem:[#allocation3] sm:$0xff]
      %v3751 = vld [vmem:[#allocation3 + $0x8] sm:$0xff]
      %v3752 = vld [vmem:[#allocation3 + $0x10] sm:$0xff]
      %v3753 = vld [vmem:[#allocation3 + $0x18] sm:$0xff]
      %v3754 = vld [vmem:[#allocation3 + $0x20] sm:$0xff]
      %v3755 = vld [vmem:[#allocation3 + $0x28] sm:$0xff]
      %v3756 = vld [vmem:[#allocation3 + $0x30] sm:$0xff]
      %v3757 = vld [vmem:[#allocation3 + $0x38] sm:$0xff]
      %v3758 = vld [vmem:[#allocation3 + $0x40] sm:$0xff]
      %v3759 = vld [vmem:[#allocation3 + $0x48] sm:$0xff]
      %v3760 = vld [vmem:[#allocation3 + $0x50] sm:$0xff]
      %v3761 = vld [vmem:[#allocation3 + $0x58] sm:$0xff]
      %v3762 = vld [vmem:[#allocation3 + $0x60] sm:$0xff]
      %v3763 = vld [vmem:[#allocation3 + $0x68] sm:$0xff]
      %v3764 = vld [vmem:[#allocation3 + $0x70] sm:$0xff]
      %v3765 = vld [vmem:[#allocation3 + $0x78] sm:$0xff]
      %v3766 = vld [vmem:[#allocation3 + $0x80] sm:$0xff]
      %v3767 = vld [vmem:[#allocation3 + $0x88] sm:$0xff]
      %v3768 = vld [vmem:[#allocation3 + $0x90] sm:$0xff]
      %v3769 = vld [vmem:[#allocation3 + $0x98] sm:$0xff]
      %v3770 = vld [vmem:[#allocation3 + $0xa0] sm:$0xff]
      %v3771 = vld [vmem:[#allocation3 + $0xa8] sm:$0xff]
      %v3772 = vld [vmem:[#allocation3 + $0xb0] sm:$0xff]
      %v3773 = vld [vmem:[#allocation3 + $0xb8] sm:$0xff]
      %v3774 = vld [vmem:[#allocation3 + $0xc0] sm:$0xff]
      %v3775 = vld [vmem:[#allocation3 + $0xc8] sm:$0xff]
      %v3776 = vld [vmem:[#allocation3 + $0xd0] sm:$0xff]
      %v3777 = vld [vmem:[#allocation3 + $0xd8] sm:$0xff]
      %v3778 = vld [vmem:[#allocation3 + $0xe0] sm:$0xff]
      %v3779 = vld [vmem:[#allocation3 + $0xe8] sm:$0xff]
      %v3780 = vld [vmem:[#allocation3 + $0xf0] sm:$0xff]
      %v3781 = vld [vmem:[#allocation3 + $0xf8] sm:$0xff]
      %v3782 = vpack.c.bf16 %v3719, %v3718
      %v3783 = vpack.c.bf16 %v3721, %v3720
      %v3784 = vpack.c.bf16 %v3723, %v3722
      %v3785 = vpack.c.bf16 %v3725, %v3724
      %v3786 = vpack.c.bf16 %v3727, %v3726
      %v3787 = vpack.c.bf16 %v3729, %v3728
      %v3788 = vpack.c.bf16 %v3731, %v3730
      %v3789 = vpack.c.bf16 %v3733, %v3732
      %v3790 = vpack.c.bf16 %v3735, %v3734
      %v3791 = vpack.c.bf16 %v3737, %v3736
      %v3792 = vpack.c.bf16 %v3739, %v3738
      %v3793 = vpack.c.bf16 %v3741, %v3740
      %v3794 = vpack.c.bf16 %v3743, %v3742
      %v3795 = vpack.c.bf16 %v3745, %v3744
      %v3796 = vpack.c.bf16 %v3747, %v3746
      %v3797 = vpack.c.bf16 %v3749, %v3748
      %s3798 = scalar_lea.vmem %s7, 24
      %v3799 = vld [vmem:[%s3798] sm:$0xf]
      %v3801 = vsel %vm1165, %v3782, 0
      %v3804 = vsel %vm1165, %v3783, 0
      %v3807 = vsel %vm1165, %v3784, 0
      %v3810 = vsel %vm1165, %v3785, 0
      %v3813 = vsel %vm1165, %v3786, 0
      %v3816 = vsel %vm1165, %v3787, 0
      %v3819 = vsel %vm1165, %v3788, 0
      %v3822 = vsel %vm1165, %v3789, 0
      %v3825 = vsel %vm1165, %v3790, 0
      %v3828 = vsel %vm1165, %v3791, 0
      %v3831 = vsel %vm1165, %v3792, 0
      %v3834 = vsel %vm1165, %v3793, 0
      %v3837 = vsel %vm1165, %v3794, 0
      %v3840 = vsel %vm1165, %v3795, 0
      %v3843 = vsel %vm1165, %v3796, 0
      %v3846 = vsel %vm1165, %v3797, 0
      %v3849 = vsel %vm1696, %v3799, 0
      %3851 = vmatprep.subr.bf16.mxu0 0
      %3852 = vmatpush1.bf16.msra.mxu0 %v3849
      %3853 = vmatprep.subr.bf16.mxu0 0
      %3854 = vmatpush1.bf16.msra.mxu0 0
      %3855 = vmatprep.subr.bf16.mxu0 0
      %3856 = vmatpush1.bf16.msra.mxu0 0
      %3857 = vmatprep.subr.bf16.mxu0 0
      %3858 = vmatpush1.bf16.msra.mxu0 0
      %3859 = vmatprep.subr.bf16.mxu0 0
      %3860 = vmatpush1.bf16.msra.mxu0 0
      %3861 = vmatprep.subr.bf16.mxu0 0
      %3862 = vmatpush1.bf16.msra.mxu0 0
      %3863 = vmatprep.subr.bf16.mxu0 0
      %3864 = vmatpush1.bf16.msra.mxu0 0
      %3865 = vmatprep.subr.bf16.mxu0 0
      %3866 = vmatpush1.bf16.msra.mxu0 0
      %3867 = vmatprep.subr.bf16.mxu0 0
      %3868 = vmatpush1.bf16.msra.mxu0 0
      %3869 = vmatprep.subr.bf16.mxu0 0
      %3870 = vmatpush1.bf16.msra.mxu0 0
      %3871 = vmatprep.subr.bf16.mxu0 0
      %3872 = vmatpush1.bf16.msra.mxu0 0
      %3873 = vmatprep.subr.bf16.mxu0 0
      %3874 = vmatpush1.bf16.msra.mxu0 0
      %3875 = vmatprep.subr.bf16.mxu0 0
      %3876 = vmatpush1.bf16.msra.mxu0 0
      %3877 = vmatprep.subr.bf16.mxu0 0
      %3878 = vmatpush1.bf16.msra.mxu0 0
      %3879 = vmatprep.subr.bf16.mxu0 0
      %3880 = vmatpush1.bf16.msra.mxu0 0
      %3881 = vmatprep.subr.bf16.mxu0 0
      %3882 = vmatpush1.bf16.msra.mxu0 0
      %3883 = vmatprep.mubr.bf16.mxu0 0
      %3884 = vmatmul.mubr.bf16.gmra.mrb[0].mxu0 %v3801
      %v3885 = vpop.f32.mrb[0].mxu0
      %v3886 = vadd.f32 0.0, %v3885
      %v3887 = vpop.f32.mrb[0].mxu0
      %v3888 = vpop.f32.mrb[0].mxu0
      %v3889 = vadd.f32 0.0, %v3888
      %v3890 = vpop.f32.mrb[0].mxu0
      %3891 = vmatprep.mubr.bf16.mxu0 0
      %3892 = vmatmul.mubr.bf16.gmra.mrb[0].mxu0 %v3804
      %v3893 = vpop.f32.mrb[0].mxu0
      %v3894 = vadd.f32 0.0, %v3893
      %v3895 = vpop.f32.mrb[0].mxu0
      %v3896 = vpop.f32.mrb[0].mxu0
      %v3897 = vadd.f32 0.0, %v3896
      %v3898 = vpop.f32.mrb[0].mxu0
      %3899 = vmatprep.mubr.bf16.mxu0 0
      %3900 = vmatmul.mubr.bf16.gmra.mrb[0].mxu0 %v3807
      %v3901 = vpop.f32.mrb[0].mxu0
      %v3902 = vadd.f32 0.0, %v3901
      %v3903 = vpop.f32.mrb[0].mxu0
      %v3904 = vpop.f32.mrb[0].mxu0
      %v3905 = vadd.f32 0.0, %v3904
      %v3906 = vpop.f32.mrb[0].mxu0
      %3907 = vmatprep.mubr.bf16.mxu0 0
      %3908 = vmatmul.mubr.bf16.gmra.mrb[0].mxu0 %v3810
      %v3909 = vpop.f32.mrb[0].mxu0
      %v3910 = vadd.f32 0.0, %v3909
      %v3911 = vpop.f32.mrb[0].mxu0
      %v3912 = vpop.f32.mrb[0].mxu0
      %v3913 = vadd.f32 0.0, %v3912
      %v3914 = vpop.f32.mrb[0].mxu0
      %3915 = vmatprep.mubr.bf16.mxu0 0
      %3916 = vmatmul.mubr.bf16.gmra.mrb[0].mxu0 %v3813
      %v3917 = vpop.f32.mrb[0].mxu0
      %v3918 = vadd.f32 0.0, %v3917
      %v3919 = vpop.f32.mrb[0].mxu0
      %v3920 = vpop.f32.mrb[0].mxu0
      %v3921 = vadd.f32 0.0, %v3920
      %v3922 = vpop.f32.mrb[0].mxu0
      %3923 = vmatprep.mubr.bf16.mxu0 0
      %3924 = vmatmul.mubr.bf16.gmra.mrb[0].mxu0 %v3816
      %v3925 = vpop.f32.mrb[0].mxu0
      %v3926 = vadd.f32 0.0, %v3925
      %v3927 = vpop.f32.mrb[0].mxu0
      %v3928 = vpop.f32.mrb[0].mxu0
      %v3929 = vadd.f32 0.0, %v3928
      %v3930 = vpop.f32.mrb[0].mxu0
      %3931 = vmatprep.mubr.bf16.mxu0 0
      %3932 = vmatmul.mubr.bf16.gmra.mrb[0].mxu0 %v3819
      %v3933 = vpop.f32.mrb[0].mxu0
      %v3934 = vadd.f32 0.0, %v3933
      %v3935 = vpop.f32.mrb[0].mxu0
      %v3936 = vpop.f32.mrb[0].mxu0
      %v3937 = vadd.f32 0.0, %v3936
      %v3938 = vpop.f32.mrb[0].mxu0
      %3939 = vmatprep.mubr.bf16.mxu0 0
      %3940 = vmatmul.mubr.bf16.gmra.mrb[0].mxu0 %v3822
      %v3941 = vpop.f32.mrb[0].mxu0
      %v3942 = vadd.f32 0.0, %v3941
      %v3943 = vpop.f32.mrb[0].mxu0
      %v3944 = vpop.f32.mrb[0].mxu0
      %v3945 = vadd.f32 0.0, %v3944
      %v3946 = vpop.f32.mrb[0].mxu0
      %3947 = vmatprep.mubr.bf16.mxu0 0
      %3948 = vmatmul.mubr.bf16.gmra.mrb[0].mxu0 %v3825
      %v3949 = vpop.f32.mrb[0].mxu0
      %v3950 = vadd.f32 0.0, %v3949
      %v3951 = vpop.f32.mrb[0].mxu0
      %v3952 = vpop.f32.mrb[0].mxu0
      %v3953 = vadd.f32 0.0, %v3952
      %v3954 = vpop.f32.mrb[0].mxu0
      %3955 = vmatprep.mubr.bf16.mxu0 0
      %3956 = vmatmul.mubr.bf16.gmra.mrb[0].mxu0 %v3828
      %v3957 = vpop.f32.mrb[0].mxu0
      %v3958 = vadd.f32 0.0, %v3957
      %v3959 = vpop.f32.mrb[0].mxu0
      %v3960 = vpop.f32.mrb[0].mxu0
      %v3961 = vadd.f32 0.0, %v3960
      %v3962 = vpop.f32.mrb[0].mxu0
      %3963 = vmatprep.mubr.bf16.mxu0 0
      %3964 = vmatmul.mubr.bf16.gmra.mrb[0].mxu0 %v3831
      %v3965 = vpop.f32.mrb[0].mxu0
      %v3966 = vadd.f32 0.0, %v3965
      %v3967 = vpop.f32.mrb[0].mxu0
      %v3968 = vpop.f32.mrb[0].mxu0
      %v3969 = vadd.f32 0.0, %v3968
      %v3970 = vpop.f32.mrb[0].mxu0
      %3971 = vmatprep.mubr.bf16.mxu0 0
      %3972 = vmatmul.mubr.bf16.gmra.mrb[0].mxu0 %v3834
      %v3973 = vpop.f32.mrb[0].mxu0
      %v3974 = vadd.f32 0.0, %v3973
      %v3975 = vpop.f32.mrb[0].mxu0
      %v3976 = vpop.f32.mrb[0].mxu0
      %v3977 = vadd.f32 0.0, %v3976
      %v3978 = vpop.f32.mrb[0].mxu0
      %3979 = vmatprep.mubr.bf16.mxu0 0
      %3980 = vmatmul.mubr.bf16.gmra.mrb[0].mxu0 %v3837
      %v3981 = vpop.f32.mrb[0].mxu0
      %v3982 = vadd.f32 0.0, %v3981
      %v3983 = vpop.f32.mrb[0].mxu0
      %v3984 = vpop.f32.mrb[0].mxu0
      %v3985 = vadd.f32 0.0, %v3984
      %v3986 = vpop.f32.mrb[0].mxu0
      %3987 = vmatprep.mubr.bf16.mxu0 0
      %3988 = vmatmul.mubr.bf16.gmra.mrb[0].mxu0 %v3840
      %v3989 = vpop.f32.mrb[0].mxu0
      %v3990 = vadd.f32 0.0, %v3989
      %v3991 = vpop.f32.mrb[0].mxu0
      %v3992 = vpop.f32.mrb[0].mxu0
      %v3993 = vadd.f32 0.0, %v3992
      %v3994 = vpop.f32.mrb[0].mxu0
      %3995 = vmatprep.mubr.bf16.mxu0 0
      %3996 = vmatmul.mubr.bf16.gmra.mrb[0].mxu0 %v3843
      %v3997 = vpop.f32.mrb[0].mxu0
      %v3998 = vadd.f32 0.0, %v3997
      %v3999 = vpop.f32.mrb[0].mxu0
      %v4000 = vpop.f32.mrb[0].mxu0
      %v4001 = vadd.f32 0.0, %v4000
      %v4002 = vpop.f32.mrb[0].mxu0
      %4003 = vmatprep.mubr.bf16.mxu0 0
      %4004 = vmatmul.mubr.bf16.gmra.mrb[0].mxu0 %v3846
      %v4005 = vpop.f32.mrb[0].mxu0
      %v4006 = vadd.f32 0.0, %v4005
      %v4007 = vpop.f32.mrb[0].mxu0
      %v4008 = vpop.f32.mrb[0].mxu0
      %v4009 = vadd.f32 0.0, %v4008
      %v4010 = vpop.f32.mrb[0].mxu0
      %4011 = vdwg.mxu0
      %v4012 = vadd.f32 %v3750, %v3886
      %v4013 = vadd.f32 %v3751, %v3889
      %v4014 = vadd.f32 %v3752, %v3894
      %v4015 = vadd.f32 %v3753, %v3897
      %v4016 = vadd.f32 %v3754, %v3902
      %v4017 = vadd.f32 %v3755, %v3905
      %v4018 = vadd.f32 %v3756, %v3910
      %v4019 = vadd.f32 %v3757, %v3913
      %v4020 = vadd.f32 %v3758, %v3918
      %v4021 = vadd.f32 %v3759, %v3921
      %v4022 = vadd.f32 %v3760, %v3926
      %v4023 = vadd.f32 %v3761, %v3929
      %v4024 = vadd.f32 %v3762, %v3934
      %v4025 = vadd.f32 %v3763, %v3937
      %v4026 = vadd.f32 %v3764, %v3942
      %v4027 = vadd.f32 %v3765, %v3945
      %v4028 = vadd.f32 %v3766, %v3950
      %v4029 = vadd.f32 %v3767, %v3953
      %v4030 = vadd.f32 %v3768, %v3958
      %v4031 = vadd.f32 %v3769, %v3961
      %v4032 = vadd.f32 %v3770, %v3966
      %v4033 = vadd.f32 %v3771, %v3969
      %v4034 = vadd.f32 %v3772, %v3974
      %v4035 = vadd.f32 %v3773, %v3977
      %v4036 = vadd.f32 %v3774, %v3982
      %v4037 = vadd.f32 %v3775, %v3985
      %v4038 = vadd.f32 %v3776, %v3990
      %v4039 = vadd.f32 %v3777, %v3993
      %v4040 = vadd.f32 %v3778, %v3998
      %v4041 = vadd.f32 %v3779, %v4001
      %v4042 = vadd.f32 %v3780, %v4006
      %v4043 = vadd.f32 %v3781, %v4009
      %4044 = vst.msk [vmem:[#allocation3] sm:$0xff] %vm1165, %v4012
      %4045 = vst.msk [vmem:[#allocation3 + $0x8] sm:$0xff] %vm1165, %v4013
      %4046 = vst.msk [vmem:[#allocation3 + $0x10] sm:$0xff] %vm1165, %v4014
      %4047 = vst.msk [vmem:[#allocation3 + $0x18] sm:$0xff] %vm1165, %v4015
      %4048 = vst.msk [vmem:[#allocation3 + $0x20] sm:$0xff] %vm1165, %v4016
      %4049 = vst.msk [vmem:[#allocation3 + $0x28] sm:$0xff] %vm1165, %v4017
      %4050 = vst.msk [vmem:[#allocation3 + $0x30] sm:$0xff] %vm1165, %v4018
      %4051 = vst.msk [vmem:[#allocation3 + $0x38] sm:$0xff] %vm1165, %v4019
      %4052 = vst.msk [vmem:[#allocation3 + $0x40] sm:$0xff] %vm1165, %v4020
      %4053 = vst.msk [vmem:[#allocation3 + $0x48] sm:$0xff] %vm1165, %v4021
      %4054 = vst.msk [vmem:[#allocation3 + $0x50] sm:$0xff] %vm1165, %v4022
      %4055 = vst.msk [vmem:[#allocation3 + $0x58] sm:$0xff] %vm1165, %v4023
      %4056 = vst.msk [vmem:[#allocation3 + $0x60] sm:$0xff] %vm1165, %v4024
      %4057 = vst.msk [vmem:[#allocation3 + $0x68] sm:$0xff] %vm1165, %v4025
      %4058 = vst.msk [vmem:[#allocation3 + $0x70] sm:$0xff] %vm1165, %v4026
      %4059 = vst.msk [vmem:[#allocation3 + $0x78] sm:$0xff] %vm1165, %v4027
      %4060 = vst.msk [vmem:[#allocation3 + $0x80] sm:$0xff] %vm1165, %v4028
      %4061 = vst.msk [vmem:[#allocation3 + $0x88] sm:$0xff] %vm1165, %v4029
      %4062 = vst.msk [vmem:[#allocation3 + $0x90] sm:$0xff] %vm1165, %v4030
      %4063 = vst.msk [vmem:[#allocation3 + $0x98] sm:$0xff] %vm1165, %v4031
      %4064 = vst.msk [vmem:[#allocation3 + $0xa0] sm:$0xff] %vm1165, %v4032
      %4065 = vst.msk [vmem:[#allocation3 + $0xa8] sm:$0xff] %vm1165, %v4033
      %4066 = vst.msk [vmem:[#allocation3 + $0xb0] sm:$0xff] %vm1165, %v4034
      %4067 = vst.msk [vmem:[#allocation3 + $0xb8] sm:$0xff] %vm1165, %v4035
      %4068 = vst.msk [vmem:[#allocation3 + $0xc0] sm:$0xff] %vm1165, %v4036
      %4069 = vst.msk [vmem:[#allocation3 + $0xc8] sm:$0xff] %vm1165, %v4037
      %4070 = vst.msk [vmem:[#allocation3 + $0xd0] sm:$0xff] %vm1165, %v4038
      %4071 = vst.msk [vmem:[#allocation3 + $0xd8] sm:$0xff] %vm1165, %v4039
      %4072 = vst.msk [vmem:[#allocation3 + $0xe0] sm:$0xff] %vm1165, %v4040
      %4073 = vst.msk [vmem:[#allocation3 + $0xe8] sm:$0xff] %vm1165, %v4041
      %4074 = vst.msk [vmem:[#allocation3 + $0xf0] sm:$0xff] %vm1165, %v4042
      %4075 = vst.msk [vmem:[#allocation3 + $0xf8] sm:$0xff] %vm1165, %v4043
      %s4076 = scalar_lea.vmem [#allocation2], 320
      %v4077 = vld [vmem:[%s4076] sm:$0xff]
      %v4078 = vld [vmem:[%s4076 + $0x8] sm:$0xff]
      %v4079 = vld [vmem:[%s4076 + $0x10] sm:$0xff]
      %v4080 = vld [vmem:[%s4076 + $0x18] sm:$0xff]
      %v4081 = vld [vmem:[%s4076 + $0x20] sm:$0xff]
      %v4082 = vld [vmem:[%s4076 + $0x28] sm:$0xff]
      %v4083 = vld [vmem:[%s4076 + $0x30] sm:$0xff]
      %v4084 = vld [vmem:[%s4076 + $0x38] sm:$0xff]
      %v4085 = vld [vmem:[%s4076 + $0x40] sm:$0xff]
      %v4086 = vld [vmem:[%s4076 + $0x48] sm:$0xff]
      %v4087 = vld [vmem:[%s4076 + $0x50] sm:$0xff]
      %v4088 = vld [vmem:[%s4076 + $0x58] sm:$0xff]
      %v4089 = vld [vmem:[%s4076 + $0x60] sm:$0xff]
      %v4090 = vld [vmem:[%s4076 + $0x68] sm:$0xff]
      %v4091 = vld [vmem:[%s4076 + $0x70] sm:$0xff]
      %v4092 = vld [vmem:[%s4076 + $0x78] sm:$0xff]
      %v4093 = vld [vmem:[%s4076 + $0x80] sm:$0xff]
      %v4094 = vld [vmem:[%s4076 + $0x88] sm:$0xff]
      %v4095 = vld [vmem:[%s4076 + $0x90] sm:$0xff]
      %v4096 = vld [vmem:[%s4076 + $0x98] sm:$0xff]
      %v4097 = vld [vmem:[%s4076 + $0xa0] sm:$0xff]
      %v4098 = vld [vmem:[%s4076 + $0xa8] sm:$0xff]
      %v4099 = vld [vmem:[%s4076 + $0xb0] sm:$0xff]
      %v4100 = vld [vmem:[%s4076 + $0xb8] sm:$0xff]
      %v4101 = vld [vmem:[%s4076 + $0xc0] sm:$0xff]
      %v4102 = vld [vmem:[%s4076 + $0xc8] sm:$0xff]
      %v4103 = vld [vmem:[%s4076 + $0xd0] sm:$0xff]
      %v4104 = vld [vmem:[%s4076 + $0xd8] sm:$0xff]
      %v4105 = vld [vmem:[%s4076 + $0xe0] sm:$0xff]
      %v4106 = vld [vmem:[%s4076 + $0xe8] sm:$0xff]
      %v4107 = vld [vmem:[%s4076 + $0xf0] sm:$0xff]
      %v4108 = vld [vmem:[%s4076 + $0xf8] sm:$0xff]
      %v4109 = vld [vmem:[#allocation3] sm:$0xff]
      %v4110 = vld [vmem:[#allocation3 + $0x8] sm:$0xff]
      %v4111 = vld [vmem:[#allocation3 + $0x10] sm:$0xff]
      %v4112 = vld [vmem:[#allocation3 + $0x18] sm:$0xff]
      %v4113 = vld [vmem:[#allocation3 + $0x20] sm:$0xff]
      %v4114 = vld [vmem:[#allocation3 + $0x28] sm:$0xff]
      %v4115 = vld [vmem:[#allocation3 + $0x30] sm:$0xff]
      %v4116 = vld [vmem:[#allocation3 + $0x38] sm:$0xff]
      %v4117 = vld [vmem:[#allocation3 + $0x40] sm:$0xff]
      %v4118 = vld [vmem:[#allocation3 + $0x48] sm:$0xff]
      %v4119 = vld [vmem:[#allocation3 + $0x50] sm:$0xff]
      %v4120 = vld [vmem:[#allocation3 + $0x58] sm:$0xff]
      %v4121 = vld [vmem:[#allocation3 + $0x60] sm:$0xff]
      %v4122 = vld [vmem:[#allocation3 + $0x68] sm:$0xff]
      %v4123 = vld [vmem:[#allocation3 + $0x70] sm:$0xff]
      %v4124 = vld [vmem:[#allocation3 + $0x78] sm:$0xff]
      %v4125 = vld [vmem:[#allocation3 + $0x80] sm:$0xff]
      %v4126 = vld [vmem:[#allocation3 + $0x88] sm:$0xff]
      %v4127 = vld [vmem:[#allocation3 + $0x90] sm:$0xff]
      %v4128 = vld [vmem:[#allocation3 + $0x98] sm:$0xff]
      %v4129 = vld [vmem:[#allocation3 + $0xa0] sm:$0xff]
      %v4130 = vld [vmem:[#allocation3 + $0xa8] sm:$0xff]
      %v4131 = vld [vmem:[#allocation3 + $0xb0] sm:$0xff]
      %v4132 = vld [vmem:[#allocation3 + $0xb8] sm:$0xff]
      %v4133 = vld [vmem:[#allocation3 + $0xc0] sm:$0xff]
      %v4134 = vld [vmem:[#allocation3 + $0xc8] sm:$0xff]
      %v4135 = vld [vmem:[#allocation3 + $0xd0] sm:$0xff]
      %v4136 = vld [vmem:[#allocation3 + $0xd8] sm:$0xff]
      %v4137 = vld [vmem:[#allocation3 + $0xe0] sm:$0xff]
      %v4138 = vld [vmem:[#allocation3 + $0xe8] sm:$0xff]
      %v4139 = vld [vmem:[#allocation3 + $0xf0] sm:$0xff]
      %v4140 = vld [vmem:[#allocation3 + $0xf8] sm:$0xff]
      %v4141 = vpack.c.bf16 %v4078, %v4077
      %v4142 = vpack.c.bf16 %v4080, %v4079
      %v4143 = vpack.c.bf16 %v4082, %v4081
      %v4144 = vpack.c.bf16 %v4084, %v4083
      %v4145 = vpack.c.bf16 %v4086, %v4085
      %v4146 = vpack.c.bf16 %v4088, %v4087
      %v4147 = vpack.c.bf16 %v4090, %v4089
      %v4148 = vpack.c.bf16 %v4092, %v4091
      %v4149 = vpack.c.bf16 %v4094, %v4093
      %v4150 = vpack.c.bf16 %v4096, %v4095
      %v4151 = vpack.c.bf16 %v4098, %v4097
      %v4152 = vpack.c.bf16 %v4100, %v4099
      %v4153 = vpack.c.bf16 %v4102, %v4101
      %v4154 = vpack.c.bf16 %v4104, %v4103
      %v4155 = vpack.c.bf16 %v4106, %v4105
      %v4156 = vpack.c.bf16 %v4108, %v4107
      %s4157 = scalar_lea.vmem %s7, 28
      %v4158 = vld [vmem:[%s4157] sm:$0xf]
      %v4160 = vsel %vm1165, %v4141, 0
      %v4163 = vsel %vm1165, %v4142, 0
      %v4166 = vsel %vm1165, %v4143, 0
      %v4169 = vsel %vm1165, %v4144, 0
      %v4172 = vsel %vm1165, %v4145, 0
      %v4175 = vsel %vm1165, %v4146, 0
      %v4178 = vsel %vm1165, %v4147, 0
      %v4181 = vsel %vm1165, %v4148, 0
      %v4184 = vsel %vm1165, %v4149, 0
      %v4187 = vsel %vm1165, %v4150, 0
      %v4190 = vsel %vm1165, %v4151, 0
      %v4193 = vsel %vm1165, %v4152, 0
      %v4196 = vsel %vm1165, %v4153, 0
      %v4199 = vsel %vm1165, %v4154, 0
      %v4202 = vsel %vm1165, %v4155, 0
      %v4205 = vsel %vm1165, %v4156, 0
      %v4208 = vsel %vm1696, %v4158, 0
      %4210 = vmatprep.subr.bf16.mxu0 0
      %4211 = vmatpush1.bf16.msra.mxu0 %v4208
      %4212 = vmatprep.subr.bf16.mxu0 0
      %4213 = vmatpush1.bf16.msra.mxu0 0
      %4214 = vmatprep.subr.bf16.mxu0 0
      %4215 = vmatpush1.bf16.msra.mxu0 0
      %4216 = vmatprep.subr.bf16.mxu0 0
      %4217 = vmatpush1.bf16.msra.mxu0 0
      %4218 = vmatprep.subr.bf16.mxu0 0
      %4219 = vmatpush1.bf16.msra.mxu0 0
      %4220 = vmatprep.subr.bf16.mxu0 0
      %4221 = vmatpush1.bf16.msra.mxu0 0
      %4222 = vmatprep.subr.bf16.mxu0 0
      %4223 = vmatpush1.bf16.msra.mxu0 0
      %4224 = vmatprep.subr.bf16.mxu0 0
      %4225 = vmatpush1.bf16.msra.mxu0 0
      %4226 = vmatprep.subr.bf16.mxu0 0
      %4227 = vmatpush1.bf16.msra.mxu0 0
      %4228 = vmatprep.subr.bf16.mxu0 0
      %4229 = vmatpush1.bf16.msra.mxu0 0
      %4230 = vmatprep.subr.bf16.mxu0 0
      %4231 = vmatpush1.bf16.msra.mxu0 0
      %4232 = vmatprep.subr.bf16.mxu0 0
      %4233 = vmatpush1.bf16.msra.mxu0 0
      %4234 = vmatprep.subr.bf16.mxu0 0
      %4235 = vmatpush1.bf16.msra.mxu0 0
      %4236 = vmatprep.subr.bf16.mxu0 0
      %4237 = vmatpush1.bf16.msra.mxu0 0
      %4238 = vmatprep.subr.bf16.mxu0 0
      %4239 = vmatpush1.bf16.msra.mxu0 0
      %4240 = vmatprep.subr.bf16.mxu0 0
      %4241 = vmatpush1.bf16.msra.mxu0 0
      %4242 = vmatprep.mubr.bf16.mxu0 0
      %4243 = vmatmul.mubr.bf16.gmra.mrb[0].mxu0 %v4160
      %v4244 = vpop.f32.mrb[0].mxu0
      %v4245 = vadd.f32 0.0, %v4244
      %v4246 = vpop.f32.mrb[0].mxu0
      %v4247 = vpop.f32.mrb[0].mxu0
      %v4248 = vadd.f32 0.0, %v4247
      %v4249 = vpop.f32.mrb[0].mxu0
      %4250 = vmatprep.mubr.bf16.mxu0 0
      %4251 = vmatmul.mubr.bf16.gmra.mrb[0].mxu0 %v4163
      %v4252 = vpop.f32.mrb[0].mxu0
      %v4253 = vadd.f32 0.0, %v4252
      %v4254 = vpop.f32.mrb[0].mxu0
      %v4255 = vpop.f32.mrb[0].mxu0
      %v4256 = vadd.f32 0.0, %v4255
      %v4257 = vpop.f32.mrb[0].mxu0
      %4258 = vmatprep.mubr.bf16.mxu0 0
      %4259 = vmatmul.mubr.bf16.gmra.mrb[0].mxu0 %v4166
      %v4260 = vpop.f32.mrb[0].mxu0
      %v4261 = vadd.f32 0.0, %v4260
      %v4262 = vpop.f32.mrb[0].mxu0
      %v4263 = vpop.f32.mrb[0].mxu0
      %v4264 = vadd.f32 0.0, %v4263
      %v4265 = vpop.f32.mrb[0].mxu0
      %4266 = vmatprep.mubr.bf16.mxu0 0
      %4267 = vmatmul.mubr.bf16.gmra.mrb[0].mxu0 %v4169
      %v4268 = vpop.f32.mrb[0].mxu0
      %v4269 = vadd.f32 0.0, %v4268
      %v4270 = vpop.f32.mrb[0].mxu0
      %v4271 = vpop.f32.mrb[0].mxu0
      %v4272 = vadd.f32 0.0, %v4271
      %v4273 = vpop.f32.mrb[0].mxu0
      %4274 = vmatprep.mubr.bf16.mxu0 0
      %4275 = vmatmul.mubr.bf16.gmra.mrb[0].mxu0 %v4172
      %v4276 = vpop.f32.mrb[0].mxu0
      %v4277 = vadd.f32 0.0, %v4276
      %v4278 = vpop.f32.mrb[0].mxu0
      %v4279 = vpop.f32.mrb[0].mxu0
      %v4280 = vadd.f32 0.0, %v4279
      %v4281 = vpop.f32.mrb[0].mxu0
      %4282 = vmatprep.mubr.bf16.mxu0 0
      %4283 = vmatmul.mubr.bf16.gmra.mrb[0].mxu0 %v4175
      %v4284 = vpop.f32.mrb[0].mxu0
      %v4285 = vadd.f32 0.0, %v4284
      %v4286 = vpop.f32.mrb[0].mxu0
      %v4287 = vpop.f32.mrb[0].mxu0
      %v4288 = vadd.f32 0.0, %v4287
      %v4289 = vpop.f32.mrb[0].mxu0
      %4290 = vmatprep.mubr.bf16.mxu0 0
      %4291 = vmatmul.mubr.bf16.gmra.mrb[0].mxu0 %v4178
      %v4292 = vpop.f32.mrb[0].mxu0
      %v4293 = vadd.f32 0.0, %v4292
      %v4294 = vpop.f32.mrb[0].mxu0
      %v4295 = vpop.f32.mrb[0].mxu0
      %v4296 = vadd.f32 0.0, %v4295
      %v4297 = vpop.f32.mrb[0].mxu0
      %4298 = vmatprep.mubr.bf16.mxu0 0
      %4299 = vmatmul.mubr.bf16.gmra.mrb[0].mxu0 %v4181
      %v4300 = vpop.f32.mrb[0].mxu0
      %v4301 = vadd.f32 0.0, %v4300
      %v4302 = vpop.f32.mrb[0].mxu0
      %v4303 = vpop.f32.mrb[0].mxu0
      %v4304 = vadd.f32 0.0, %v4303
      %v4305 = vpop.f32.mrb[0].mxu0
      %4306 = vmatprep.mubr.bf16.mxu0 0
      %4307 = vmatmul.mubr.bf16.gmra.mrb[0].mxu0 %v4184
      %v4308 = vpop.f32.mrb[0].mxu0
      %v4309 = vadd.f32 0.0, %v4308
      %v4310 = vpop.f32.mrb[0].mxu0
      %v4311 = vpop.f32.mrb[0].mxu0
      %v4312 = vadd.f32 0.0, %v4311
      %v4313 = vpop.f32.mrb[0].mxu0
      %4314 = vmatprep.mubr.bf16.mxu0 0
      %4315 = vmatmul.mubr.bf16.gmra.mrb[0].mxu0 %v4187
      %v4316 = vpop.f32.mrb[0].mxu0
      %v4317 = vadd.f32 0.0, %v4316
      %v4318 = vpop.f32.mrb[0].mxu0
      %v4319 = vpop.f32.mrb[0].mxu0
      %v4320 = vadd.f32 0.0, %v4319
      %v4321 = vpop.f32.mrb[0].mxu0
      %4322 = vmatprep.mubr.bf16.mxu0 0
      %4323 = vmatmul.mubr.bf16.gmra.mrb[0].mxu0 %v4190
      %v4324 = vpop.f32.mrb[0].mxu0
      %v4325 = vadd.f32 0.0, %v4324
      %v4326 = vpop.f32.mrb[0].mxu0
      %v4327 = vpop.f32.mrb[0].mxu0
      %v4328 = vadd.f32 0.0, %v4327
      %v4329 = vpop.f32.mrb[0].mxu0
      %4330 = vmatprep.mubr.bf16.mxu0 0
      %4331 = vmatmul.mubr.bf16.gmra.mrb[0].mxu0 %v4193
      %v4332 = vpop.f32.mrb[0].mxu0
      %v4333 = vadd.f32 0.0, %v4332
      %v4334 = vpop.f32.mrb[0].mxu0
      %v4335 = vpop.f32.mrb[0].mxu0
      %v4336 = vadd.f32 0.0, %v4335
      %v4337 = vpop.f32.mrb[0].mxu0
      %4338 = vmatprep.mubr.bf16.mxu0 0
      %4339 = vmatmul.mubr.bf16.gmra.mrb[0].mxu0 %v4196
      %v4340 = vpop.f32.mrb[0].mxu0
      %v4341 = vadd.f32 0.0, %v4340
      %v4342 = vpop.f32.mrb[0].mxu0
      %v4343 = vpop.f32.mrb[0].mxu0
      %v4344 = vadd.f32 0.0, %v4343
      %v4345 = vpop.f32.mrb[0].mxu0
      %4346 = vmatprep.mubr.bf16.mxu0 0
      %4347 = vmatmul.mubr.bf16.gmra.mrb[0].mxu0 %v4199
      %v4348 = vpop.f32.mrb[0].mxu0
      %v4349 = vadd.f32 0.0, %v4348
      %v4350 = vpop.f32.mrb[0].mxu0
      %v4351 = vpop.f32.mrb[0].mxu0
      %v4352 = vadd.f32 0.0, %v4351
      %v4353 = vpop.f32.mrb[0].mxu0
      %4354 = vmatprep.mubr.bf16.mxu0 0
      %4355 = vmatmul.mubr.bf16.gmra.mrb[0].mxu0 %v4202
      %v4356 = vpop.f32.mrb[0].mxu0
      %v4357 = vadd.f32 0.0, %v4356
      %v4358 = vpop.f32.mrb[0].mxu0
      %v4359 = vpop.f32.mrb[0].mxu0
      %v4360 = vadd.f32 0.0, %v4359
      %v4361 = vpop.f32.mrb[0].mxu0
      %4362 = vmatprep.mubr.bf16.mxu0 0
      %4363 = vmatmul.mubr.bf16.gmra.mrb[0].mxu0 %v4205
      %v4364 = vpop.f32.mrb[0].mxu0
      %v4365 = vadd.f32 0.0, %v4364
      %v4366 = vpop.f32.mrb[0].mxu0
      %v4367 = vpop.f32.mrb[0].mxu0
      %v4368 = vadd.f32 0.0, %v4367
      %v4369 = vpop.f32.mrb[0].mxu0
      %4370 = vdwg.mxu0
      %v4371 = vadd.f32 %v4109, %v4245
      %v4372 = vadd.f32 %v4110, %v4248
      %v4373 = vadd.f32 %v4111, %v4253
      %v4374 = vadd.f32 %v4112, %v4256
      %v4375 = vadd.f32 %v4113, %v4261
      %v4376 = vadd.f32 %v4114, %v4264
      %v4377 = vadd.f32 %v4115, %v4269
      %v4378 = vadd.f32 %v4116, %v4272
      %v4379 = vadd.f32 %v4117, %v4277
      %v4380 = vadd.f32 %v4118, %v4280
      %v4381 = vadd.f32 %v4119, %v4285
      %v4382 = vadd.f32 %v4120, %v4288
      %v4383 = vadd.f32 %v4121, %v4293
      %v4384 = vadd.f32 %v4122, %v4296
      %v4385 = vadd.f32 %v4123, %v4301
      %v4386 = vadd.f32 %v4124, %v4304
      %v4387 = vadd.f32 %v4125, %v4309
      %v4388 = vadd.f32 %v4126, %v4312
      %v4389 = vadd.f32 %v4127, %v4317
      %v4390 = vadd.f32 %v4128, %v4320
      %v4391 = vadd.f32 %v4129, %v4325
      %v4392 = vadd.f32 %v4130, %v4328
      %v4393 = vadd.f32 %v4131, %v4333
      %v4394 = vadd.f32 %v4132, %v4336
      %v4395 = vadd.f32 %v4133, %v4341
      %v4396 = vadd.f32 %v4134, %v4344
      %v4397 = vadd.f32 %v4135, %v4349
      %v4398 = vadd.f32 %v4136, %v4352
      %v4399 = vadd.f32 %v4137, %v4357
      %v4400 = vadd.f32 %v4138, %v4360
      %v4401 = vadd.f32 %v4139, %v4365
      %v4402 = vadd.f32 %v4140, %v4368
      %4403 = vst.msk [vmem:[#allocation3] sm:$0xff] %vm1165, %v4371
      %4404 = vst.msk [vmem:[#allocation3 + $0x8] sm:$0xff] %vm1165, %v4372
      %4405 = vst.msk [vmem:[#allocation3 + $0x10] sm:$0xff] %vm1165, %v4373
      %4406 = vst.msk [vmem:[#allocation3 + $0x18] sm:$0xff] %vm1165, %v4374
      %4407 = vst.msk [vmem:[#allocation3 + $0x20] sm:$0xff] %vm1165, %v4375
      %4408 = vst.msk [vmem:[#allocation3 + $0x28] sm:$0xff] %vm1165, %v4376
      %4409 = vst.msk [vmem:[#allocation3 + $0x30] sm:$0xff] %vm1165, %v4377
      %4410 = vst.msk [vmem:[#allocation3 + $0x38] sm:$0xff] %vm1165, %v4378
      %4411 = vst.msk [vmem:[#allocation3 + $0x40] sm:$0xff] %vm1165, %v4379
      %4412 = vst.msk [vmem:[#allocation3 + $0x48] sm:$0xff] %vm1165, %v4380
      %4413 = vst.msk [vmem:[#allocation3 + $0x50] sm:$0xff] %vm1165, %v4381
      %4414 = vst.msk [vmem:[#allocation3 + $0x58] sm:$0xff] %vm1165, %v4382
      %4415 = vst.msk [vmem:[#allocation3 + $0x60] sm:$0xff] %vm1165, %v4383
      %4416 = vst.msk [vmem:[#allocation3 + $0x68] sm:$0xff] %vm1165, %v4384
      %4417 = vst.msk [vmem:[#allocation3 + $0x70] sm:$0xff] %vm1165, %v4385
      %4418 = vst.msk [vmem:[#allocation3 + $0x78] sm:$0xff] %vm1165, %v4386
      %4419 = vst.msk [vmem:[#allocation3 + $0x80] sm:$0xff] %vm1165, %v4387
      %4420 = vst.msk [vmem:[#allocation3 + $0x88] sm:$0xff] %vm1165, %v4388
      %4421 = vst.msk [vmem:[#allocation3 + $0x90] sm:$0xff] %vm1165, %v4389
      %4422 = vst.msk [vmem:[#allocation3 + $0x98] sm:$0xff] %vm1165, %v4390
      %4423 = vst.msk [vmem:[#allocation3 + $0xa0] sm:$0xff] %vm1165, %v4391
      %4424 = vst.msk [vmem:[#allocation3 + $0xa8] sm:$0xff] %vm1165, %v4392
      %4425 = vst.msk [vmem:[#allocation3 + $0xb0] sm:$0xff] %vm1165, %v4393
      %4426 = vst.msk [vmem:[#allocation3 + $0xb8] sm:$0xff] %vm1165, %v4394
      %4427 = vst.msk [vmem:[#allocation3 + $0xc0] sm:$0xff] %vm1165, %v4395
      %4428 = vst.msk [vmem:[#allocation3 + $0xc8] sm:$0xff] %vm1165, %v4396
      %4429 = vst.msk [vmem:[#allocation3 + $0xd0] sm:$0xff] %vm1165, %v4397
      %4430 = vst.msk [vmem:[#allocation3 + $0xd8] sm:$0xff] %vm1165, %v4398
      %4431 = vst.msk [vmem:[#allocation3 + $0xe0] sm:$0xff] %vm1165, %v4399
      %4432 = vst.msk [vmem:[#allocation3 + $0xe8] sm:$0xff] %vm1165, %v4400
      %4433 = vst.msk [vmem:[#allocation3 + $0xf0] sm:$0xff] %vm1165, %v4401
      %4434 = vst.msk [vmem:[#allocation3 + $0xf8] sm:$0xff] %vm1165, %v4402
      %s4435 = scalar_lea.vmem [#allocation2], 608
      %v4436 = vld [vmem:[%s4435] sm:$0xff]
      %v4437 = vld [vmem:[%s4435 + $0x8] sm:$0xff]
      %v4438 = vld [vmem:[%s4435 + $0x10] sm:$0xff]
      %v4439 = vld [vmem:[%s4435 + $0x18] sm:$0xff]
      %v4440 = vld [vmem:[%s4435 + $0x20] sm:$0xff]
      %v4441 = vld [vmem:[%s4435 + $0x28] sm:$0xff]
      %v4442 = vld [vmem:[%s4435 + $0x30] sm:$0xff]
      %v4443 = vld [vmem:[%s4435 + $0x38] sm:$0xff]
      %v4444 = vld [vmem:[%s4435 + $0x40] sm:$0xff]
      %v4445 = vld [vmem:[%s4435 + $0x48] sm:$0xff]
      %v4446 = vld [vmem:[%s4435 + $0x50] sm:$0xff]
      %v4447 = vld [vmem:[%s4435 + $0x58] sm:$0xff]
      %v4448 = vld [vmem:[%s4435 + $0x60] sm:$0xff]
      %v4449 = vld [vmem:[%s4435 + $0x68] sm:$0xff]
      %v4450 = vld [vmem:[%s4435 + $0x70] sm:$0xff]
      %v4451 = vld [vmem:[%s4435 + $0x78] sm:$0xff]
      %v4452 = vld [vmem:[%s4435 + $0x80] sm:$0xff]
      %v4453 = vld [vmem:[%s4435 + $0x88] sm:$0xff]
      %v4454 = vld [vmem:[%s4435 + $0x90] sm:$0xff]
      %v4455 = vld [vmem:[%s4435 + $0x98] sm:$0xff]
      %v4456 = vld [vmem:[%s4435 + $0xa0] sm:$0xff]
      %v4457 = vld [vmem:[%s4435 + $0xa8] sm:$0xff]
      %v4458 = vld [vmem:[%s4435 + $0xb0] sm:$0xff]
      %v4459 = vld [vmem:[%s4435 + $0xb8] sm:$0xff]
      %v4460 = vld [vmem:[%s4435 + $0xc0] sm:$0xff]
      %v4461 = vld [vmem:[%s4435 + $0xc8] sm:$0xff]
      %v4462 = vld [vmem:[%s4435 + $0xd0] sm:$0xff]
      %v4463 = vld [vmem:[%s4435 + $0xd8] sm:$0xff]
      %v4464 = vld [vmem:[%s4435 + $0xe0] sm:$0xff]
      %v4465 = vld [vmem:[%s4435 + $0xe8] sm:$0xff]
      %v4466 = vld [vmem:[%s4435 + $0xf0] sm:$0xff]
      %v4467 = vld [vmem:[%s4435 + $0xf8] sm:$0xff]
      %v4468 = vld [vmem:[#allocation3] sm:$0xff]
      %v4469 = vld [vmem:[#allocation3 + $0x8] sm:$0xff]
      %v4470 = vld [vmem:[#allocation3 + $0x10] sm:$0xff]
      %v4471 = vld [vmem:[#allocation3 + $0x18] sm:$0xff]
      %v4472 = vld [vmem:[#allocation3 + $0x20] sm:$0xff]
      %v4473 = vld [vmem:[#allocation3 + $0x28] sm:$0xff]
      %v4474 = vld [vmem:[#allocation3 + $0x30] sm:$0xff]
      %v4475 = vld [vmem:[#allocation3 + $0x38] sm:$0xff]
      %v4476 = vld [vmem:[#allocation3 + $0x40] sm:$0xff]
      %v4477 = vld [vmem:[#allocation3 + $0x48] sm:$0xff]
      %v4478 = vld [vmem:[#allocation3 + $0x50] sm:$0xff]
      %v4479 = vld [vmem:[#allocation3 + $0x58] sm:$0xff]
      %v4480 = vld [vmem:[#allocation3 + $0x60] sm:$0xff]
      %v4481 = vld [vmem:[#allocation3 + $0x68] sm:$0xff]
      %v4482 = vld [vmem:[#allocation3 + $0x70] sm:$0xff]
      %v4483 = vld [vmem:[#allocation3 + $0x78] sm:$0xff]
      %v4484 = vld [vmem:[#allocation3 + $0x80] sm:$0xff]
      %v4485 = vld [vmem:[#allocation3 + $0x88] sm:$0xff]
      %v4486 = vld [vmem:[#allocation3 + $0x90] sm:$0xff]
      %v4487 = vld [vmem:[#allocation3 + $0x98] sm:$0xff]
      %v4488 = vld [vmem:[#allocation3 + $0xa0] sm:$0xff]
      %v4489 = vld [vmem:[#allocation3 + $0xa8] sm:$0xff]
      %v4490 = vld [vmem:[#allocation3 + $0xb0] sm:$0xff]
      %v4491 = vld [vmem:[#allocation3 + $0xb8] sm:$0xff]
      %v4492 = vld [vmem:[#allocation3 + $0xc0] sm:$0xff]
      %v4493 = vld [vmem:[#allocation3 + $0xc8] sm:$0xff]
      %v4494 = vld [vmem:[#allocation3 + $0xd0] sm:$0xff]
      %v4495 = vld [vmem:[#allocation3 + $0xd8] sm:$0xff]
      %v4496 = vld [vmem:[#allocation3 + $0xe0] sm:$0xff]
      %v4497 = vld [vmem:[#allocation3 + $0xe8] sm:$0xff]
      %v4498 = vld [vmem:[#allocation3 + $0xf0] sm:$0xff]
      %v4499 = vld [vmem:[#allocation3 + $0xf8] sm:$0xff]
      %v4500 = vpack.c.bf16 %v4437, %v4436
      %v4501 = vpack.c.bf16 %v4439, %v4438
      %v4502 = vpack.c.bf16 %v4441, %v4440
      %v4503 = vpack.c.bf16 %v4443, %v4442
      %v4504 = vpack.c.bf16 %v4445, %v4444
      %v4505 = vpack.c.bf16 %v4447, %v4446
      %v4506 = vpack.c.bf16 %v4449, %v4448
      %v4507 = vpack.c.bf16 %v4451, %v4450
      %v4508 = vpack.c.bf16 %v4453, %v4452
      %v4509 = vpack.c.bf16 %v4455, %v4454
      %v4510 = vpack.c.bf16 %v4457, %v4456
      %v4511 = vpack.c.bf16 %v4459, %v4458
      %v4512 = vpack.c.bf16 %v4461, %v4460
      %v4513 = vpack.c.bf16 %v4463, %v4462
      %v4514 = vpack.c.bf16 %v4465, %v4464
      %v4515 = vpack.c.bf16 %v4467, %v4466
      %s4516 = scalar_lea.vmem %s7, 32
      %v4517 = vld [vmem:[%s4516] sm:$0xf]
      %v4519 = vsel %vm1165, %v4500, 0
      %v4522 = vsel %vm1165, %v4501, 0
      %v4525 = vsel %vm1165, %v4502, 0
      %v4528 = vsel %vm1165, %v4503, 0
      %v4531 = vsel %vm1165, %v4504, 0
      %v4534 = vsel %vm1165, %v4505, 0
      %v4537 = vsel %vm1165, %v4506, 0
      %v4540 = vsel %vm1165, %v4507, 0
      %v4543 = vsel %vm1165, %v4508, 0
      %v4546 = vsel %vm1165, %v4509, 0
      %v4549 = vsel %vm1165, %v4510, 0
      %v4552 = vsel %vm1165, %v4511, 0
      %v4555 = vsel %vm1165, %v4512, 0
      %v4558 = vsel %vm1165, %v4513, 0
      %v4561 = vsel %vm1165, %v4514, 0
      %v4564 = vsel %vm1165, %v4515, 0
      %v4567 = vsel %vm1696, %v4517, 0
      %4569 = vmatprep.subr.bf16.mxu0 0
      %4570 = vmatpush1.bf16.msra.mxu0 %v4567
      %4571 = vmatprep.subr.bf16.mxu0 0
      %4572 = vmatpush1.bf16.msra.mxu0 0
      %4573 = vmatprep.subr.bf16.mxu0 0
      %4574 = vmatpush1.bf16.msra.mxu0 0
      %4575 = vmatprep.subr.bf16.mxu0 0
      %4576 = vmatpush1.bf16.msra.mxu0 0
      %4577 = vmatprep.subr.bf16.mxu0 0
      %4578 = vmatpush1.bf16.msra.mxu0 0
      %4579 = vmatprep.subr.bf16.mxu0 0
      %4580 = vmatpush1.bf16.msra.mxu0 0
      %4581 = vmatprep.subr.bf16.mxu0 0
      %4582 = vmatpush1.bf16.msra.mxu0 0
      %4583 = vmatprep.subr.bf16.mxu0 0
      %4584 = vmatpush1.bf16.msra.mxu0 0
      %4585 = vmatprep.subr.bf16.mxu0 0
      %4586 = vmatpush1.bf16.msra.mxu0 0
      %4587 = vmatprep.subr.bf16.mxu0 0
      %4588 = vmatpush1.bf16.msra.mxu0 0
      %4589 = vmatprep.subr.bf16.mxu0 0
      %4590 = vmatpush1.bf16.msra.mxu0 0
      %4591 = vmatprep.subr.bf16.mxu0 0
      %4592 = vmatpush1.bf16.msra.mxu0 0
      %4593 = vmatprep.subr.bf16.mxu0 0
      %4594 = vmatpush1.bf16.msra.mxu0 0
      %4595 = vmatprep.subr.bf16.mxu0 0
      %4596 = vmatpush1.bf16.msra.mxu0 0
      %4597 = vmatprep.subr.bf16.mxu0 0
      %4598 = vmatpush1.bf16.msra.mxu0 0
      %4599 = vmatprep.subr.bf16.mxu0 0
      %4600 = vmatpush1.bf16.msra.mxu0 0
      %4601 = vmatprep.mubr.bf16.mxu0 0
      %4602 = vmatmul.mubr.bf16.gmra.mrb[0].mxu0 %v4519
      %v4603 = vpop.f32.mrb[0].mxu0
      %v4604 = vadd.f32 0.0, %v4603
      %v4605 = vpop.f32.mrb[0].mxu0
      %v4606 = vpop.f32.mrb[0].mxu0
      %v4607 = vadd.f32 0.0, %v4606
      %v4608 = vpop.f32.mrb[0].mxu0
      %4609 = vmatprep.mubr.bf16.mxu0 0
      %4610 = vmatmul.mubr.bf16.gmra.mrb[0].mxu0 %v4522
      %v4611 = vpop.f32.mrb[0].mxu0
      %v4612 = vadd.f32 0.0, %v4611
      %v4613 = vpop.f32.mrb[0].mxu0
      %v4614 = vpop.f32.mrb[0].mxu0
      %v4615 = vadd.f32 0.0, %v4614
      %v4616 = vpop.f32.mrb[0].mxu0
      %4617 = vmatprep.mubr.bf16.mxu0 0
      %4618 = vmatmul.mubr.bf16.gmra.mrb[0].mxu0 %v4525
      %v4619 = vpop.f32.mrb[0].mxu0
      %v4620 = vadd.f32 0.0, %v4619
      %v4621 = vpop.f32.mrb[0].mxu0
      %v4622 = vpop.f32.mrb[0].mxu0
      %v4623 = vadd.f32 0.0, %v4622
      %v4624 = vpop.f32.mrb[0].mxu0
      %4625 = vmatprep.mubr.bf16.mxu0 0
      %4626 = vmatmul.mubr.bf16.gmra.mrb[0].mxu0 %v4528
      %v4627 = vpop.f32.mrb[0].mxu0
      %v4628 = vadd.f32 0.0, %v4627
      %v4629 = vpop.f32.mrb[0].mxu0
      %v4630 = vpop.f32.mrb[0].mxu0
      %v4631 = vadd.f32 0.0, %v4630
      %v4632 = vpop.f32.mrb[0].mxu0
      %4633 = vmatprep.mubr.bf16.mxu0 0
      %4634 = vmatmul.mubr.bf16.gmra.mrb[0].mxu0 %v4531
      %v4635 = vpop.f32.mrb[0].mxu0
      %v4636 = vadd.f32 0.0, %v4635
      %v4637 = vpop.f32.mrb[0].mxu0
      %v4638 = vpop.f32.mrb[0].mxu0
      %v4639 = vadd.f32 0.0, %v4638
      %v4640 = vpop.f32.mrb[0].mxu0
      %4641 = vmatprep.mubr.bf16.mxu0 0
      %4642 = vmatmul.mubr.bf16.gmra.mrb[0].mxu0 %v4534
      %v4643 = vpop.f32.mrb[0].mxu0
      %v4644 = vadd.f32 0.0, %v4643
      %v4645 = vpop.f32.mrb[0].mxu0
      %v4646 = vpop.f32.mrb[0].mxu0
      %v4647 = vadd.f32 0.0, %v4646
      %v4648 = vpop.f32.mrb[0].mxu0
      %4649 = vmatprep.mubr.bf16.mxu0 0
      %4650 = vmatmul.mubr.bf16.gmra.mrb[0].mxu0 %v4537
      %v4651 = vpop.f32.mrb[0].mxu0
      %v4652 = vadd.f32 0.0, %v4651
      %v4653 = vpop.f32.mrb[0].mxu0
      %v4654 = vpop.f32.mrb[0].mxu0
      %v4655 = vadd.f32 0.0, %v4654
      %v4656 = vpop.f32.mrb[0].mxu0
      %4657 = vmatprep.mubr.bf16.mxu0 0
      %4658 = vmatmul.mubr.bf16.gmra.mrb[0].mxu0 %v4540
      %v4659 = vpop.f32.mrb[0].mxu0
      %v4660 = vadd.f32 0.0, %v4659
      %v4661 = vpop.f32.mrb[0].mxu0
      %v4662 = vpop.f32.mrb[0].mxu0
      %v4663 = vadd.f32 0.0, %v4662
      %v4664 = vpop.f32.mrb[0].mxu0
      %4665 = vmatprep.mubr.bf16.mxu0 0
      %4666 = vmatmul.mubr.bf16.gmra.mrb[0].mxu0 %v4543
      %v4667 = vpop.f32.mrb[0].mxu0
      %v4668 = vadd.f32 0.0, %v4667
      %v4669 = vpop.f32.mrb[0].mxu0
      %v4670 = vpop.f32.mrb[0].mxu0
      %v4671 = vadd.f32 0.0, %v4670
      %v4672 = vpop.f32.mrb[0].mxu0
      %4673 = vmatprep.mubr.bf16.mxu0 0
      %4674 = vmatmul.mubr.bf16.gmra.mrb[0].mxu0 %v4546
      %v4675 = vpop.f32.mrb[0].mxu0
      %v4676 = vadd.f32 0.0, %v4675
      %v4677 = vpop.f32.mrb[0].mxu0
      %v4678 = vpop.f32.mrb[0].mxu0
      %v4679 = vadd.f32 0.0, %v4678
      %v4680 = vpop.f32.mrb[0].mxu0
      %4681 = vmatprep.mubr.bf16.mxu0 0
      %4682 = vmatmul.mubr.bf16.gmra.mrb[0].mxu0 %v4549
      %v4683 = vpop.f32.mrb[0].mxu0
      %v4684 = vadd.f32 0.0, %v4683
      %v4685 = vpop.f32.mrb[0].mxu0
      %v4686 = vpop.f32.mrb[0].mxu0
      %v4687 = vadd.f32 0.0, %v4686
      %v4688 = vpop.f32.mrb[0].mxu0
      %4689 = vmatprep.mubr.bf16.mxu0 0
      %4690 = vmatmul.mubr.bf16.gmra.mrb[0].mxu0 %v4552
      %v4691 = vpop.f32.mrb[0].mxu0
      %v4692 = vadd.f32 0.0, %v4691
      %v4693 = vpop.f32.mrb[0].mxu0
      %v4694 = vpop.f32.mrb[0].mxu0
      %v4695 = vadd.f32 0.0, %v4694
      %v4696 = vpop.f32.mrb[0].mxu0
      %4697 = vmatprep.mubr.bf16.mxu0 0
      %4698 = vmatmul.mubr.bf16.gmra.mrb[0].mxu0 %v4555
      %v4699 = vpop.f32.mrb[0].mxu0
      %v4700 = vadd.f32 0.0, %v4699
      %v4701 = vpop.f32.mrb[0].mxu0
      %v4702 = vpop.f32.mrb[0].mxu0
      %v4703 = vadd.f32 0.0, %v4702
      %v4704 = vpop.f32.mrb[0].mxu0
      %4705 = vmatprep.mubr.bf16.mxu0 0
      %4706 = vmatmul.mubr.bf16.gmra.mrb[0].mxu0 %v4558
      %v4707 = vpop.f32.mrb[0].mxu0
      %v4708 = vadd.f32 0.0, %v4707
      %v4709 = vpop.f32.mrb[0].mxu0
      %v4710 = vpop.f32.mrb[0].mxu0
      %v4711 = vadd.f32 0.0, %v4710
      %v4712 = vpop.f32.mrb[0].mxu0
      %4713 = vmatprep.mubr.bf16.mxu0 0
      %4714 = vmatmul.mubr.bf16.gmra.mrb[0].mxu0 %v4561
      %v4715 = vpop.f32.mrb[0].mxu0
      %v4716 = vadd.f32 0.0, %v4715
      %v4717 = vpop.f32.mrb[0].mxu0
      %v4718 = vpop.f32.mrb[0].mxu0
      %v4719 = vadd.f32 0.0, %v4718
      %v4720 = vpop.f32.mrb[0].mxu0
      %4721 = vmatprep.mubr.bf16.mxu0 0
      %4722 = vmatmul.mubr.bf16.gmra.mrb[0].mxu0 %v4564
      %v4723 = vpop.f32.mrb[0].mxu0
      %v4724 = vadd.f32 0.0, %v4723
      %v4725 = vpop.f32.mrb[0].mxu0
      %v4726 = vpop.f32.mrb[0].mxu0
      %v4727 = vadd.f32 0.0, %v4726
      %v4728 = vpop.f32.mrb[0].mxu0
      %4729 = vdwg.mxu0
      %v4730 = vadd.f32 %v4468, %v4604
      %v4731 = vadd.f32 %v4469, %v4607
      %v4732 = vadd.f32 %v4470, %v4612
      %v4733 = vadd.f32 %v4471, %v4615
      %v4734 = vadd.f32 %v4472, %v4620
      %v4735 = vadd.f32 %v4473, %v4623
      %v4736 = vadd.f32 %v4474, %v4628
      %v4737 = vadd.f32 %v4475, %v4631
      %v4738 = vadd.f32 %v4476, %v4636
      %v4739 = vadd.f32 %v4477, %v4639
      %v4740 = vadd.f32 %v4478, %v4644
      %v4741 = vadd.f32 %v4479, %v4647
      %v4742 = vadd.f32 %v4480, %v4652
      %v4743 = vadd.f32 %v4481, %v4655
      %v4744 = vadd.f32 %v4482, %v4660
      %v4745 = vadd.f32 %v4483, %v4663
      %v4746 = vadd.f32 %v4484, %v4668
      %v4747 = vadd.f32 %v4485, %v4671
      %v4748 = vadd.f32 %v4486, %v4676
      %v4749 = vadd.f32 %v4487, %v4679
      %v4750 = vadd.f32 %v4488, %v4684
      %v4751 = vadd.f32 %v4489, %v4687
      %v4752 = vadd.f32 %v4490, %v4692
      %v4753 = vadd.f32 %v4491, %v4695
      %v4754 = vadd.f32 %v4492, %v4700
      %v4755 = vadd.f32 %v4493, %v4703
      %v4756 = vadd.f32 %v4494, %v4708
      %v4757 = vadd.f32 %v4495, %v4711
      %v4758 = vadd.f32 %v4496, %v4716
      %v4759 = vadd.f32 %v4497, %v4719
      %v4760 = vadd.f32 %v4498, %v4724
      %v4761 = vadd.f32 %v4499, %v4727
      %4762 = vst.msk [vmem:[#allocation3] sm:$0xff] %vm1165, %v4730
      %4763 = vst.msk [vmem:[#allocation3 + $0x8] sm:$0xff] %vm1165, %v4731
      %4764 = vst.msk [vmem:[#allocation3 + $0x10] sm:$0xff] %vm1165, %v4732
      %4765 = vst.msk [vmem:[#allocation3 + $0x18] sm:$0xff] %vm1165, %v4733
      %4766 = vst.msk [vmem:[#allocation3 + $0x20] sm:$0xff] %vm1165, %v4734
      %4767 = vst.msk [vmem:[#allocation3 + $0x28] sm:$0xff] %vm1165, %v4735
      %4768 = vst.msk [vmem:[#allocation3 + $0x30] sm:$0xff] %vm1165, %v4736
      %4769 = vst.msk [vmem:[#allocation3 + $0x38] sm:$0xff] %vm1165, %v4737
      %4770 = vst.msk [vmem:[#allocation3 + $0x40] sm:$0xff] %vm1165, %v4738
      %4771 = vst.msk [vmem:[#allocation3 + $0x48] sm:$0xff] %vm1165, %v4739
      %4772 = vst.msk [vmem:[#allocation3 + $0x50] sm:$0xff] %vm1165, %v4740
      %4773 = vst.msk [vmem:[#allocation3 + $0x58] sm:$0xff] %vm1165, %v4741
      %4774 = vst.msk [vmem:[#allocation3 + $0x60] sm:$0xff] %vm1165, %v4742
      %4775 = vst.msk [vmem:[#allocation3 + $0x68] sm:$0xff] %vm1165, %v4743
      %4776 = vst.msk [vmem:[#allocation3 + $0x70] sm:$0xff] %vm1165, %v4744
      %4777 = vst.msk [vmem:[#allocation3 + $0x78] sm:$0xff] %vm1165, %v4745
      %4778 = vst.msk [vmem:[#allocation3 + $0x80] sm:$0xff] %vm1165, %v4746
      %4779 = vst.msk [vmem:[#allocation3 + $0x88] sm:$0xff] %vm1165, %v4747
      %4780 = vst.msk [vmem:[#allocation3 + $0x90] sm:$0xff] %vm1165, %v4748
      %4781 = vst.msk [vmem:[#allocation3 + $0x98] sm:$0xff] %vm1165, %v4749
      %4782 = vst.msk [vmem:[#allocation3 + $0xa0] sm:$0xff] %vm1165, %v4750
      %4783 = vst.msk [vmem:[#allocation3 + $0xa8] sm:$0xff] %vm1165, %v4751
      %4784 = vst.msk [vmem:[#allocation3 + $0xb0] sm:$0xff] %vm1165, %v4752
      %4785 = vst.msk [vmem:[#allocation3 + $0xb8] sm:$0xff] %vm1165, %v4753
      %4786 = vst.msk [vmem:[#allocation3 + $0xc0] sm:$0xff] %vm1165, %v4754
      %4787 = vst.msk [vmem:[#allocation3 + $0xc8] sm:$0xff] %vm1165, %v4755
      %4788 = vst.msk [vmem:[#allocation3 + $0xd0] sm:$0xff] %vm1165, %v4756
      %4789 = vst.msk [vmem:[#allocation3 + $0xd8] sm:$0xff] %vm1165, %v4757
      %4790 = vst.msk [vmem:[#allocation3 + $0xe0] sm:$0xff] %vm1165, %v4758
      %4791 = vst.msk [vmem:[#allocation3 + $0xe8] sm:$0xff] %vm1165, %v4759
      %4792 = vst.msk [vmem:[#allocation3 + $0xf0] sm:$0xff] %vm1165, %v4760
      %4793 = vst.msk [vmem:[#allocation3 + $0xf8] sm:$0xff] %vm1165, %v4761
      %v4794 = vld [vmem:[#allocation3] sm:$0xff]
      %v4795 = vld [vmem:[#allocation3 + $0x8] sm:$0xff]
      %v4796 = vld [vmem:[#allocation3 + $0x10] sm:$0xff]
      %v4797 = vld [vmem:[#allocation3 + $0x18] sm:$0xff]
      %v4798 = vld [vmem:[#allocation3 + $0x20] sm:$0xff]
      %v4799 = vld [vmem:[#allocation3 + $0x28] sm:$0xff]
      %v4800 = vld [vmem:[#allocation3 + $0x30] sm:$0xff]
      %v4801 = vld [vmem:[#allocation3 + $0x38] sm:$0xff]
      %v4802 = vld [vmem:[#allocation3 + $0x40] sm:$0xff]
      %v4803 = vld [vmem:[#allocation3 + $0x48] sm:$0xff]
      %v4804 = vld [vmem:[#allocation3 + $0x50] sm:$0xff]
      %v4805 = vld [vmem:[#allocation3 + $0x58] sm:$0xff]
      %v4806 = vld [vmem:[#allocation3 + $0x60] sm:$0xff]
      %v4807 = vld [vmem:[#allocation3 + $0x68] sm:$0xff]
      %v4808 = vld [vmem:[#allocation3 + $0x70] sm:$0xff]
      %v4809 = vld [vmem:[#allocation3 + $0x78] sm:$0xff]
      %v4810 = vld [vmem:[#allocation3 + $0x80] sm:$0xff]
      %v4811 = vld [vmem:[#allocation3 + $0x88] sm:$0xff]
      %v4812 = vld [vmem:[#allocation3 + $0x90] sm:$0xff]
      %v4813 = vld [vmem:[#allocation3 + $0x98] sm:$0xff]
      %v4814 = vld [vmem:[#allocation3 + $0xa0] sm:$0xff]
      %v4815 = vld [vmem:[#allocation3 + $0xa8] sm:$0xff]
      %v4816 = vld [vmem:[#allocation3 + $0xb0] sm:$0xff]
      %v4817 = vld [vmem:[#allocation3 + $0xb8] sm:$0xff]
      %v4818 = vld [vmem:[#allocation3 + $0xc0] sm:$0xff]
      %v4819 = vld [vmem:[#allocation3 + $0xc8] sm:$0xff]
      %v4820 = vld [vmem:[#allocation3 + $0xd0] sm:$0xff]
      %v4821 = vld [vmem:[#allocation3 + $0xd8] sm:$0xff]
      %v4822 = vld [vmem:[#allocation3 + $0xe0] sm:$0xff]
      %v4823 = vld [vmem:[#allocation3 + $0xe8] sm:$0xff]
      %v4824 = vld [vmem:[#allocation3 + $0xf0] sm:$0xff]
      %v4825 = vld [vmem:[#allocation3 + $0xf8] sm:$0xff]
      %v4826 = vld [vmem:[%s8] sm:$0x1]
      %v4828 = vlaneseq
      %v4829 = vshrl.u32 %v4828, 7
      %v4830 = vsub.s32 0, %v4829
      %v4831 = vrot.slane %v4826, %v4830
      %v4833 = vmul.f32 %v4794, %v4831
      %v4834 = vmul.f32 %v4795, %v4831
      %v4835 = vmul.f32 %v4796, %v4831
      %v4836 = vmul.f32 %v4797, %v4831
      %v4837 = vmul.f32 %v4798, %v4831
      %v4838 = vmul.f32 %v4799, %v4831
      %v4839 = vmul.f32 %v4800, %v4831
      %v4840 = vmul.f32 %v4801, %v4831
      %v4841 = vmul.f32 %v4802, %v4831
      %v4842 = vmul.f32 %v4803, %v4831
      %v4843 = vmul.f32 %v4804, %v4831
      %v4844 = vmul.f32 %v4805, %v4831
      %v4845 = vmul.f32 %v4806, %v4831
      %v4846 = vmul.f32 %v4807, %v4831
      %v4847 = vmul.f32 %v4808, %v4831
      %v4848 = vmul.f32 %v4809, %v4831
      %v4849 = vmul.f32 %v4810, %v4831
      %v4850 = vmul.f32 %v4811, %v4831
      %v4851 = vmul.f32 %v4812, %v4831
      %v4852 = vmul.f32 %v4813, %v4831
      %v4853 = vmul.f32 %v4814, %v4831
      %v4854 = vmul.f32 %v4815, %v4831
      %v4855 = vmul.f32 %v4816, %v4831
      %v4856 = vmul.f32 %v4817, %v4831
      %v4857 = vmul.f32 %v4818, %v4831
      %v4858 = vmul.f32 %v4819, %v4831
      %v4859 = vmul.f32 %v4820, %v4831
      %v4860 = vmul.f32 %v4821, %v4831
      %v4861 = vmul.f32 %v4822, %v4831
      %v4862 = vmul.f32 %v4823, %v4831
      %v4863 = vmul.f32 %v4824, %v4831
      %v4864 = vmul.f32 %v4825, %v4831
      %v4865 = vld [vmem:[%s9] sm:$0x1]
      %v4867 = vlaneseq
      %v4868 = vshrl.u32 %v4867, 7
      %v4869 = vsub.s32 0, %v4868
      %v4870 = vrot.slane %v4865, %v4869
      %v4872 = vadd.f32 %v4833, %v4870
      %v4873 = vadd.f32 %v4834, %v4870
      %v4874 = vadd.f32 %v4835, %v4870
      %v4875 = vadd.f32 %v4836, %v4870
      %v4876 = vadd.f32 %v4837, %v4870
      %v4877 = vadd.f32 %v4838, %v4870
      %v4878 = vadd.f32 %v4839, %v4870
      %v4879 = vadd.f32 %v4840, %v4870
      %v4880 = vadd.f32 %v4841, %v4870
      %v4881 = vadd.f32 %v4842, %v4870
      %v4882 = vadd.f32 %v4843, %v4870
      %v4883 = vadd.f32 %v4844, %v4870
      %v4884 = vadd.f32 %v4845, %v4870
      %v4885 = vadd.f32 %v4846, %v4870
      %v4886 = vadd.f32 %v4847, %v4870
      %v4887 = vadd.f32 %v4848, %v4870
      %v4888 = vadd.f32 %v4849, %v4870
      %v4889 = vadd.f32 %v4850, %v4870
      %v4890 = vadd.f32 %v4851, %v4870
      %v4891 = vadd.f32 %v4852, %v4870
      %v4892 = vadd.f32 %v4853, %v4870
      %v4893 = vadd.f32 %v4854, %v4870
      %v4894 = vadd.f32 %v4855, %v4870
      %v4895 = vadd.f32 %v4856, %v4870
      %v4896 = vadd.f32 %v4857, %v4870
      %v4897 = vadd.f32 %v4858, %v4870
      %v4898 = vadd.f32 %v4859, %v4870
      %v4899 = vadd.f32 %v4860, %v4870
      %v4900 = vadd.f32 %v4861, %v4870
      %v4901 = vadd.f32 %v4862, %v4870
      %v4902 = vadd.f32 %v4863, %v4870
      %v4903 = vadd.f32 %v4864, %v4870
      %v4904 = vmax.f32 %v4872, 0.0
      %v4905 = vmax.f32 %v4873, 0.0
      %v4906 = vmax.f32 %v4874, 0.0
      %v4907 = vmax.f32 %v4875, 0.0
      %v4908 = vmax.f32 %v4876, 0.0
      %v4909 = vmax.f32 %v4877, 0.0
      %v4910 = vmax.f32 %v4878, 0.0
      %v4911 = vmax.f32 %v4879, 0.0
      %v4912 = vmax.f32 %v4880, 0.0
      %v4913 = vmax.f32 %v4881, 0.0
      %v4914 = vmax.f32 %v4882, 0.0
      %v4915 = vmax.f32 %v4883, 0.0
      %v4916 = vmax.f32 %v4884, 0.0
      %v4917 = vmax.f32 %v4885, 0.0
      %v4918 = vmax.f32 %v4886, 0.0
      %v4919 = vmax.f32 %v4887, 0.0
      %v4920 = vmax.f32 %v4888, 0.0
      %v4921 = vmax.f32 %v4889, 0.0
      %v4922 = vmax.f32 %v4890, 0.0
      %v4923 = vmax.f32 %v4891, 0.0
      %v4924 = vmax.f32 %v4892, 0.0
      %v4925 = vmax.f32 %v4893, 0.0
      %v4926 = vmax.f32 %v4894, 0.0
      %v4927 = vmax.f32 %v4895, 0.0
      %v4928 = vmax.f32 %v4896, 0.0
      %v4929 = vmax.f32 %v4897, 0.0
      %v4930 = vmax.f32 %v4898, 0.0
      %v4931 = vmax.f32 %v4899, 0.0
      %v4932 = vmax.f32 %v4900, 0.0
      %v4933 = vmax.f32 %v4901, 0.0
      %v4934 = vmax.f32 %v4902, 0.0
      %v4935 = vmax.f32 %v4903, 0.0
      %4936 = vst.msk [vmem:[%s399] sm:$0xff] %vm1165, %v4904
      %4937 = vst.msk [vmem:[%s399 + $0x8] sm:$0xff] %vm1165, %v4905
      %4938 = vst.msk [vmem:[%s399 + $0x10] sm:$0xff] %vm1165, %v4906
      %4939 = vst.msk [vmem:[%s399 + $0x18] sm:$0xff] %vm1165, %v4907
      %4940 = vst.msk [vmem:[%s399 + $0x20] sm:$0xff] %vm1165, %v4908
      %4941 = vst.msk [vmem:[%s399 + $0x28] sm:$0xff] %vm1165, %v4909
      %4942 = vst.msk [vmem:[%s399 + $0x30] sm:$0xff] %vm1165, %v4910
      %4943 = vst.msk [vmem:[%s399 + $0x38] sm:$0xff] %vm1165, %v4911
      %4944 = vst.msk [vmem:[%s399 + $0x40] sm:$0xff] %vm1165, %v4912
      %4945 = vst.msk [vmem:[%s399 + $0x48] sm:$0xff] %vm1165, %v4913
      %4946 = vst.msk [vmem:[%s399 + $0x50] sm:$0xff] %vm1165, %v4914
      %4947 = vst.msk [vmem:[%s399 + $0x58] sm:$0xff] %vm1165, %v4915
      %4948 = vst.msk [vmem:[%s399 + $0x60] sm:$0xff] %vm1165, %v4916
      %4949 = vst.msk [vmem:[%s399 + $0x68] sm:$0xff] %vm1165, %v4917
      %4950 = vst.msk [vmem:[%s399 + $0x70] sm:$0xff] %vm1165, %v4918
      %4951 = vst.msk [vmem:[%s399 + $0x78] sm:$0xff] %vm1165, %v4919
      %4952 = vst.msk [vmem:[%s399 + $0x80] sm:$0xff] %vm1165, %v4920
      %4953 = vst.msk [vmem:[%s399 + $0x88] sm:$0xff] %vm1165, %v4921
      %4954 = vst.msk [vmem:[%s399 + $0x90] sm:$0xff] %vm1165, %v4922
      %4955 = vst.msk [vmem:[%s399 + $0x98] sm:$0xff] %vm1165, %v4923
      %4956 = vst.msk [vmem:[%s399 + $0xa0] sm:$0xff] %vm1165, %v4924
      %4957 = vst.msk [vmem:[%s399 + $0xa8] sm:$0xff] %vm1165, %v4925
      %4958 = vst.msk [vmem:[%s399 + $0xb0] sm:$0xff] %vm1165, %v4926
      %4959 = vst.msk [vmem:[%s399 + $0xb8] sm:$0xff] %vm1165, %v4927
      %4960 = vst.msk [vmem:[%s399 + $0xc0] sm:$0xff] %vm1165, %v4928
      %4961 = vst.msk [vmem:[%s399 + $0xc8] sm:$0xff] %vm1165, %v4929
      %4962 = vst.msk [vmem:[%s399 + $0xd0] sm:$0xff] %vm1165, %v4930
      %4963 = vst.msk [vmem:[%s399 + $0xd8] sm:$0xff] %vm1165, %v4931
      %4964 = vst.msk [vmem:[%s399 + $0xe0] sm:$0xff] %vm1165, %v4932
      %4965 = vst.msk [vmem:[%s399 + $0xe8] sm:$0xff] %vm1165, %v4933
      %4966 = vst.msk [vmem:[%s399 + $0xf0] sm:$0xff] %vm1165, %v4934
      %4967 = vst.msk [vmem:[%s399 + $0xf8] sm:$0xff] %vm1165, %v4935
      %p4968 = scmp.lt.s32.totalorder %s21, 1
      %s4969 = scalar_select %p4968, %s21, 1
      %s4970 = smul.addr %s4969, 32
      %s4971 = smul.addr %s4970, 8
      %s4972 = scalar_lea.vmem %s10, %s4971
      // Predicated region
      $region61: #{decoder_block_forward.1} parent=59 // pred_check
        %p4973 = pneg %p264
      $region62: #{decoder_block_forward.1} parent=59 // pred_check_branch
        %4975 = sbr.rel (%p4973) target = $region64
      $region63: #{decoder_block_forward.1} parent=59 // pred_region
        _
      $region64: #{decoder_block_forward.1} parent=59 // pred_fallthru
        _
    $region60: #{decoder_block_forward.1} parent=5 // pred_fallthru
      _
    %p4976 = scmp.le.s32.totalorder 2, %s16
    // Predicated region
    $region65: #{decoder_block_forward.1} parent=5 // pred_check
      %p4977 = pneg %p4976
    $region66: #{decoder_block_forward.1} parent=5 // pred_check_branch
      %4979 = sbr.rel (%p4977) target = $region68
    $region67: #{decoder_block_forward.1} parent=5 // pred_region
      %s4980 = ssub.s32 %s16, 2
      // Predicated region
      $region69: #{decoder_block_forward.1} parent=67 // pred_check
        %p4981 = pneg %p270
      $region70: #{decoder_block_forward.1} parent=67 // pred_check_branch
        %4983 = sbr.rel (%p4981) target = $region72
      $region71: #{decoder_block_forward.1} parent=67 // pred_region
        %p4984 = scmp.lt.s32.totalorder %s22, 1
        %s4985 = scalar_select %p4984, %s22, 1
        %s4986 = smul.addr %s4985, 32
        %s4987 = smul.addr %s4986, 8
        %s4988 = scalar_lea.vmem %s10, %s4987
      $region72: #{decoder_block_forward.1} parent=67 // pred_fallthru
        _
    $region68: #{decoder_block_forward.1} parent=5 // pred_fallthru
      _
  $region6: #{decoder_block_forward.1} parent=0 // loop_footer
    %s20 = sadd.s32 1, %s16
  $region7: #{decoder_block_forward.1} parent=0 // loop_footer_branch
    %15 = sbr.rel target = $region3
  $region8: #{decoder_block_forward.1} parent=0 // loop_exit
    _

</llo_original>
